<compile_context>
chip_gen: v7x
topology: tpu7x:2x2x1
jax: 0.10.0
libtpu: 0.0.40
codegen_flags: <defaults>
</compile_context>

<pallas_src>
import jax
import jax.numpy as jnp
from jax import lax
from jax.experimental import pallas as pl
from jax.experimental.pallas import tpu as pltpu


# ----------------------------------------------------------------------------
# Fused Pallas kernel: conv3x3+bn1+relu -> conv3x3+bn2 -> +residual -> relu
# ----------------------------------------------------------------------------
def _fused_basic_block_kernel(xc_ref, xt_ref, xb_ref, w1_ref, b1_ref,
                              w2_ref, b2_ref, out_ref,
                              xpad_ref, mid_ref, p1_ref, p2_ref):
    """One (batch, H-tile) grid step of the fused BasicBlock.

    xc_ref : (1, TH, W, Cin)   centre rows of the input tile
    xt_ref : (1, 2,  W, Cin)   2 rows above the tile (clamped at the image top)
    xb_ref : (1, 2,  W, Cin)   2 rows below the tile (clamped at the image bottom)
    w1_ref : (9*Cin, C1)       conv1 weights (BN1 scale folded), im2col layout
    b1_ref : (1, C1)           BN1 folded bias
    w2_ref : (9*C1, C2)        conv2 weights (BN2 scale folded)
    b2_ref : (1, C2)           BN2 folded bias
    out_ref: (1, TH, W, C2)
    xpad_ref: VMEM (TH+4, W+2, Cin)  zero-padded input tile
    mid_ref : VMEM (TH+2, W+2, C1)   zero-padded conv1 output (conv2 input)
    p1_ref  : VMEM (TH+2, W, 9*Cin)  im2col patches, stage 1
    p2_ref  : VMEM (TH,   W, 9*C1)   im2col patches, stage 2
    """
    _, TH, W, Cin = xc_ref.shape
    C1 = b1_ref.shape[-1]
    C2 = b2_ref.shape[-1]
    Wp = W + 2
    R1 = TH + 2                       # rows of conv1 output needed by conv2
    cdt = xpad_ref.dtype              # MXU operand dtype

    h = pl.program_id(1)
    n_h = pl.num_programs(1)

    # ---- assemble the zero-padded input tile (rows h*TH-2 .. h*TH+TH+2, 1-col W pad) ----
    xpad_ref[:, 0:1, :] = jnp.zeros((TH + 4, 1, Cin), cdt)          # left W pad
    xpad_ref[:, W + 1:W + 2, :] = jnp.zeros((TH + 4, 1, Cin), cdt)  # right W pad
    xpad_ref[2:TH + 2, 1:W + 1, :] = xc_ref[0].astype(cdt)
    xpad_ref[0:2, 1:W + 1, :] = xt_ref[0].astype(cdt)
    xpad_ref[TH + 2:TH + 4, 1:W + 1, :] = xb_ref[0].astype(cdt)

    @pl.when(h == 0)                 # conv1 zero-padding at the top of the image
    def _():
        xpad_ref[0:2, :, :] = jnp.zeros((2, Wp, Cin), cdt)

    @pl.when(h == n_h - 1)           # conv1 zero-padding at the bottom of the image
    def _():
        xpad_ref[TH + 2:TH + 4, :, :] = jnp.zeros((2, Wp, Cin), cdt)

    # ---- stage 1: conv3x3 (one im2col matmul, K = 9*Cin) + bn1 bias + ReLU ----
    for dy in range(3):
        for dx in range(3):
            k = dy * 3 + dx
            p1_ref[:, :, k * Cin:(k + 1) * Cin] = xpad_ref[dy:dy + R1, dx:dx + W, :]
    y1 = jnp.dot(p1_ref[...].reshape(R1 * W, 9 * Cin), w1_ref[...],
                 preferred_element_type=jnp.float32)
    y1 = jnp.maximum(y1 + b1_ref[...], 0.0)

    # store as the zero-padded conv2 input
    mid_ref[:, 0:1, :] = jnp.zeros((R1, 1, C1), cdt)
    mid_ref[:, W + 1:W + 2, :] = jnp.zeros((R1, 1, C1), cdt)
    mid_ref[:, 1:W + 1, :] = y1.reshape(R1, W, C1).astype(cdt)

    @pl.when(h == 0)                 # conv2 zero-padding row above the image
    def _():
        mid_ref[0:1, :, :] = jnp.zeros((1, Wp, C1), cdt)

    @pl.when(h == n_h - 1)           # conv2 zero-padding row below the image
    def _():
        mid_ref[R1 - 1:R1, :, :] = jnp.zeros((1, Wp, C1), cdt)

    # ---- stage 2: conv3x3 (one im2col matmul) + bn2 bias + residual + ReLU ----
    for dy in range(3):
        for dx in range(3):
            k = dy * 3 + dx
            p2_ref[:, :, k * C1:(k + 1) * C1] = mid_ref[dy:dy + TH, dx:dx + W, :]
    y2 = jnp.dot(p2_ref[...].reshape(TH * W, 9 * C1), w2_ref[...],
                 preferred_element_type=jnp.float32)
    y2 = y2 + b2_ref[...]
    y2 = y2.reshape(TH, W, C2) + xc_ref[0].astype(jnp.float32)      # identity residual
    y2 = jnp.maximum(y2, 0.0)
    out_ref[0] = y2.astype(out_ref.dtype)


# ----------------------------------------------------------------------------
# Wrapper: layout, BN folding, tiling, pallas_call
# ----------------------------------------------------------------------------
def _fold_bn(gamma, beta, running_mean, running_var, eps=1e-5):
    scale = gamma / jnp.sqrt(running_var + eps)
    bias = beta - running_mean * scale
    return scale, bias


def _pick_tile_h(H, max_rows=32):
    cands = [th for th in range(2, min(H, max_rows) + 1, 2) if H % th == 0]
    return max(cands) if cands else H


def basic_block_forward(x_nchw, params, *, tile_h=None, mxu_dtype=None):
    """BasicBlock.forward (stride=1, downsample=None), NCHW in / NCHW out."""
    N, C, H, W = x_nchw.shape
    assert H >= 2, "need at least 2 rows"
    w1_oihw = params["conv1_w"]
    w2_oihw = params["conv2_w"]
    C1, C2 = w1_oihw.shape[0], w2_oihw.shape[0]
    assert w1_oihw.shape[1] == C and w2_oihw.shape[1] == C1
    assert C1 == C2 == C, "identity residual requires in_planes == planes (no downsample)"

    # NCHW -> NHWC once at the boundary (keep NHWC between blocks when stacking).
    x = jnp.transpose(x_nchw, (0, 2, 3, 1))

    # Fold inference-mode BN: scale goes into the conv weights, bias stays in-kernel.
    s1, b1 = _fold_bn(*params["bn1"])
    s2, b2 = _fold_bn(*params["bn2"])
    w1 = jnp.transpose(w1_oihw, (2, 3, 1, 0)) * s1      # OIHW -> HWIO, scaled over Cout
    w2 = jnp.transpose(w2_oihw, (2, 3, 1, 0)) * s2
    w1 = w1.reshape(9 * C, C1)                           # im2col weight layout
    w2 = w2.reshape(9 * C1, C2)
    b1 = b1.reshape(1, C1).astype(jnp.float32)
    b2 = b2.reshape(1, C2).astype(jnp.float32)

    cdt = jnp.dtype(mxu_dtype) if mxu_dtype is not None else x.dtype
    xk = x.astype(cdt)
    w1 = w1.astype(cdt)
    w2 = w2.astype(cdt)

    # H tiling (even tile so the 2-row halo blocks land on block boundaries).
    TH = tile_h if tile_h is not None else _pick_tile_h(H)
    if H % TH != 0 or TH % 2 != 0:
        TH = H
    nH = H // TH
    hb = TH // 2                       # halo position in units of 2-row blocks
    max_halo_blk = (H - 2) // 2        # last fully in-bounds 2-row block

    in_specs = [
        # centre rows of the tile (also reused as the identity residual)
        pl.BlockSpec((1, TH, W, C), lambda n, h: (n, h, 0, 0)),
        # 2 rows above the tile (clamped; zeroed in-kernel when h == 0)
        pl.BlockSpec((1, 2, W, C),
                     lambda n, h: (n, jnp.maximum(h * hb - 1, 0), 0, 0)),
        # 2 rows below the tile (clamped; zeroed in-kernel when h == nH - 1)
        pl.BlockSpec((1, 2, W, C),
                     lambda n, h: (n, jnp.minimum((h + 1) * hb, max_halo_blk), 0, 0)),
        pl.BlockSpec((9 * C, C1), lambda n, h: (0, 0)),
        pl.BlockSpec((1, C1), lambda n, h: (0, 0)),
        pl.BlockSpec((9 * C1, C2), lambda n, h: (0, 0)),
        pl.BlockSpec((1, C2), lambda n, h: (0, 0)),
    ]
    out_specs = pl.BlockSpec((1, TH, W, C2), lambda n, h: (n, h, 0, 0))

    scratch_shapes = [
        pltpu.VMEM((TH + 4, W + 2, C), cdt),    # zero-padded input tile
        pltpu.VMEM((TH + 2, W + 2, C1), cdt),   # zero-padded conv1 output (conv2 input)
        pltpu.VMEM((TH + 2, W, 9 * C), cdt),    # stage-1 im2col patches
        pltpu.VMEM((TH, W, 9 * C1), cdt),       # stage-2 im2col patches
    ]

    out = pl.pallas_call(
        _fused_basic_block_kernel,
        out_shape=jax.ShapeDtypeStruct((N, H, W, C2), x.dtype),
        grid=(N, nH),
        in_specs=in_specs,
        out_specs=out_specs,
        scratch_shapes=scratch_shapes,
        compiler_params=pltpu.CompilerParams(
            # every (batch, H-tile) is independent -> both TCs on v7x; pipelined DMAs.
            dimension_semantics=("parallel", "parallel"),
            # vmem_limit_bytes can be raised here if larger tiles are chosen
            # (budget for v7x's 64 MiB: scratches + 2x double-buffered in/out blocks).
        ),
    )(xk, xk, xk, w1, b1, w2, b2)

    return jnp.transpose(out, (0, 3, 1, 2))     # NHWC -> NCHW


# ----------------------------------------------------------------------------
# Pure-JAX reference for validation
# ----------------------------------------------------------------------------
def _reference_forward(x_nchw, params):
    x = jnp.transpose(x_nchw, (0, 2, 3, 1))
    w1 = jnp.transpose(params["conv1_w"], (2, 3, 1, 0))
    w2 = jnp.transpose(params["conv2_w"], (2, 3, 1, 0))
    s1, b1 = _fold_bn(*params["bn1"])
    s2, b2 = _fold_bn(*params["bn2"])

    def conv(inp, w):
        return lax.conv_general_dilated(
            inp, w, window_strides=(1, 1), padding=((1, 1), (1, 1)),
            dimension_numbers=("NHWC", "HWIO", "NHWC"))

    out = jnp.maximum(conv(x, w1) * s1 + b1, 0.0)
    out = conv(out, w2) * s2 + b2 + x
    out = jnp.maximum(out, 0.0)
    return jnp.transpose(out, (0, 3, 1, 2))


# ----------------------------------------------------------------------------
# Main
# ----------------------------------------------------------------------------
if __name__ == "__main__":
    key = jax.random.PRNGKey(0)
    N, C, H, W = 2, 4, 16, 16          # in_planes = planes = 4, stride = 1
    planes = C

    keys = jax.random.split(key, 12)
    x = jax.random.normal(keys[0], (N, C, H, W), dtype=jnp.float32)

    params = {
        "conv1_w": 0.1 * jax.random.normal(keys[1], (planes, C, 3, 3), jnp.float32),
        "conv2_w": 0.1 * jax.random.normal(keys[2], (planes, planes, 3, 3), jnp.float32),
        # bn params: (gamma, beta, running_mean, running_var)
        "bn1": (
            1.0 + 0.1 * jax.random.normal(keys[3], (planes,), jnp.float32),
            0.1 * jax.random.normal(keys[4], (planes,), jnp.float32),
            0.1 * jax.random.normal(keys[5], (planes,), jnp.float32),
            0.5 + jnp.abs(jax.random.normal(keys[6], (planes,), jnp.float32)),
        ),
        "bn2": (
            1.0 + 0.1 * jax.random.normal(keys[7], (planes,), jnp.float32),
            0.1 * jax.random.normal(keys[8], (planes,), jnp.float32),
            0.1 * jax.random.normal(keys[9], (planes,), jnp.float32),
            0.5 + jnp.abs(jax.random.normal(keys[10], (planes,), jnp.float32)),
        ),
    }

    ref = jax.block_until_ready(_reference_forward(x, params))

    # multi-tile path (grid = (2, 2)): exercises the cross-tile halo logic
    out = jax.block_until_ready(basic_block_forward(x, params, tile_h=8))
    assert out.shape == (N, C, H, W), out.shape
    assert jnp.allclose(out, ref, atol=1e-4, rtol=1e-4), "mismatch vs reference (tiled)"

    # single-tile-per-image path (grid = (2, 1)): boundary-only halo
    out_full = jax.block_until_ready(basic_block_forward(x, params))
    assert jnp.allclose(out_full, ref, atol=1e-4, rtol=1e-4), "mismatch vs reference (full)"

    print("KERNEL_OK")
</pallas_src>

<mosaic_0001>
module attributes {stable_mosaic.version = 11 : i64} {
  func.func @_fused_basic_block_kernel(%arg0: i32, %arg1: i32, %arg2: memref<1x8x16x4xf32, #tpu.memory_space<vmem>>, %arg3: memref<1x2x16x4xf32, #tpu.memory_space<vmem>>, %arg4: memref<1x2x16x4xf32, #tpu.memory_space<vmem>>, %arg5: memref<36x4xf32, #tpu.memory_space<vmem>>, %arg6: memref<1x4xf32, #tpu.memory_space<vmem>>, %arg7: memref<36x4xf32, #tpu.memory_space<vmem>>, %arg8: memref<1x4xf32, #tpu.memory_space<vmem>>, %arg9: memref<1x8x16x4xf32, #tpu.memory_space<vmem>>, %arg10: memref<12x18x4xf32, #tpu.memory_space<vmem>>, %arg11: memref<10x18x4xf32, #tpu.memory_space<vmem>>, %arg12: memref<10x16x36xf32, #tpu.memory_space<vmem>>, %arg13: memref<8x16x36xf32, #tpu.memory_space<vmem>>) attributes {dimension_semantics = [#tpu.dimension_semantics<parallel>, #tpu.dimension_semantics<parallel>], iteration_bounds = array<i64: 2, 2>, scalar_prefetch = 0 : i64, scratch_operands = 4 : i64, tpu.core_type = #tpu.core_type<tc>, window_params = [{transform_indices = @transform_0, window_bounds = array<i64: 1, 8, 16, 4>}, {transform_indices = @transform_1, window_bounds = array<i64: 1, 2, 16, 4>}, {transform_indices = @transform_2, window_bounds = array<i64: 1, 2, 16, 4>}, {pipeline_mode = #tpu.pipeline_mode<synchronous>, transform_indices = @transform_3, window_bounds = array<i64: 36, 4>}, {pipeline_mode = #tpu.pipeline_mode<synchronous>, transform_indices = @transform_4, window_bounds = array<i64: 1, 4>}, {pipeline_mode = #tpu.pipeline_mode<synchronous>, transform_indices = @transform_5, window_bounds = array<i64: 36, 4>}, {pipeline_mode = #tpu.pipeline_mode<synchronous>, transform_indices = @transform_6, window_bounds = array<i64: 1, 4>}, {transform_indices = @transform_7, window_bounds = array<i64: 1, 8, 16, 4>}]} {
    %cst = arith.constant 0.000000e+00 : f32
    %0 = vector.broadcast %cst : f32 to vector<12x1x4xf32>
    %c0 = arith.constant 0 : index
    %c0_0 = arith.constant 0 : index
    %c0_1 = arith.constant 0 : index
    %1 = vector.load %arg10[%c0, %c0_0, %c0_1] : memref<12x18x4xf32, #tpu.memory_space<vmem>>, vector<12x1x4xf32>
    tpu.vector_store %arg10[%c0, %c0_0, %c0_1], %0 {strides = array<i32>} : memref<12x18x4xf32, #tpu.memory_space<vmem>>, vector<12x1x4xf32>,
    %cst_2 = arith.constant 0.000000e+00 : f32
    %2 = vector.broadcast %cst_2 : f32 to vector<12x1x4xf32>
    %c0_3 = arith.constant 0 : index
    %c17 = arith.constant 17 : index
    %c0_4 = arith.constant 0 : index
    %3 = vector.load %arg10[%c0_3, %c17, %c0_4] : memref<12x18x4xf32, #tpu.memory_space<vmem>>, vector<12x1x4xf32>
    tpu.vector_store %arg10[%c0_3, %c17, %c0_4], %2 {strides = array<i32>} : memref<12x18x4xf32, #tpu.memory_space<vmem>>, vector<12x1x4xf32>,
    %c0_5 = arith.constant 0 : index
    %c0_6 = arith.constant 0 : index
    %c0_7 = arith.constant 0 : index
    %c0_8 = arith.constant 0 : index
    %4 = vector.load %arg2[%c0_5, %c0_6, %c0_7, %c0_8] : memref<1x8x16x4xf32, #tpu.memory_space<vmem>>, vector<1x8x16x4xf32>
    %5 = vector.shape_cast %4 : vector<1x8x16x4xf32> to vector<8x16x4xf32>
    %c2 = arith.constant 2 : index
    %c1 = arith.constant 1 : index
    %c0_9 = arith.constant 0 : index
    %6 = vector.load %arg10[%c2, %c1, %c0_9] : memref<12x18x4xf32, #tpu.memory_space<vmem>>, vector<8x16x4xf32>
    tpu.vector_store %arg10[%c2, %c1, %c0_9], %5 {strides = array<i32>} : memref<12x18x4xf32, #tpu.memory_space<vmem>>, vector<8x16x4xf32>,
    %c0_10 = arith.constant 0 : index
    %c0_11 = arith.constant 0 : index
    %c0_12 = arith.constant 0 : index
    %c0_13 = arith.constant 0 : index
    %7 = vector.load %arg3[%c0_10, %c0_11, %c0_12, %c0_13] : memref<1x2x16x4xf32, #tpu.memory_space<vmem>>, vector<1x2x16x4xf32>
    %8 = vector.shape_cast %7 : vector<1x2x16x4xf32> to vector<2x16x4xf32>
    %c0_14 = arith.constant 0 : index
    %c1_15 = arith.constant 1 : index
    %c0_16 = arith.constant 0 : index
    %9 = vector.load %arg10[%c0_14, %c1_15, %c0_16] : memref<12x18x4xf32, #tpu.memory_space<vmem>>, vector<2x16x4xf32>
    tpu.vector_store %arg10[%c0_14, %c1_15, %c0_16], %8 {strides = array<i32>} : memref<12x18x4xf32, #tpu.memory_space<vmem>>, vector<2x16x4xf32>,
    %c0_17 = arith.constant 0 : index
    %c0_18 = arith.constant 0 : index
    %c0_19 = arith.constant 0 : index
    %c0_20 = arith.constant 0 : index
    %10 = vector.load %arg4[%c0_17, %c0_18, %c0_19, %c0_20] : memref<1x2x16x4xf32, #tpu.memory_space<vmem>>, vector<1x2x16x4xf32>
    %11 = vector.shape_cast %10 : vector<1x2x16x4xf32> to vector<2x16x4xf32>
    %c10 = arith.constant 10 : index
    %c1_21 = arith.constant 1 : index
    %c0_22 = arith.constant 0 : index
    %12 = vector.load %arg10[%c10, %c1_21, %c0_22] : memref<12x18x4xf32, #tpu.memory_space<vmem>>, vector<2x16x4xf32>
    tpu.vector_store %arg10[%c10, %c1_21, %c0_22], %11 {strides = array<i32>} : memref<12x18x4xf32, #tpu.memory_space<vmem>>, vector<2x16x4xf32>,
    %c0_i32 = arith.constant 0 : i32
    %13 = arith.cmpi eq, %arg1, %c0_i32 : i32
    %14 = arith.extui %13 : i1 to i32
    %c0_i32_23 = arith.constant 0 : i32
    %15 = arith.cmpi ne, %14, %c0_i32_23 : i32
    scf.if %15 {
      %cst_166 = arith.constant 0.000000e+00 : f32
      %92 = vector.broadcast %cst_166 : f32 to vector<2x18x4xf32>
      %c0_167 = arith.constant 0 : index
      %c0_168 = arith.constant 0 : index
      %c0_169 = arith.constant 0 : index
      %93 = vector.load %arg10[%c0_167, %c0_168, %c0_169] : memref<12x18x4xf32, #tpu.memory_space<vmem>>, vector<2x18x4xf32>
      tpu.vector_store %arg10[%c0_167, %c0_168, %c0_169], %92 {strides = array<i32>} : memref<12x18x4xf32, #tpu.memory_space<vmem>>, vector<2x18x4xf32>,
    } else {
    }
    %c1_i32 = arith.constant 1 : i32
    %16 = arith.cmpi eq, %arg1, %c1_i32 : i32
    %17 = arith.extui %16 : i1 to i32
    %c0_i32_24 = arith.constant 0 : i32
    %18 = arith.cmpi ne, %17, %c0_i32_24 : i32
    scf.if %18 {
      %cst_166 = arith.constant 0.000000e+00 : f32
      %92 = vector.broadcast %cst_166 : f32 to vector<2x18x4xf32>
      %c10_167 = arith.constant 10 : index
      %c0_168 = arith.constant 0 : index
      %c0_169 = arith.constant 0 : index
      %93 = vector.load %arg10[%c10_167, %c0_168, %c0_169] : memref<12x18x4xf32, #tpu.memory_space<vmem>>, vector<2x18x4xf32>
      tpu.vector_store %arg10[%c10_167, %c0_168, %c0_169], %92 {strides = array<i32>} : memref<12x18x4xf32, #tpu.memory_space<vmem>>, vector<2x18x4xf32>,
    } else {
    }
    %c0_25 = arith.constant 0 : index
    %c0_26 = arith.constant 0 : index
    %c0_27 = arith.constant 0 : index
    %19 = vector.load %arg10[%c0_25, %c0_26, %c0_27] : memref<12x18x4xf32, #tpu.memory_space<vmem>>, vector<10x16x4xf32>
    %c0_28 = arith.constant 0 : index
    %c0_29 = arith.constant 0 : index
    %c0_30 = arith.constant 0 : index
    %20 = vector.load %arg12[%c0_28, %c0_29, %c0_30] : memref<10x16x36xf32, #tpu.memory_space<vmem>>, vector<10x16x4xf32>
    tpu.vector_store %arg12[%c0_28, %c0_29, %c0_30], %19 {strides = array<i32>} : memref<10x16x36xf32, #tpu.memory_space<vmem>>, vector<10x16x4xf32>,
    %c0_31 = arith.constant 0 : index
    %c1_32 = arith.constant 1 : index
    %c0_33 = arith.constant 0 : index
    %21 = vector.load %arg10[%c0_31, %c1_32, %c0_33] : memref<12x18x4xf32, #tpu.memory_space<vmem>>, vector<10x16x4xf32>
    %c0_34 = arith.constant 0 : index
    %c0_35 = arith.constant 0 : index
    %c4 = arith.constant 4 : index
    %22 = vector.load %arg12[%c0_34, %c0_35, %c4] : memref<10x16x36xf32, #tpu.memory_space<vmem>>, vector<10x16x4xf32>
    tpu.vector_store %arg12[%c0_34, %c0_35, %c4], %21 {strides = array<i32>} : memref<10x16x36xf32, #tpu.memory_space<vmem>>, vector<10x16x4xf32>,
    %c0_36 = arith.constant 0 : index
    %c2_37 = arith.constant 2 : index
    %c0_38 = arith.constant 0 : index
    %23 = vector.load %arg10[%c0_36, %c2_37, %c0_38] : memref<12x18x4xf32, #tpu.memory_space<vmem>>, vector<10x16x4xf32>
    %c0_39 = arith.constant 0 : index
    %c0_40 = arith.constant 0 : index
    %c8 = arith.constant 8 : index
    %24 = vector.load %arg12[%c0_39, %c0_40, %c8] : memref<10x16x36xf32, #tpu.memory_space<vmem>>, vector<10x16x4xf32>
    tpu.vector_store %arg12[%c0_39, %c0_40, %c8], %23 {strides = array<i32>} : memref<10x16x36xf32, #tpu.memory_space<vmem>>, vector<10x16x4xf32>,
    %c1_41 = arith.constant 1 : index
    %c0_42 = arith.constant 0 : index
    %c0_43 = arith.constant 0 : index
    %25 = vector.load %arg10[%c1_41, %c0_42, %c0_43] : memref<12x18x4xf32, #tpu.memory_space<vmem>>, vector<10x16x4xf32>
    %c0_44 = arith.constant 0 : index
    %c0_45 = arith.constant 0 : index
    %c12 = arith.constant 12 : index
    %26 = vector.load %arg12[%c0_44, %c0_45, %c12] : memref<10x16x36xf32, #tpu.memory_space<vmem>>, vector<10x16x4xf32>
    tpu.vector_store %arg12[%c0_44, %c0_45, %c12], %25 {strides = array<i32>} : memref<10x16x36xf32, #tpu.memory_space<vmem>>, vector<10x16x4xf32>,
    %c1_46 = arith.constant 1 : index
    %c1_47 = arith.constant 1 : index
    %c0_48 = arith.constant 0 : index
    %27 = vector.load %arg10[%c1_46, %c1_47, %c0_48] : memref<12x18x4xf32, #tpu.memory_space<vmem>>, vector<10x16x4xf32>
    %c0_49 = arith.constant 0 : index
    %c0_50 = arith.constant 0 : index
    %c16 = arith.constant 16 : index
    %28 = vector.load %arg12[%c0_49, %c0_50, %c16] : memref<10x16x36xf32, #tpu.memory_space<vmem>>, vector<10x16x4xf32>
    tpu.vector_store %arg12[%c0_49, %c0_50, %c16], %27 {strides = array<i32>} : memref<10x16x36xf32, #tpu.memory_space<vmem>>, vector<10x16x4xf32>,
    %c1_51 = arith.constant 1 : index
    %c2_52 = arith.constant 2 : index
    %c0_53 = arith.constant 0 : index
    %29 = vector.load %arg10[%c1_51, %c2_52, %c0_53] : memref<12x18x4xf32, #tpu.memory_space<vmem>>, vector<10x16x4xf32>
    %c0_54 = arith.constant 0 : index
    %c0_55 = arith.constant 0 : index
    %c20 = arith.constant 20 : index
    %30 = vector.load %arg12[%c0_54, %c0_55, %c20] : memref<10x16x36xf32, #tpu.memory_space<vmem>>, vector<10x16x4xf32>
    tpu.vector_store %arg12[%c0_54, %c0_55, %c20], %29 {strides = array<i32>} : memref<10x16x36xf32, #tpu.memory_space<vmem>>, vector<10x16x4xf32>,
    %c2_56 = arith.constant 2 : index
    %c0_57 = arith.constant 0 : index
    %c0_58 = arith.constant 0 : index
    %31 = vector.load %arg10[%c2_56, %c0_57, %c0_58] : memref<12x18x4xf32, #tpu.memory_space<vmem>>, vector<10x16x4xf32>
    %c0_59 = arith.constant 0 : index
    %c0_60 = arith.constant 0 : index
    %c24 = arith.constant 24 : index
    %32 = vector.load %arg12[%c0_59, %c0_60, %c24] : memref<10x16x36xf32, #tpu.memory_space<vmem>>, vector<10x16x4xf32>
    tpu.vector_store %arg12[%c0_59, %c0_60, %c24], %31 {strides = array<i32>} : memref<10x16x36xf32, #tpu.memory_space<vmem>>, vector<10x16x4xf32>,
    %c2_61 = arith.constant 2 : index
    %c1_62 = arith.constant 1 : index
    %c0_63 = arith.constant 0 : index
    %33 = vector.load %arg10[%c2_61, %c1_62, %c0_63] : memref<12x18x4xf32, #tpu.memory_space<vmem>>, vector<10x16x4xf32>
    %c0_64 = arith.constant 0 : index
    %c0_65 = arith.constant 0 : index
    %c28 = arith.constant 28 : index
    %34 = vector.load %arg12[%c0_64, %c0_65, %c28] : memref<10x16x36xf32, #tpu.memory_space<vmem>>, vector<10x16x4xf32>
    tpu.vector_store %arg12[%c0_64, %c0_65, %c28], %33 {strides = array<i32>} : memref<10x16x36xf32, #tpu.memory_space<vmem>>, vector<10x16x4xf32>,
    %c2_66 = arith.constant 2 : index
    %c2_67 = arith.constant 2 : index
    %c0_68 = arith.constant 0 : index
    %35 = vector.load %arg10[%c2_66, %c2_67, %c0_68] : memref<12x18x4xf32, #tpu.memory_space<vmem>>, vector<10x16x4xf32>
    %c0_69 = arith.constant 0 : index
    %c0_70 = arith.constant 0 : index
    %c32 = arith.constant 32 : index
    %36 = vector.load %arg12[%c0_69, %c0_70, %c32] : memref<10x16x36xf32, #tpu.memory_space<vmem>>, vector<10x16x4xf32>
    tpu.vector_store %arg12[%c0_69, %c0_70, %c32], %35 {strides = array<i32>} : memref<10x16x36xf32, #tpu.memory_space<vmem>>, vector<10x16x4xf32>,
    %c0_71 = arith.constant 0 : index
    %c0_72 = arith.constant 0 : index
    %c0_73 = arith.constant 0 : index
    %37 = vector.load %arg12[%c0_71, %c0_72, %c0_73] : memref<10x16x36xf32, #tpu.memory_space<vmem>>, vector<10x16x36xf32>
    %38 = vector.shape_cast %37 : vector<10x16x36xf32> to vector<160x36xf32>
    %c0_74 = arith.constant 0 : index
    %c0_75 = arith.constant 0 : index
    %39 = vector.load %arg5[%c0_74, %c0_75] : memref<36x4xf32, #tpu.memory_space<vmem>>, vector<36x4xf32>
    %cst_76 = arith.constant dense<0.000000e+00> : vector<160x4xf32>
    %40 = tpu.matmul %38, %39, %cst_76 {dimension_numbers = #tpu.dot_dimension_numbers<[1], [0], [0], [1], [0, 0, 1, 1], [], []>} : vector<160x36xf32>, vector<36x4xf32>, vector<160x4xf32> -> vector<160x4xf32>
    %c0_77 = arith.constant 0 : index
    %c0_78 = arith.constant 0 : index
    %41 = vector.load %arg6[%c0_77, %c0_78] : memref<1x4xf32, #tpu.memory_space<vmem>>, vector<1x4xf32>
    %42 = vector.broadcast %41 : vector<1x4xf32> to vector<160x4xf32>
    %43 = arith.addf %40, %42 : vector<160x4xf32>
    %cst_79 = arith.constant 0.000000e+00 : f32
    %44 = vector.broadcast %cst_79 : f32 to vector<160x4xf32>
    %45 = arith.maximumf %43, %44 : vector<160x4xf32>
    %cst_80 = arith.constant 0.000000e+00 : f32
    %46 = vector.broadcast %cst_80 : f32 to vector<10x1x4xf32>
    %c0_81 = arith.constant 0 : index
    %c0_82 = arith.constant 0 : index
    %c0_83 = arith.constant 0 : index
    %47 = vector.load %arg11[%c0_81, %c0_82, %c0_83] : memref<10x18x4xf32, #tpu.memory_space<vmem>>, vector<10x1x4xf32>
    tpu.vector_store %arg11[%c0_81, %c0_82, %c0_83], %46 {strides = array<i32>} : memref<10x18x4xf32, #tpu.memory_space<vmem>>, vector<10x1x4xf32>,
    %cst_84 = arith.constant 0.000000e+00 : f32
    %48 = vector.broadcast %cst_84 : f32 to vector<10x1x4xf32>
    %c0_85 = arith.constant 0 : index
    %c17_86 = arith.constant 17 : index
    %c0_87 = arith.constant 0 : index
    %49 = vector.load %arg11[%c0_85, %c17_86, %c0_87] : memref<10x18x4xf32, #tpu.memory_space<vmem>>, vector<10x1x4xf32>
    tpu.vector_store %arg11[%c0_85, %c17_86, %c0_87], %48 {strides = array<i32>} : memref<10x18x4xf32, #tpu.memory_space<vmem>>, vector<10x1x4xf32>,
    %50 = vector.shape_cast %45 : vector<160x4xf32> to vector<10x16x4xf32>
    %c0_88 = arith.constant 0 : index
    %c1_89 = arith.constant 1 : index
    %c0_90 = arith.constant 0 : index
    %51 = vector.load %arg11[%c0_88, %c1_89, %c0_90] : memref<10x18x4xf32, #tpu.memory_space<vmem>>, vector<10x16x4xf32>
    tpu.vector_store %arg11[%c0_88, %c1_89, %c0_90], %50 {strides = array<i32>} : memref<10x18x4xf32, #tpu.memory_space<vmem>>, vector<10x16x4xf32>,
    %c0_i32_91 = arith.constant 0 : i32
    %52 = arith.cmpi eq, %arg1, %c0_i32_91 : i32
    %53 = arith.extui %52 : i1 to i32
    %c0_i32_92 = arith.constant 0 : i32
    %54 = arith.cmpi ne, %53, %c0_i32_92 : i32
    scf.if %54 {
      %cst_166 = arith.constant 0.000000e+00 : f32
      %92 = vector.broadcast %cst_166 : f32 to vector<1x18x4xf32>
      %c0_167 = arith.constant 0 : index
      %c0_168 = arith.constant 0 : index
      %c0_169 = arith.constant 0 : index
      %93 = vector.load %arg11[%c0_167, %c0_168, %c0_169] : memref<10x18x4xf32, #tpu.memory_space<vmem>>, vector<1x18x4xf32>
      tpu.vector_store %arg11[%c0_167, %c0_168, %c0_169], %92 {strides = array<i32>} : memref<10x18x4xf32, #tpu.memory_space<vmem>>, vector<1x18x4xf32>,
    } else {
    }
    %c1_i32_93 = arith.constant 1 : i32
    %55 = arith.cmpi eq, %arg1, %c1_i32_93 : i32
    %56 = arith.extui %55 : i1 to i32
    %c0_i32_94 = arith.constant 0 : i32
    %57 = arith.cmpi ne, %56, %c0_i32_94 : i32
    scf.if %57 {
      %cst_166 = arith.constant 0.000000e+00 : f32
      %92 = vector.broadcast %cst_166 : f32 to vector<1x18x4xf32>
      %c9 = arith.constant 9 : index
      %c0_167 = arith.constant 0 : index
      %c0_168 = arith.constant 0 : index
      %93 = vector.load %arg11[%c9, %c0_167, %c0_168] : memref<10x18x4xf32, #tpu.memory_space<vmem>>, vector<1x18x4xf32>
      tpu.vector_store %arg11[%c9, %c0_167, %c0_168], %92 {strides = array<i32>} : memref<10x18x4xf32, #tpu.memory_space<vmem>>, vector<1x18x4xf32>,
    } else {
    }
    %c0_95 = arith.constant 0 : index
    %c0_96 = arith.constant 0 : index
    %c0_97 = arith.constant 0 : index
    %58 = vector.load %arg11[%c0_95, %c0_96, %c0_97] : memref<10x18x4xf32, #tpu.memory_space<vmem>>, vector<8x16x4xf32>
    %c0_98 = arith.constant 0 : index
    %c0_99 = arith.constant 0 : index
    %c0_100 = arith.constant 0 : index
    %59 = vector.load %arg13[%c0_98, %c0_99, %c0_100] : memref<8x16x36xf32, #tpu.memory_space<vmem>>, vector<8x16x4xf32>
    tpu.vector_store %arg13[%c0_98, %c0_99, %c0_100], %58 {strides = array<i32>} : memref<8x16x36xf32, #tpu.memory_space<vmem>>, vector<8x16x4xf32>,
    %c0_101 = arith.constant 0 : index
    %c1_102 = arith.constant 1 : index
    %c0_103 = arith.constant 0 : index
    %60 = vector.load %arg11[%c0_101, %c1_102, %c0_103] : memref<10x18x4xf32, #tpu.memory_space<vmem>>, vector<8x16x4xf32>
    %c0_104 = arith.constant 0 : index
    %c0_105 = arith.constant 0 : index
    %c4_106 = arith.constant 4 : index
    %61 = vector.load %arg13[%c0_104, %c0_105, %c4_106] : memref<8x16x36xf32, #tpu.memory_space<vmem>>, vector<8x16x4xf32>
    tpu.vector_store %arg13[%c0_104, %c0_105, %c4_106], %60 {strides = array<i32>} : memref<8x16x36xf32, #tpu.memory_space<vmem>>, vector<8x16x4xf32>,
    %c0_107 = arith.constant 0 : index
    %c2_108 = arith.constant 2 : index
    %c0_109 = arith.constant 0 : index
    %62 = vector.load %arg11[%c0_107, %c2_108, %c0_109] : memref<10x18x4xf32, #tpu.memory_space<vmem>>, vector<8x16x4xf32>
    %c0_110 = arith.constant 0 : index
    %c0_111 = arith.constant 0 : index
    %c8_112 = arith.constant 8 : index
    %63 = vector.load %arg13[%c0_110, %c0_111, %c8_112] : memref<8x16x36xf32, #tpu.memory_space<vmem>>, vector<8x16x4xf32>
    tpu.vector_store %arg13[%c0_110, %c0_111, %c8_112], %62 {strides = array<i32>} : memref<8x16x36xf32, #tpu.memory_space<vmem>>, vector<8x16x4xf32>,
    %c1_113 = arith.constant 1 : index
    %c0_114 = arith.constant 0 : index
    %c0_115 = arith.constant 0 : index
    %64 = vector.load %arg11[%c1_113, %c0_114, %c0_115] : memref<10x18x4xf32, #tpu.memory_space<vmem>>, vector<8x16x4xf32>
    %c0_116 = arith.constant 0 : index
    %c0_117 = arith.constant 0 : index
    %c12_118 = arith.constant 12 : index
    %65 = vector.load %arg13[%c0_116, %c0_117, %c12_118] : memref<8x16x36xf32, #tpu.memory_space<vmem>>, vector<8x16x4xf32>
    tpu.vector_store %arg13[%c0_116, %c0_117, %c12_118], %64 {strides = array<i32>} : memref<8x16x36xf32, #tpu.memory_space<vmem>>, vector<8x16x4xf32>,
    %c1_119 = arith.constant 1 : index
    %c1_120 = arith.constant 1 : index
    %c0_121 = arith.constant 0 : index
    %66 = vector.load %arg11[%c1_119, %c1_120, %c0_121] : memref<10x18x4xf32, #tpu.memory_space<vmem>>, vector<8x16x4xf32>
    %c0_122 = arith.constant 0 : index
    %c0_123 = arith.constant 0 : index
    %c16_124 = arith.constant 16 : index
    %67 = vector.load %arg13[%c0_122, %c0_123, %c16_124] : memref<8x16x36xf32, #tpu.memory_space<vmem>>, vector<8x16x4xf32>
    tpu.vector_store %arg13[%c0_122, %c0_123, %c16_124], %66 {strides = array<i32>} : memref<8x16x36xf32, #tpu.memory_space<vmem>>, vector<8x16x4xf32>,
    %c1_125 = arith.constant 1 : index
    %c2_126 = arith.constant 2 : index
    %c0_127 = arith.constant 0 : index
    %68 = vector.load %arg11[%c1_125, %c2_126, %c0_127] : memref<10x18x4xf32, #tpu.memory_space<vmem>>, vector<8x16x4xf32>
    %c0_128 = arith.constant 0 : index
    %c0_129 = arith.constant 0 : index
    %c20_130 = arith.constant 20 : index
    %69 = vector.load %arg13[%c0_128, %c0_129, %c20_130] : memref<8x16x36xf32, #tpu.memory_space<vmem>>, vector<8x16x4xf32>
    tpu.vector_store %arg13[%c0_128, %c0_129, %c20_130], %68 {strides = array<i32>} : memref<8x16x36xf32, #tpu.memory_space<vmem>>, vector<8x16x4xf32>,
    %c2_131 = arith.constant 2 : index
    %c0_132 = arith.constant 0 : index
    %c0_133 = arith.constant 0 : index
    %70 = vector.load %arg11[%c2_131, %c0_132, %c0_133] : memref<10x18x4xf32, #tpu.memory_space<vmem>>, vector<8x16x4xf32>
    %c0_134 = arith.constant 0 : index
    %c0_135 = arith.constant 0 : index
    %c24_136 = arith.constant 24 : index
    %71 = vector.load %arg13[%c0_134, %c0_135, %c24_136] : memref<8x16x36xf32, #tpu.memory_space<vmem>>, vector<8x16x4xf32>
    tpu.vector_store %arg13[%c0_134, %c0_135, %c24_136], %70 {strides = array<i32>} : memref<8x16x36xf32, #tpu.memory_space<vmem>>, vector<8x16x4xf32>,
    %c2_137 = arith.constant 2 : index
    %c1_138 = arith.constant 1 : index
    %c0_139 = arith.constant 0 : index
    %72 = vector.load %arg11[%c2_137, %c1_138, %c0_139] : memref<10x18x4xf32, #tpu.memory_space<vmem>>, vector<8x16x4xf32>
    %c0_140 = arith.constant 0 : index
    %c0_141 = arith.constant 0 : index
    %c28_142 = arith.constant 28 : index
    %73 = vector.load %arg13[%c0_140, %c0_141, %c28_142] : memref<8x16x36xf32, #tpu.memory_space<vmem>>, vector<8x16x4xf32>
    tpu.vector_store %arg13[%c0_140, %c0_141, %c28_142], %72 {strides = array<i32>} : memref<8x16x36xf32, #tpu.memory_space<vmem>>, vector<8x16x4xf32>,
    %c2_143 = arith.constant 2 : index
    %c2_144 = arith.constant 2 : index
    %c0_145 = arith.constant 0 : index
    %74 = vector.load %arg11[%c2_143, %c2_144, %c0_145] : memref<10x18x4xf32, #tpu.memory_space<vmem>>, vector<8x16x4xf32>
    %c0_146 = arith.constant 0 : index
    %c0_147 = arith.constant 0 : index
    %c32_148 = arith.constant 32 : index
    %75 = vector.load %arg13[%c0_146, %c0_147, %c32_148] : memref<8x16x36xf32, #tpu.memory_space<vmem>>, vector<8x16x4xf32>
    tpu.vector_store %arg13[%c0_146, %c0_147, %c32_148], %74 {strides = array<i32>} : memref<8x16x36xf32, #tpu.memory_space<vmem>>, vector<8x16x4xf32>,
    %c0_149 = arith.constant 0 : index
    %c0_150 = arith.constant 0 : index
    %c0_151 = arith.constant 0 : index
    %76 = vector.load %arg13[%c0_149, %c0_150, %c0_151] : memref<8x16x36xf32, #tpu.memory_space<vmem>>, vector<8x16x36xf32>
    %77 = vector.shape_cast %76 : vector<8x16x36xf32> to vector<128x36xf32>
    %c0_152 = arith.constant 0 : index
    %c0_153 = arith.constant 0 : index
    %78 = vector.load %arg7[%c0_152, %c0_153] : memref<36x4xf32, #tpu.memory_space<vmem>>, vector<36x4xf32>
    %cst_154 = arith.constant dense<0.000000e+00> : vector<128x4xf32>
    %79 = tpu.matmul %77, %78, %cst_154 {dimension_numbers = #tpu.dot_dimension_numbers<[1], [0], [0], [1], [0, 0, 1, 1], [], []>} : vector<128x36xf32>, vector<36x4xf32>, vector<128x4xf32> -> vector<128x4xf32>
    %c0_155 = arith.constant 0 : index
    %c0_156 = arith.constant 0 : index
    %80 = vector.load %arg8[%c0_155, %c0_156] : memref<1x4xf32, #tpu.memory_space<vmem>>, vector<1x4xf32>
    %81 = vector.broadcast %80 : vector<1x4xf32> to vector<128x4xf32>
    %82 = arith.addf %79, %81 : vector<128x4xf32>
    %83 = vector.shape_cast %82 : vector<128x4xf32> to vector<8x16x4xf32>
    %c0_157 = arith.constant 0 : index
    %c0_158 = arith.constant 0 : index
    %c0_159 = arith.constant 0 : index
    %c0_160 = arith.constant 0 : index
    %84 = vector.load %arg2[%c0_157, %c0_158, %c0_159, %c0_160] : memref<1x8x16x4xf32, #tpu.memory_space<vmem>>, vector<1x8x16x4xf32>
    %85 = vector.shape_cast %84 : vector<1x8x16x4xf32> to vector<8x16x4xf32>
    %86 = arith.addf %83, %85 : vector<8x16x4xf32>
    %cst_161 = arith.constant 0.000000e+00 : f32
    %87 = vector.broadcast %cst_161 : f32 to vector<8x16x4xf32>
    %88 = arith.maximumf %86, %87 : vector<8x16x4xf32>
    %c0_162 = arith.constant 0 : index
    %c0_163 = arith.constant 0 : index
    %c0_164 = arith.constant 0 : index
    %c0_165 = arith.constant 0 : index
    %89 = vector.load %arg9[%c0_162, %c0_163, %c0_164, %c0_165] : memref<1x8x16x4xf32, #tpu.memory_space<vmem>>, vector<1x8x16x4xf32>
    %90 = vector.shape_cast %89 : vector<1x8x16x4xf32> to vector<8x16x4xf32>
    %91 = vector.shape_cast %88 : vector<8x16x4xf32> to vector<1x8x16x4xf32>
    tpu.vector_store %arg9[%c0_162, %c0_163, %c0_164, %c0_165], %91 {strides = array<i32>} : memref<1x8x16x4xf32, #tpu.memory_space<vmem>>, vector<1x8x16x4xf32>,
    return
  }
  func.func @transform_0(%arg0: i32, %arg1: i32) -> (i32, i32, i32, i32) {
    %c0_i32 = arith.constant 0 : i32
    %c0_i32_0 = arith.constant 0 : i32
    %c0_i32_1 = arith.constant 0 : i32
    return %arg0, %arg1, %c0_i32, %c0_i32_0 : i32, i32, i32, i32
  }
  func.func @transform_1(%arg0: i32, %arg1: i32) -> (i32, i32, i32, i32) {
    %c4_i32 = arith.constant 4 : i32
    %0 = arith.muli %arg1, %c4_i32 : i32
    %c1_i32 = arith.constant 1 : i32
    %1 = arith.subi %0, %c1_i32 : i32
    %c0_i32 = arith.constant 0 : i32
    %2 = arith.maxsi %1, %c0_i32 : i32
    %c0_i32_0 = arith.constant 0 : i32
    %c0_i32_1 = arith.constant 0 : i32
    %c0_i32_2 = arith.constant 0 : i32
    return %arg0, %2, %c0_i32_0, %c0_i32_1 : i32, i32, i32, i32
  }
  func.func @transform_2(%arg0: i32, %arg1: i32) -> (i32, i32, i32, i32) {
    %c1_i32 = arith.constant 1 : i32
    %0 = arith.addi %arg1, %c1_i32 : i32
    %c4_i32 = arith.constant 4 : i32
    %1 = arith.muli %0, %c4_i32 : i32
    %c7_i32 = arith.constant 7 : i32
    %2 = arith.minsi %1, %c7_i32 : i32
    %c0_i32 = arith.constant 0 : i32
    %c0_i32_0 = arith.constant 0 : i32
    %c0_i32_1 = arith.constant 0 : i32
    return %arg0, %2, %c0_i32, %c0_i32_0 : i32, i32, i32, i32
  }
  func.func @transform_3(%arg0: i32, %arg1: i32) -> (i32, i32) {
    %c0_i32 = arith.constant 0 : i32
    %c0_i32_0 = arith.constant 0 : i32
    %c0_i32_1 = arith.constant 0 : i32
    return %c0_i32, %c0_i32_0 : i32, i32
  }
  func.func @transform_4(%arg0: i32, %arg1: i32) -> (i32, i32) {
    %c0_i32 = arith.constant 0 : i32
    %c0_i32_0 = arith.constant 0 : i32
    %c0_i32_1 = arith.constant 0 : i32
    return %c0_i32, %c0_i32_0 : i32, i32
  }
  func.func @transform_5(%arg0: i32, %arg1: i32) -> (i32, i32) {
    %c0_i32 = arith.constant 0 : i32
    %c0_i32_0 = arith.constant 0 : i32
    %c0_i32_1 = arith.constant 0 : i32
    return %c0_i32, %c0_i32_0 : i32, i32
  }
  func.func @transform_6(%arg0: i32, %arg1: i32) -> (i32, i32) {
    %c0_i32 = arith.constant 0 : i32
    %c0_i32_0 = arith.constant 0 : i32
    %c0_i32_1 = arith.constant 0 : i32
    return %c0_i32, %c0_i32_0 : i32, i32
  }
  func.func @transform_7(%arg0: i32, %arg1: i32) -> (i32, i32, i32, i32) {
    %c0_i32 = arith.constant 0 : i32
    %c0_i32_0 = arith.constant 0 : i32
    %c0_i32_1 = arith.constant 0 : i32
    return %arg0, %arg1, %c0_i32, %c0_i32_0 : i32, i32, i32, i32
  }
}

</mosaic_0001>

<llo_original>
// kernel: tpu_custom_call.1
$region0: #{tpu_custom_call.1}
  #allocation0 [shape = 'u32[]', space=smem, size = 0x4, offset = 0x4, fixed_abs, tag = 'smem constant byte address 0x4 - core index']
  #allocation1 [shape = 'u32[144,128]{1,0:T(1,128)}', space=vmem, size = 0x12000, scoped, tag = 'internal scratch']
  #allocation2 [shape = 'f32[12,18,4]{2,1,0:T(8,128)}', space=vmem, size = 0x24000, scoped, tag = 'scratch operand']
  #allocation3 [shape = 'f32[10,18,4]{2,1,0:T(8,128)}', space=vmem, size = 0x1e000, scoped, tag = 'scratch operand']
  #allocation4 [shape = 'f32[10,16,36]{2,1,0:T(8,128)}', space=vmem, size = 0x14000, scoped, tag = 'scratch operand']
  #allocation5 [shape = 'f32[8,16,36]{2,1,0:T(8,128)}', space=vmem, size = 0x10000, scoped, tag = 'scratch operand']
  %s0 = inlined_call_operand.vmem [shape: f32[2,16,16,4], index: 0, kind: input, shape index: {}]
  %s1 = inlined_call_operand.vmem [shape: f32[2,16,16,4], index: 1, kind: input, shape index: {}]
  %s2 = inlined_call_operand.vmem [shape: f32[2,16,16,4], index: 2, kind: input, shape index: {}]
  %s3 = inlined_call_operand.vmem [shape: f32[36,4], index: 3, kind: input, shape index: {}]
  %s4 = inlined_call_operand.vmem [shape: f32[1,4], index: 4, kind: input, shape index: {}]
  %s5 = inlined_call_operand.vmem [shape: f32[36,4], index: 5, kind: input, shape index: {}]
  %s6 = inlined_call_operand.vmem [shape: f32[1,4], index: 6, kind: input, shape index: {}]
  %s7 = inlined_call_operand.vmem [shape: f32[2,16,16,4], index: 7, kind: output, shape index: {}]
  %s8 = sld [smem:[#allocation0]]
  $region77: #{tpu_custom_call.1} parent=0
    _
  %s10 = ssub.s32 1, %s8
  %s11 = scalar_select 0, %s10, %s8
  loop: start=0, step=1, limit=6
  $region2: #{tpu_custom_call.1} parent=0 // loop_pre_header
    _
  $region3: #{tpu_custom_call.1} parent=0 // loop_header
    %s13 = sphi 0, %s17
    %p14 = scmp.ge.s32.totalorder %s13, 6
    %s20 = sphi 0, %s32
    %s21 = sphi 0, %s28
    %s22 = sphi 0, %s20
    %s23 = sphi 0, %s21
    %s24 = sphi 0, %s22
    %s25 = sphi 0, %s23
    %s37 = sphi 0, %s39
    %s40 = sphi 0, %s37
    %s41 = sphi 0, %s40
    %s57 = sphi 0, %s41
    %s73 = sphi 0, %s75
    %s76 = sphi 0, %s73
    %s77 = sphi 0, %s76
    %s93 = sphi 0, %s77
    %s109 = sphi 0, %s111
    %s112 = sphi 0, %s109
    %s113 = sphi 0, %s112
    %s129 = sphi 0, %s113
    %s133 = sphi 0, %s133
    %s135 = sphi 0, %s133
    %s136 = sphi 0, %s135
    %s150 = sphi 0, %s136
    %s154 = sphi 0, %s154
    %s156 = sphi 0, %s154
    %s157 = sphi 0, %s156
    %s171 = sphi 0, %s157
    %s175 = sphi 0, %s175
    %s177 = sphi 0, %s175
    %s178 = sphi 0, %s177
    %s192 = sphi 0, %s178
    %s196 = sphi 0, %s196
    %s198 = sphi 0, %s196
    %s199 = sphi 0, %s198
    %s213 = sphi 0, %s199
    %s221 = sphi 0, %s223
    %s224 = sphi 0, %s221
    %s225 = sphi 0, %s224
    %s241 = sphi 0, %s225
  $region4: #{tpu_custom_call.1} parent=0 // loop_header_branch
    %16 = sbr.rel (%p14) target = $region8
  $region5: #{tpu_custom_call.1} parent=0 // loop_body
    %s18 = ssub.s32 %s13, 1
    %s19 = ssub.s32 %s13, 2
    %s26 = sadd.s32 1, %s21
    %p27 = scmp.ge.s32.totalorder %s26, 2
    %s28 = scalar_select %p27, 0, %s26
    %s29 = sadd.s32 1, %s20
    %s30 = scalar_select %p27, %s29, %s20
    %p31 = scmp.ge.s32.totalorder %s30, 2
    %s32 = scalar_select %p31, 0, %s30
    %s33 = ssub.s32 %s20, %s32
    %s34 = ssub.s32 %s21, %s28
    %s35 = sor.u32 %s33, %s34
    %p36 = scmp.eq.s32.totalorder %s35, 0
    %s38 = sadd.s32 %s37, 1
    %s39 = scalar_select %p36, %s37, %s38
    %p42 = pneg %p36
    %p43 = scmp.eq.s32.totalorder %s13, 3
    %p44 = por %p42, %p43
    %p45 = scmp.ne.s32.totalorder %s37, %s40
    %p46 = scmp.eq.s32.totalorder %s13, 0
    %p47 = por %p45, %p46
    %p48 = scmp.ne.s32.totalorder %s37, %s40
    %p49 = scmp.eq.s32.totalorder %s18, 3
    %p50 = por %p48, %p49
    %p51 = scmp.ne.s32.totalorder %s40, %s41
    %p52 = scmp.eq.s32.totalorder %s18, 0
    %p53 = por %p51, %p52
    %p54 = scmp.ne.s32.totalorder %s40, %s41
    %p55 = scmp.eq.s32.totalorder %s19, 3
    %p56 = por %p54, %p55
    %p58 = scmp.ne.s32.totalorder %s41, %s57
    %p59 = scmp.eq.s32.totalorder %s19, 0
    %p60 = por %p58, %p59
    %s61 = smul.u32 %s21, 4
    %s62 = ssub.s32 %s61, 1
    %p63 = scmp.gt.s32.totalorder %s62, 0
    %s64 = scalar_select %p63, %s62, 0
    %s65 = smul.u32 %s28, 4
    %s66 = ssub.s32 %s65, 1
    %p67 = scmp.gt.s32.totalorder %s66, 0
    %s68 = scalar_select %p67, %s66, 0
    %s69 = ssub.s32 %s20, %s32
    %s70 = ssub.s32 %s64, %s68
    %s71 = sor.u32 %s69, %s70
    %p72 = scmp.eq.s32.totalorder %s71, 0
    %s74 = sadd.s32 %s73, 1
    %s75 = scalar_select %p72, %s73, %s74
    %p78 = pneg %p72
    %p79 = scmp.eq.s32.totalorder %s13, 3
    %p80 = por %p78, %p79
    %p81 = scmp.ne.s32.totalorder %s73, %s76
    %p82 = scmp.eq.s32.totalorder %s13, 0
    %p83 = por %p81, %p82
    %p84 = scmp.ne.s32.totalorder %s73, %s76
    %p85 = scmp.eq.s32.totalorder %s18, 3
    %p86 = por %p84, %p85
    %p87 = scmp.ne.s32.totalorder %s76, %s77
    %p88 = scmp.eq.s32.totalorder %s18, 0
    %p89 = por %p87, %p88
    %p90 = scmp.ne.s32.totalorder %s76, %s77
    %p91 = scmp.eq.s32.totalorder %s19, 3
    %p92 = por %p90, %p91
    %p94 = scmp.ne.s32.totalorder %s77, %s93
    %p95 = scmp.eq.s32.totalorder %s19, 0
    %p96 = por %p94, %p95
    %s97 = sadd.s32 %s21, 1
    %s98 = smul.u32 %s97, 4
    %p99 = scmp.lt.s32.totalorder %s98, 7
    %s100 = scalar_select %p99, %s98, 7
    %s101 = sadd.s32 %s28, 1
    %s102 = smul.u32 %s101, 4
    %p103 = scmp.lt.s32.totalorder %s102, 7
    %s104 = scalar_select %p103, %s102, 7
    %s105 = ssub.s32 %s20, %s32
    %s106 = ssub.s32 %s100, %s104
    %s107 = sor.u32 %s105, %s106
    %p108 = scmp.eq.s32.totalorder %s107, 0
    %s110 = sadd.s32 %s109, 1
    %s111 = scalar_select %p108, %s109, %s110
    %p114 = pneg %p108
    %p115 = scmp.eq.s32.totalorder %s13, 3
    %p116 = por %p114, %p115
    %p117 = scmp.ne.s32.totalorder %s109, %s112
    %p118 = scmp.eq.s32.totalorder %s13, 0
    %p119 = por %p117, %p118
    %p120 = scmp.ne.s32.totalorder %s109, %s112
    %p121 = scmp.eq.s32.totalorder %s18, 3
    %p122 = por %p120, %p121
    %p123 = scmp.ne.s32.totalorder %s112, %s113
    %p124 = scmp.eq.s32.totalorder %s18, 0
    %p125 = por %p123, %p124
    %p126 = scmp.ne.s32.totalorder %s112, %s113
    %p127 = scmp.eq.s32.totalorder %s19, 3
    %p128 = por %p126, %p127
    %p130 = scmp.ne.s32.totalorder %s113, %s129
    %p131 = scmp.eq.s32.totalorder %s19, 0
    %p132 = por %p130, %p131
    %s134 = sadd.s32 %s133, 1
    %p137 = scmp.eq.s32.totalorder %s13, 3
    %p138 = scmp.ne.s32.totalorder %s133, %s135
    %p139 = scmp.eq.s32.totalorder %s13, 0
    %p140 = por %p138, %p139
    %p141 = scmp.ne.s32.totalorder %s133, %s135
    %p142 = scmp.eq.s32.totalorder %s18, 3
    %p143 = por %p141, %p142
    %p144 = scmp.ne.s32.totalorder %s135, %s136
    %p145 = scmp.eq.s32.totalorder %s18, 0
    %p146 = por %p144, %p145
    %p147 = scmp.ne.s32.totalorder %s135, %s136
    %p148 = scmp.eq.s32.totalorder %s19, 3
    %p149 = por %p147, %p148
    %p151 = scmp.ne.s32.totalorder %s136, %s150
    %p152 = scmp.eq.s32.totalorder %s19, 0
    %p153 = por %p151, %p152
    %s155 = sadd.s32 %s154, 1
    %p158 = scmp.eq.s32.totalorder %s13, 3
    %p159 = scmp.ne.s32.totalorder %s154, %s156
    %p160 = scmp.eq.s32.totalorder %s13, 0
    %p161 = por %p159, %p160
    %p162 = scmp.ne.s32.totalorder %s154, %s156
    %p163 = scmp.eq.s32.totalorder %s18, 3
    %p164 = por %p162, %p163
    %p165 = scmp.ne.s32.totalorder %s156, %s157
    %p166 = scmp.eq.s32.totalorder %s18, 0
    %p167 = por %p165, %p166
    %p168 = scmp.ne.s32.totalorder %s156, %s157
    %p169 = scmp.eq.s32.totalorder %s19, 3
    %p170 = por %p168, %p169
    %p172 = scmp.ne.s32.totalorder %s157, %s171
    %p173 = scmp.eq.s32.totalorder %s19, 0
    %p174 = por %p172, %p173
    %s176 = sadd.s32 %s175, 1
    %p179 = scmp.eq.s32.totalorder %s13, 3
    %p180 = scmp.ne.s32.totalorder %s175, %s177
    %p181 = scmp.eq.s32.totalorder %s13, 0
    %p182 = por %p180, %p181
    %p183 = scmp.ne.s32.totalorder %s175, %s177
    %p184 = scmp.eq.s32.totalorder %s18, 3
    %p185 = por %p183, %p184
    %p186 = scmp.ne.s32.totalorder %s177, %s178
    %p187 = scmp.eq.s32.totalorder %s18, 0
    %p188 = por %p186, %p187
    %p189 = scmp.ne.s32.totalorder %s177, %s178
    %p190 = scmp.eq.s32.totalorder %s19, 3
    %p191 = por %p189, %p190
    %p193 = scmp.ne.s32.totalorder %s178, %s192
    %p194 = scmp.eq.s32.totalorder %s19, 0
    %p195 = por %p193, %p194
    %s197 = sadd.s32 %s196, 1
    %p200 = scmp.eq.s32.totalorder %s13, 3
    %p201 = scmp.ne.s32.totalorder %s196, %s198
    %p202 = scmp.eq.s32.totalorder %s13, 0
    %p203 = por %p201, %p202
    %p204 = scmp.ne.s32.totalorder %s196, %s198
    %p205 = scmp.eq.s32.totalorder %s18, 3
    %p206 = por %p204, %p205
    %p207 = scmp.ne.s32.totalorder %s198, %s199
    %p208 = scmp.eq.s32.totalorder %s18, 0
    %p209 = por %p207, %p208
    %p210 = scmp.ne.s32.totalorder %s198, %s199
    %p211 = scmp.eq.s32.totalorder %s19, 3
    %p212 = por %p210, %p211
    %p214 = scmp.ne.s32.totalorder %s199, %s213
    %p215 = scmp.eq.s32.totalorder %s19, 0
    %p216 = por %p214, %p215
    %s217 = ssub.s32 %s20, %s32
    %s218 = ssub.s32 %s21, %s28
    %s219 = sor.u32 %s217, %s218
    %p220 = scmp.eq.s32.totalorder %s219, 0
    %s222 = sadd.s32 %s221, 1
    %s223 = scalar_select %p220, %s221, %s222
    %p226 = pneg %p220
    %p227 = scmp.eq.s32.totalorder %s13, 3
    %p228 = por %p226, %p227
    %p229 = scmp.ne.s32.totalorder %s221, %s224
    %p230 = scmp.eq.s32.totalorder %s13, 0
    %p231 = por %p229, %p230
    %p232 = scmp.ne.s32.totalorder %s221, %s224
    %p233 = scmp.eq.s32.totalorder %s18, 3
    %p234 = por %p232, %p233
    %p235 = scmp.ne.s32.totalorder %s224, %s225
    %p236 = scmp.eq.s32.totalorder %s18, 0
    %p237 = por %p235, %p236
    %p238 = scmp.ne.s32.totalorder %s224, %s225
    %p239 = scmp.eq.s32.totalorder %s19, 3
    %p240 = por %p238, %p239
    %p242 = scmp.ne.s32.totalorder %s225, %s241
    %p243 = scmp.eq.s32.totalorder %s19, 0
    %p244 = por %p242, %p243
    %p245 = scmp.le.s32.totalorder 1, %s13
    %p246 = scmp.lt.s32.totalorder %s13, 5
    %p247 = pnand %p245, %p246
    %p248 = pneg %p247
    // Predicated region
    $region9: #{tpu_custom_call.1} parent=5 // pred_check
      _
    $region10: #{tpu_custom_call.1} parent=5 // pred_check_branch
      %250 = sbr.rel (%p247) target = $region12
    $region11: #{tpu_custom_call.1} parent=5 // pred_region
      %s251 = ssub.s32 %s13, 1
      // Predicated region
      $region13: #{tpu_custom_call.1} parent=11 // pred_check
        %p252 = pneg %p146
      $region14: #{tpu_custom_call.1} parent=11 // pred_check_branch
        %254 = sbr.rel (%p252) target = $region16
      $region15: #{tpu_custom_call.1} parent=11 // pred_region
        _
      $region16: #{tpu_custom_call.1} parent=11 // pred_fallthru
        _
      // Predicated region
      $region17: #{tpu_custom_call.1} parent=11 // pred_check
        %p255 = pneg %p167
      $region18: #{tpu_custom_call.1} parent=11 // pred_check_branch
        %257 = sbr.rel (%p255) target = $region20
      $region19: #{tpu_custom_call.1} parent=11 // pred_region
        _
      $region20: #{tpu_custom_call.1} parent=11 // pred_fallthru
        _
      // Predicated region
      $region21: #{tpu_custom_call.1} parent=11 // pred_check
        %p258 = pneg %p188
      $region22: #{tpu_custom_call.1} parent=11 // pred_check_branch
        %260 = sbr.rel (%p258) target = $region24
      $region23: #{tpu_custom_call.1} parent=11 // pred_region
        _
      $region24: #{tpu_custom_call.1} parent=11 // pred_fallthru
        _
      // Predicated region
      $region25: #{tpu_custom_call.1} parent=11 // pred_check
        %p261 = pneg %p209
      $region26: #{tpu_custom_call.1} parent=11 // pred_check_branch
        %263 = sbr.rel (%p261) target = $region28
      $region27: #{tpu_custom_call.1} parent=11 // pred_region
        _
      $region28: #{tpu_custom_call.1} parent=11 // pred_fallthru
        _
    $region12: #{tpu_custom_call.1} parent=5 // pred_fallthru
      _
    %p264 = scmp.lt.s32.totalorder %s13, 4
    // Predicated region
    $region29: #{tpu_custom_call.1} parent=5 // pred_check
      %p265 = pneg %p264
    $region30: #{tpu_custom_call.1} parent=5 // pred_check_branch
      %267 = sbr.rel (%p265) target = $region32
    $region31: #{tpu_custom_call.1} parent=5 // pred_region
      // Predicated region
      $region33: #{tpu_custom_call.1} parent=31 // pred_check
        %p268 = pneg %p47
      $region34: #{tpu_custom_call.1} parent=31 // pred_check_branch
        %270 = sbr.rel (%p268) target = $region36
      $region35: #{tpu_custom_call.1} parent=31 // pred_region
        %s271 = smul.u32 8, %s21
        %p272 = scmp.lt.s32.totalorder %s20, 1
        %s273 = scalar_select %p272, %s20, 1
        %p274 = scmp.lt.s32.totalorder %s271, 15
        %s275 = scalar_select %p274, %s271, 15
        %s276 = smul.addr %s275, 2
        %s277 = smul.addr %s273, 32
        %s278 = sadd.s32 %s276, %s277
        %s279 = smul.addr %s278, 8
        %s280 = scalar_lea.vmem %s0, %s279
        %s281 = smul.u32 8, %s21
      $region36: #{tpu_custom_call.1} parent=31 // pred_fallthru
        _
      // Predicated region
      $region37: #{tpu_custom_call.1} parent=31 // pred_check
        %p282 = pneg %p83
      $region38: #{tpu_custom_call.1} parent=31 // pred_check_branch
        %284 = sbr.rel (%p282) target = $region40
      $region39: #{tpu_custom_call.1} parent=31 // pred_region
        %s285 = smul.u32 %s21, 4
        %s286 = ssub.s32 %s285, 1
        %p287 = scmp.gt.s32.totalorder %s286, 0
        %s288 = scalar_select %p287, %s286, 0
        %s289 = smul.u32 2, %s288
        %p290 = scmp.lt.s32.totalorder %s20, 1
        %s291 = scalar_select %p290, %s20, 1
        %p292 = scmp.lt.s32.totalorder %s289, 15
        %s293 = scalar_select %p292, %s289, 15
        %s294 = smul.addr %s293, 2
        %s295 = smul.addr %s291, 32
        %s296 = sadd.s32 %s294, %s295
        %s297 = smul.addr %s296, 8
        %s298 = scalar_lea.vmem %s1, %s297
        %s299 = smul.u32 %s21, 4
        %s300 = ssub.s32 %s299, 1
        %p301 = scmp.gt.s32.totalorder %s300, 0
        %s302 = scalar_select %p301, %s300, 0
        %s303 = smul.u32 2, %s302
      $region40: #{tpu_custom_call.1} parent=31 // pred_fallthru
        _
      // Predicated region
      $region41: #{tpu_custom_call.1} parent=31 // pred_check
        %p304 = pneg %p119
      $region42: #{tpu_custom_call.1} parent=31 // pred_check_branch
        %306 = sbr.rel (%p304) target = $region44
      $region43: #{tpu_custom_call.1} parent=31 // pred_region
        %s307 = sadd.s32 %s21, 1
        %s308 = smul.u32 %s307, 4
        %p309 = scmp.lt.s32.totalorder %s308, 7
        %s310 = scalar_select %p309, %s308, 7
        %s311 = smul.u32 2, %s310
        %p312 = scmp.lt.s32.totalorder %s20, 1
        %s313 = scalar_select %p312, %s20, 1
        %p314 = scmp.lt.s32.totalorder %s311, 15
        %s315 = scalar_select %p314, %s311, 15
        %s316 = smul.addr %s315, 2
        %s317 = smul.addr %s313, 32
        %s318 = sadd.s32 %s316, %s317
        %s319 = smul.addr %s318, 8
        %s320 = scalar_lea.vmem %s2, %s319
        %s321 = sadd.s32 %s21, 1
        %s322 = smul.u32 %s321, 4
        %p323 = scmp.lt.s32.totalorder %s322, 7
        %s324 = scalar_select %p323, %s322, 7
        %s325 = smul.u32 2, %s324
      $region44: #{tpu_custom_call.1} parent=31 // pred_fallthru
        _
    $region32: #{tpu_custom_call.1} parent=5 // pred_fallthru
      _
    %p326 = scmp.le.s32.totalorder 1, %s13
    %p327 = scmp.lt.s32.totalorder %s13, 5
    %p328 = pnand %p326, %p327
    %p329 = pneg %p328
    // Predicated region
    $region45: #{tpu_custom_call.1} parent=5 // pred_check
      _
    $region46: #{tpu_custom_call.1} parent=5 // pred_check_branch
      %331 = sbr.rel (%p328) target = $region48
    $region47: #{tpu_custom_call.1} parent=5 // pred_region
      %s332 = ssub.s32 %s13, 1
      %s333 = smul.u32 8, %s23
      %p334 = scmp.lt.s32.totalorder %s22, 1
      %s335 = scalar_select %p334, %s22, 1
      %p336 = scmp.lt.s32.totalorder %s333, 15
      %s337 = scalar_select %p336, %s333, 15
      %s338 = smul.addr %s337, 2
      %s339 = smul.addr %s335, 32
      %s340 = sadd.s32 %s338, %s339
      %s341 = smul.addr %s340, 8
      %s342 = scalar_lea.vmem %s0, %s341
      %p343 = pneg %p53
      %p344 = pneg %p50
      %s345 = smul.u32 %s23, 4
      %s346 = ssub.s32 %s345, 1
      %p347 = scmp.gt.s32.totalorder %s346, 0
      %s348 = scalar_select %p347, %s346, 0
      %s349 = smul.u32 2, %s348
      %p350 = scmp.lt.s32.totalorder %s22, 1
      %s351 = scalar_select %p350, %s22, 1
      %p352 = scmp.lt.s32.totalorder %s349, 15
      %s353 = scalar_select %p352, %s349, 15
      %s354 = smul.addr %s353, 2
      %s355 = smul.addr %s351, 32
      %s356 = sadd.s32 %s354, %s355
      %s357 = smul.addr %s356, 8
      %s358 = scalar_lea.vmem %s1, %s357
      %p359 = pneg %p89
      %p360 = pneg %p86
      %s361 = sadd.s32 %s23, 1
      %s362 = smul.u32 %s361, 4
      %p363 = scmp.lt.s32.totalorder %s362, 7
      %s364 = scalar_select %p363, %s362, 7
      %s365 = smul.u32 2, %s364
      %p366 = scmp.lt.s32.totalorder %s22, 1
      %s367 = scalar_select %p366, %s22, 1
      %p368 = scmp.lt.s32.totalorder %s365, 15
      %s369 = scalar_select %p368, %s365, 15
      %s370 = smul.addr %s369, 2
      %s371 = smul.addr %s367, 32
      %s372 = sadd.s32 %s370, %s371
      %s373 = smul.addr %s372, 8
      %s374 = scalar_lea.vmem %s2, %s373
      %p375 = pneg %p125
      %p376 = pneg %p122
      %p377 = pneg %p146
      %p378 = pneg %p143
      %p379 = pneg %p167
      %p380 = pneg %p164
      %p381 = pneg %p188
      %p382 = pneg %p185
      %p383 = pneg %p209
      %p384 = pneg %p206
      %p385 = pneg %p237
      %p386 = pneg %p234
      %s387 = smul.u32 8, %s23
      %p388 = scmp.lt.s32.totalorder %s22, 1
      %s389 = scalar_select %p388, %s22, 1
      %p390 = scmp.lt.s32.totalorder %s387, 15
      %s391 = scalar_select %p390, %s387, 15
      %s392 = smul.addr %s391, 2
      %s393 = smul.addr %s389, 32
      %s394 = sadd.s32 %s392, %s393
      %s395 = smul.addr %s394, 8
      %s396 = scalar_lea.vmem %s7, %s395
      %s397 = smul.u32 8, %s23
      %p398 = scmp.lt.s32.totalorder %s22, 1
      %s399 = scalar_select %p398, %s22, 1
      %p400 = scmp.lt.s32.totalorder %s397, 15
      %s401 = scalar_select %p400, %s397, 15
      %s402 = smul.addr %s401, 2
      %s403 = smul.addr %s399, 32
      %s404 = sadd.s32 %s402, %s403
      %s405 = smul.addr %s404, 8
      %s406 = scalar_lea.vmem %s0, %s405
      %s407 = smul.u32 8, %s23
      %s408 = smul.u32 %s23, 4
      %s409 = ssub.s32 %s408, 1
      %p410 = scmp.gt.s32.totalorder %s409, 0
      %s411 = scalar_select %p410, %s409, 0
      %s412 = smul.u32 2, %s411
      %p413 = scmp.lt.s32.totalorder %s22, 1
      %s414 = scalar_select %p413, %s22, 1
      %p415 = scmp.lt.s32.totalorder %s412, 15
      %s416 = scalar_select %p415, %s412, 15
      %s417 = smul.addr %s416, 2
      %s418 = smul.addr %s414, 32
      %s419 = sadd.s32 %s417, %s418
      %s420 = smul.addr %s419, 8
      %s421 = scalar_lea.vmem %s1, %s420
      %s422 = smul.u32 %s23, 4
      %s423 = ssub.s32 %s422, 1
      %p424 = scmp.gt.s32.totalorder %s423, 0
      %s425 = scalar_select %p424, %s423, 0
      %s426 = smul.u32 2, %s425
      %s427 = sadd.s32 %s23, 1
      %s428 = smul.u32 %s427, 4
      %p429 = scmp.lt.s32.totalorder %s428, 7
      %s430 = scalar_select %p429, %s428, 7
      %s431 = smul.u32 2, %s430
      %p432 = scmp.lt.s32.totalorder %s22, 1
      %s433 = scalar_select %p432, %s22, 1
      %p434 = scmp.lt.s32.totalorder %s431, 15
      %s435 = scalar_select %p434, %s431, 15
      %s436 = smul.addr %s435, 2
      %s437 = smul.addr %s433, 32
      %s438 = sadd.s32 %s436, %s437
      %s439 = smul.addr %s438, 8
      %s440 = scalar_lea.vmem %s2, %s439
      %s441 = sadd.s32 %s23, 1
      %s442 = smul.u32 %s441, 4
      %p443 = scmp.lt.s32.totalorder %s442, 7
      %s444 = scalar_select %p443, %s442, 7
      %s445 = smul.u32 2, %s444
      %s446 = smul.u32 8, %s23
      %p447 = scmp.lt.s32.totalorder %s22, 1
      %s448 = scalar_select %p447, %s22, 1
      %p449 = scmp.lt.s32.totalorder %s446, 15
      %s450 = scalar_select %p449, %s446, 15
      %s451 = smul.addr %s450, 2
      %s452 = smul.addr %s448, 32
      %s453 = sadd.s32 %s451, %s452
      %s454 = smul.addr %s453, 8
      %s455 = scalar_lea.vmem %s7, %s454
      %s456 = smul.u32 8, %s23
      %vm457 = vcmask 24576
      %458 = vst.msk [vmem:[#allocation2] sm:$0x1] %vm457, 0.0
      %459 = vst.msk [vmem:[#allocation2 + $0x18] sm:$0x1] %vm457, 0.0
      %460 = vst.msk [vmem:[#allocation2 + $0x30] sm:$0x1] %vm457, 0.0
      %461 = vst.msk [vmem:[#allocation2 + $0x48] sm:$0x1] %vm457, 0.0
      %462 = vst.msk [vmem:[#allocation2 + $0x60] sm:$0x1] %vm457, 0.0
      %463 = vst.msk [vmem:[#allocation2 + $0x78] sm:$0x1] %vm457, 0.0
      %464 = vst.msk [vmem:[#allocation2 + $0x90] sm:$0x1] %vm457, 0.0
      %465 = vst.msk [vmem:[#allocation2 + $0xa8] sm:$0x1] %vm457, 0.0
      %466 = vst.msk [vmem:[#allocation2 + $0xc0] sm:$0x1] %vm457, 0.0
      %467 = vst.msk [vmem:[#allocation2 + $0xd8] sm:$0x1] %vm457, 0.0
      %468 = vst.msk [vmem:[#allocation2 + $0xf0] sm:$0x1] %vm457, 0.0
      %469 = vst.msk [vmem:[#allocation2 + $0x108] sm:$0x1] %vm457, 0.0
      %470 = vst.msk [vmem:[#allocation2 + $0x11] sm:$0x1] %vm457, 0.0
      %471 = vst.msk [vmem:[#allocation2 + $0x29] sm:$0x1] %vm457, 0.0
      %472 = vst.msk [vmem:[#allocation2 + $0x41] sm:$0x1] %vm457, 0.0
      %473 = vst.msk [vmem:[#allocation2 + $0x59] sm:$0x1] %vm457, 0.0
      %474 = vst.msk [vmem:[#allocation2 + $0x71] sm:$0x1] %vm457, 0.0
      %475 = vst.msk [vmem:[#allocation2 + $0x89] sm:$0x1] %vm457, 0.0
      %476 = vst.msk [vmem:[#allocation2 + $0xa1] sm:$0x1] %vm457, 0.0
      %477 = vst.msk [vmem:[#allocation2 + $0xb9] sm:$0x1] %vm457, 0.0
      %478 = vst.msk [vmem:[#allocation2 + $0xd1] sm:$0x1] %vm457, 0.0
      %479 = vst.msk [vmem:[#allocation2 + $0xe9] sm:$0x1] %vm457, 0.0
      %480 = vst.msk [vmem:[#allocation2 + $0x101] sm:$0x1] %vm457, 0.0
      %481 = vst.msk [vmem:[#allocation2 + $0x119] sm:$0x1] %vm457, 0.0
      %v482 = vld [vmem:[%s406] sm:$0xff]
      %v483 = vld [vmem:[%s406 + $0x8] sm:$0xff]
      %v484 = vld [vmem:[%s406 + $0x10] sm:$0xff]
      %v485 = vld [vmem:[%s406 + $0x18] sm:$0xff]
      %v486 = vld [vmem:[%s406 + $0x20] sm:$0xff]
      %v487 = vld [vmem:[%s406 + $0x28] sm:$0xff]
      %v488 = vld [vmem:[%s406 + $0x30] sm:$0xff]
      %v489 = vld [vmem:[%s406 + $0x38] sm:$0xff]
      %v490 = vld [vmem:[%s406 + $0x40] sm:$0xff]
      %v491 = vld [vmem:[%s406 + $0x48] sm:$0xff]
      %v492 = vld [vmem:[%s406 + $0x50] sm:$0xff]
      %v493 = vld [vmem:[%s406 + $0x58] sm:$0xff]
      %v494 = vld [vmem:[%s406 + $0x60] sm:$0xff]
      %v495 = vld [vmem:[%s406 + $0x68] sm:$0xff]
      %v496 = vld [vmem:[%s406 + $0x70] sm:$0xff]
      %v497 = vld [vmem:[%s406 + $0x78] sm:$0xff]
      %s498 = scalar_lea.vmem [#allocation2], 48
      %vm499 = vcmask 31744
      %500 = vst.msk [vmem:[%s498 + $0x1] sm:$0xff] %vm499, %v482
      %501 = vst.msk [vmem:[%s498 + $0x9] sm:$0xff] %vm499, %v483
      %502 = vst.msk [vmem:[%s498 + $0x19] sm:$0xff] %vm499, %v484
      %503 = vst.msk [vmem:[%s498 + $0x21] sm:$0xff] %vm499, %v485
      %504 = vst.msk [vmem:[%s498 + $0x31] sm:$0xff] %vm499, %v486
      %505 = vst.msk [vmem:[%s498 + $0x39] sm:$0xff] %vm499, %v487
      %506 = vst.msk [vmem:[%s498 + $0x49] sm:$0xff] %vm499, %v488
      %507 = vst.msk [vmem:[%s498 + $0x51] sm:$0xff] %vm499, %v489
      %508 = vst.msk [vmem:[%s498 + $0x61] sm:$0xff] %vm499, %v490
      %509 = vst.msk [vmem:[%s498 + $0x69] sm:$0xff] %vm499, %v491
      %510 = vst.msk [vmem:[%s498 + $0x79] sm:$0xff] %vm499, %v492
      %511 = vst.msk [vmem:[%s498 + $0x81] sm:$0xff] %vm499, %v493
      %512 = vst.msk [vmem:[%s498 + $0x91] sm:$0xff] %vm499, %v494
      %513 = vst.msk [vmem:[%s498 + $0x99] sm:$0xff] %vm499, %v495
      %514 = vst.msk [vmem:[%s498 + $0xa9] sm:$0xff] %vm499, %v496
      %515 = vst.msk [vmem:[%s498 + $0xb1] sm:$0xff] %vm499, %v497
      %v516 = vld [vmem:[%s421] sm:$0xff]
      %v517 = vld [vmem:[%s421 + $0x8] sm:$0xff]
      %v518 = vld [vmem:[%s421 + $0x10] sm:$0xff]
      %v519 = vld [vmem:[%s421 + $0x18] sm:$0xff]
      %520 = vst.msk [vmem:[#allocation2 + $0x1] sm:$0xff] %vm499, %v516
      %521 = vst.msk [vmem:[#allocation2 + $0x9] sm:$0xff] %vm499, %v517
      %522 = vst.msk [vmem:[#allocation2 + $0x19] sm:$0xff] %vm499, %v518
      %523 = vst.msk [vmem:[#allocation2 + $0x21] sm:$0xff] %vm499, %v519
      %v524 = vld [vmem:[%s440] sm:$0xff]
      %v525 = vld [vmem:[%s440 + $0x8] sm:$0xff]
      %v526 = vld [vmem:[%s440 + $0x10] sm:$0xff]
      %v527 = vld [vmem:[%s440 + $0x18] sm:$0xff]
      %s528 = scalar_lea.vmem [#allocation2], 240
      %529 = vst.msk [vmem:[%s528 + $0x1] sm:$0xff] %vm499, %v524
      %530 = vst.msk [vmem:[%s528 + $0x9] sm:$0xff] %vm499, %v525
      %531 = vst.msk [vmem:[%s528 + $0x19] sm:$0xff] %vm499, %v526
      %532 = vst.msk [vmem:[%s528 + $0x21] sm:$0xff] %vm499, %v527
      %p533 = scmp.eq.s32.totalorder %s23, 0
      // Predicated region
      $region49: #{tpu_custom_call.1} parent=47 // pred_check
        %p534 = pneg %p533
      $region50: #{tpu_custom_call.1} parent=47 // pred_check_branch
        %536 = sbr.rel (%p534) target = $region52
      $region51: #{tpu_custom_call.1} parent=47 // pred_region
        %537 = vst.msk [vmem:[#allocation2] sm:$0xff] %vm499, 0.0
        %538 = vst.msk [vmem:[#allocation2 + $0x8] sm:$0xff] %vm499, 0.0
        %vm539 = vcmask 25600
        %540 = vst.msk [vmem:[#allocation2 + $0x10] sm:$0x3] %vm539, 0.0
        %541 = vst.msk [vmem:[#allocation2 + $0x18] sm:$0xff] %vm499, 0.0
        %542 = vst.msk [vmem:[#allocation2 + $0x20] sm:$0xff] %vm499, 0.0
        %543 = vst.msk [vmem:[#allocation2 + $0x28] sm:$0x3] %vm539, 0.0
      $region52: #{tpu_custom_call.1} parent=47 // pred_fallthru
        _
      %p544 = scmp.eq.s32.totalorder %s23, 1
      // Predicated region
      $region53: #{tpu_custom_call.1} parent=47 // pred_check
        %p545 = pneg %p544
      $region54: #{tpu_custom_call.1} parent=47 // pred_check_branch
        %547 = sbr.rel (%p545) target = $region56
      $region55: #{tpu_custom_call.1} parent=47 // pred_region
        %548 = vst.msk [vmem:[%s528] sm:$0xff] %vm499, 0.0
        %549 = vst.msk [vmem:[%s528 + $0x8] sm:$0xff] %vm499, 0.0
        %vm550 = vcmask 25600
        %551 = vst.msk [vmem:[%s528 + $0x10] sm:$0x3] %vm550, 0.0
        %552 = vst.msk [vmem:[%s528 + $0x18] sm:$0xff] %vm499, 0.0
        %553 = vst.msk [vmem:[%s528 + $0x20] sm:$0xff] %vm499, 0.0
        %554 = vst.msk [vmem:[%s528 + $0x28] sm:$0x3] %vm550, 0.0
      $region56: #{tpu_custom_call.1} parent=47 // pred_fallthru
        _
      %v555 = vld [vmem:[#allocation2] sm:$0xff]
      %v556 = vld [vmem:[#allocation2 + $0x8] sm:$0xff]
      %v557 = vld [vmem:[#allocation2 + $0x18] sm:$0xff]
      %v558 = vld [vmem:[#allocation2 + $0x20] sm:$0xff]
      %v559 = vld [vmem:[#allocation2 + $0x30] sm:$0xff]
      %v560 = vld [vmem:[#allocation2 + $0x38] sm:$0xff]
      %v561 = vld [vmem:[#allocation2 + $0x48] sm:$0xff]
      %v562 = vld [vmem:[#allocation2 + $0x50] sm:$0xff]
      %v563 = vld [vmem:[#allocation2 + $0x60] sm:$0xff]
      %v564 = vld [vmem:[#allocation2 + $0x68] sm:$0xff]
      %v565 = vld [vmem:[#allocation2 + $0x78] sm:$0xff]
      %v566 = vld [vmem:[#allocation2 + $0x80] sm:$0xff]
      %v567 = vld [vmem:[#allocation2 + $0x90] sm:$0xff]
      %v568 = vld [vmem:[#allocation2 + $0x98] sm:$0xff]
      %v569 = vld [vmem:[#allocation2 + $0xa8] sm:$0xff]
      %v570 = vld [vmem:[#allocation2 + $0xb0] sm:$0xff]
      %v571 = vld [vmem:[#allocation2 + $0xc0] sm:$0xff]
      %v572 = vld [vmem:[#allocation2 + $0xc8] sm:$0xff]
      %v573 = vld [vmem:[#allocation2 + $0xd8] sm:$0xff]
      %v574 = vld [vmem:[#allocation2 + $0xe0] sm:$0xff]
      %575 = vst.msk [vmem:[#allocation4] sm:$0xff] %vm499, %v555
      %576 = vst.msk [vmem:[#allocation4 + $0x8] sm:$0xff] %vm499, %v556
      %577 = vst.msk [vmem:[#allocation4 + $0x10] sm:$0xff] %vm499, %v557
      %578 = vst.msk [vmem:[#allocation4 + $0x18] sm:$0xff] %vm499, %v558
      %579 = vst.msk [vmem:[#allocation4 + $0x20] sm:$0xff] %vm499, %v559
      %580 = vst.msk [vmem:[#allocation4 + $0x28] sm:$0xff] %vm499, %v560
      %581 = vst.msk [vmem:[#allocation4 + $0x30] sm:$0xff] %vm499, %v561
      %582 = vst.msk [vmem:[#allocation4 + $0x38] sm:$0xff] %vm499, %v562
      %583 = vst.msk [vmem:[#allocation4 + $0x40] sm:$0xff] %vm499, %v563
      %584 = vst.msk [vmem:[#allocation4 + $0x48] sm:$0xff] %vm499, %v564
      %585 = vst.msk [vmem:[#allocation4 + $0x50] sm:$0xff] %vm499, %v565
      %586 = vst.msk [vmem:[#allocation4 + $0x58] sm:$0xff] %vm499, %v566
      %587 = vst.msk [vmem:[#allocation4 + $0x60] sm:$0xff] %vm499, %v567
      %588 = vst.msk [vmem:[#allocation4 + $0x68] sm:$0xff] %vm499, %v568
      %589 = vst.msk [vmem:[#allocation4 + $0x70] sm:$0xff] %vm499, %v569
      %590 = vst.msk [vmem:[#allocation4 + $0x78] sm:$0xff] %vm499, %v570
      %591 = vst.msk [vmem:[#allocation4 + $0x80] sm:$0xff] %vm499, %v571
      %592 = vst.msk [vmem:[#allocation4 + $0x88] sm:$0xff] %vm499, %v572
      %593 = vst.msk [vmem:[#allocation4 + $0x90] sm:$0xff] %vm499, %v573
      %594 = vst.msk [vmem:[#allocation4 + $0x98] sm:$0xff] %vm499, %v574
      %v595 = vld [vmem:[#allocation2 + $0x1] sm:$0xff]
      %v596 = vld [vmem:[#allocation2 + $0x9] sm:$0xff]
      %v597 = vld [vmem:[#allocation2 + $0x19] sm:$0xff]
      %v598 = vld [vmem:[#allocation2 + $0x21] sm:$0xff]
      %v599 = vld [vmem:[#allocation2 + $0x31] sm:$0xff]
      %v600 = vld [vmem:[#allocation2 + $0x39] sm:$0xff]
      %v601 = vld [vmem:[#allocation2 + $0x49] sm:$0xff]
      %v602 = vld [vmem:[#allocation2 + $0x51] sm:$0xff]
      %v603 = vld [vmem:[#allocation2 + $0x61] sm:$0xff]
      %v604 = vld [vmem:[#allocation2 + $0x69] sm:$0xff]
      %v605 = vld [vmem:[#allocation2 + $0x79] sm:$0xff]
      %v606 = vld [vmem:[#allocation2 + $0x81] sm:$0xff]
      %v607 = vld [vmem:[#allocation2 + $0x91] sm:$0xff]
      %v608 = vld [vmem:[#allocation2 + $0x99] sm:$0xff]
      %v609 = vld [vmem:[#allocation2 + $0xa9] sm:$0xff]
      %v610 = vld [vmem:[#allocation2 + $0xb1] sm:$0xff]
      %v611 = vld [vmem:[#allocation2 + $0xc1] sm:$0xff]
      %v612 = vld [vmem:[#allocation2 + $0xc9] sm:$0xff]
      %v613 = vld [vmem:[#allocation2 + $0xd9] sm:$0xff]
      %v614 = vld [vmem:[#allocation2 + $0xe1] sm:$0xff]
      %635 = vrot.lane.b32.xlu0 %v595, 4
      %v636 = vpop.permute.xlu0 %635
      %637 = vrot.lane.b32.xlu0 %v596, 4
      %v638 = vpop.permute.xlu0 %637
      %639 = vrot.lane.b32.xlu0 %v597, 4
      %v640 = vpop.permute.xlu0 %639
      %641 = vrot.lane.b32.xlu0 %v598, 4
      %v642 = vpop.permute.xlu0 %641
      %643 = vrot.lane.b32.xlu0 %v599, 4
      %v644 = vpop.permute.xlu0 %643
      %645 = vrot.lane.b32.xlu0 %v600, 4
      %v646 = vpop.permute.xlu0 %645
      %647 = vrot.lane.b32.xlu0 %v601, 4
      %v648 = vpop.permute.xlu0 %647
      %649 = vrot.lane.b32.xlu0 %v602, 4
      %v650 = vpop.permute.xlu0 %649
      %651 = vrot.lane.b32.xlu0 %v603, 4
      %v652 = vpop.permute.xlu0 %651
      %653 = vrot.lane.b32.xlu0 %v604, 4
      %v654 = vpop.permute.xlu0 %653
      %655 = vrot.lane.b32.xlu0 %v605, 4
      %v656 = vpop.permute.xlu0 %655
      %657 = vrot.lane.b32.xlu0 %v606, 4
      %v658 = vpop.permute.xlu0 %657
      %659 = vrot.lane.b32.xlu0 %v607, 4
      %v660 = vpop.permute.xlu0 %659
      %661 = vrot.lane.b32.xlu0 %v608, 4
      %v662 = vpop.permute.xlu0 %661
      %663 = vrot.lane.b32.xlu0 %v609, 4
      %v664 = vpop.permute.xlu0 %663
      %665 = vrot.lane.b32.xlu0 %v610, 4
      %v666 = vpop.permute.xlu0 %665
      %667 = vrot.lane.b32.xlu0 %v611, 4
      %v668 = vpop.permute.xlu0 %667
      %669 = vrot.lane.b32.xlu0 %v612, 4
      %v670 = vpop.permute.xlu0 %669
      %671 = vrot.lane.b32.xlu0 %v613, 4
      %v672 = vpop.permute.xlu0 %671
      %673 = vrot.lane.b32.xlu0 %v614, 4
      %v674 = vpop.permute.xlu0 %673
      %vm695 = vcmask 64544
      %696 = vst.msk [vmem:[#allocation4] sm:$0xff] %vm695, %v636
      %697 = vst.msk [vmem:[#allocation4 + $0x8] sm:$0xff] %vm695, %v638
      %698 = vst.msk [vmem:[#allocation4 + $0x10] sm:$0xff] %vm695, %v640
      %699 = vst.msk [vmem:[#allocation4 + $0x18] sm:$0xff] %vm695, %v642
      %700 = vst.msk [vmem:[#allocation4 + $0x20] sm:$0xff] %vm695, %v644
      %701 = vst.msk [vmem:[#allocation4 + $0x28] sm:$0xff] %vm695, %v646
      %702 = vst.msk [vmem:[#allocation4 + $0x30] sm:$0xff] %vm695, %v648
      %703 = vst.msk [vmem:[#allocation4 + $0x38] sm:$0xff] %vm695, %v650
      %704 = vst.msk [vmem:[#allocation4 + $0x40] sm:$0xff] %vm695, %v652
      %705 = vst.msk [vmem:[#allocation4 + $0x48] sm:$0xff] %vm695, %v654
      %706 = vst.msk [vmem:[#allocation4 + $0x50] sm:$0xff] %vm695, %v656
      %707 = vst.msk [vmem:[#allocation4 + $0x58] sm:$0xff] %vm695, %v658
      %708 = vst.msk [vmem:[#allocation4 + $0x60] sm:$0xff] %vm695, %v660
      %709 = vst.msk [vmem:[#allocation4 + $0x68] sm:$0xff] %vm695, %v662
      %710 = vst.msk [vmem:[#allocation4 + $0x70] sm:$0xff] %vm695, %v664
      %711 = vst.msk [vmem:[#allocation4 + $0x78] sm:$0xff] %vm695, %v666
      %712 = vst.msk [vmem:[#allocation4 + $0x80] sm:$0xff] %vm695, %v668
      %713 = vst.msk [vmem:[#allocation4 + $0x88] sm:$0xff] %vm695, %v670
      %714 = vst.msk [vmem:[#allocation4 + $0x90] sm:$0xff] %vm695, %v672
      %715 = vst.msk [vmem:[#allocation4 + $0x98] sm:$0xff] %vm695, %v674
      %v716 = vld [vmem:[#allocation2 + $0x2] sm:$0xff]
      %v717 = vld [vmem:[#allocation2 + $0xa] sm:$0xff]
      %v718 = vld [vmem:[#allocation2 + $0x1a] sm:$0xff]
      %v719 = vld [vmem:[#allocation2 + $0x22] sm:$0xff]
      %v720 = vld [vmem:[#allocation2 + $0x32] sm:$0xff]
      %v721 = vld [vmem:[#allocation2 + $0x3a] sm:$0xff]
      %v722 = vld [vmem:[#allocation2 + $0x4a] sm:$0xff]
      %v723 = vld [vmem:[#allocation2 + $0x52] sm:$0xff]
      %v724 = vld [vmem:[#allocation2 + $0x62] sm:$0xff]
      %v725 = vld [vmem:[#allocation2 + $0x6a] sm:$0xff]
      %v726 = vld [vmem:[#allocation2 + $0x7a] sm:$0xff]
      %v727 = vld [vmem:[#allocation2 + $0x82] sm:$0xff]
      %v728 = vld [vmem:[#allocation2 + $0x92] sm:$0xff]
      %v729 = vld [vmem:[#allocation2 + $0x9a] sm:$0xff]
      %v730 = vld [vmem:[#allocation2 + $0xaa] sm:$0xff]
      %v731 = vld [vmem:[#allocation2 + $0xb2] sm:$0xff]
      %v732 = vld [vmem:[#allocation2 + $0xc2] sm:$0xff]
      %v733 = vld [vmem:[#allocation2 + $0xca] sm:$0xff]
      %v734 = vld [vmem:[#allocation2 + $0xda] sm:$0xff]
      %v735 = vld [vmem:[#allocation2 + $0xe2] sm:$0xff]
      %756 = vrot.lane.b32.xlu0 %v716, 8
      %v757 = vpop.permute.xlu0 %756
      %758 = vrot.lane.b32.xlu0 %v717, 8
      %v759 = vpop.permute.xlu0 %758
      %760 = vrot.lane.b32.xlu0 %v718, 8
      %v761 = vpop.permute.xlu0 %760
      %762 = vrot.lane.b32.xlu0 %v719, 8
      %v763 = vpop.permute.xlu0 %762
      %764 = vrot.lane.b32.xlu0 %v720, 8
      %v765 = vpop.permute.xlu0 %764
      %766 = vrot.lane.b32.xlu0 %v721, 8
      %v767 = vpop.permute.xlu0 %766
      %768 = vrot.lane.b32.xlu0 %v722, 8
      %v769 = vpop.permute.xlu0 %768
      %770 = vrot.lane.b32.xlu0 %v723, 8
      %v771 = vpop.permute.xlu0 %770
      %772 = vrot.lane.b32.xlu0 %v724, 8
      %v773 = vpop.permute.xlu0 %772
      %774 = vrot.lane.b32.xlu0 %v725, 8
      %v775 = vpop.permute.xlu0 %774
      %776 = vrot.lane.b32.xlu0 %v726, 8
      %v777 = vpop.permute.xlu0 %776
      %778 = vrot.lane.b32.xlu0 %v727, 8
      %v779 = vpop.permute.xlu0 %778
      %780 = vrot.lane.b32.xlu0 %v728, 8
      %v781 = vpop.permute.xlu0 %780
      %782 = vrot.lane.b32.xlu0 %v729, 8
      %v783 = vpop.permute.xlu0 %782
      %784 = vrot.lane.b32.xlu0 %v730, 8
      %v785 = vpop.permute.xlu0 %784
      %786 = vrot.lane.b32.xlu0 %v731, 8
      %v787 = vpop.permute.xlu0 %786
      %788 = vrot.lane.b32.xlu0 %v732, 8
      %v789 = vpop.permute.xlu0 %788
      %790 = vrot.lane.b32.xlu0 %v733, 8
      %v791 = vpop.permute.xlu0 %790
      %792 = vrot.lane.b32.xlu0 %v734, 8
      %v793 = vpop.permute.xlu0 %792
      %794 = vrot.lane.b32.xlu0 %v735, 8
      %v795 = vpop.permute.xlu0 %794
      %vm816 = vcmask 97344
      %817 = vst.msk [vmem:[#allocation4] sm:$0xff] %vm816, %v757
      %818 = vst.msk [vmem:[#allocation4 + $0x8] sm:$0xff] %vm816, %v759
      %819 = vst.msk [vmem:[#allocation4 + $0x10] sm:$0xff] %vm816, %v761
      %820 = vst.msk [vmem:[#allocation4 + $0x18] sm:$0xff] %vm816, %v763
      %821 = vst.msk [vmem:[#allocation4 + $0x20] sm:$0xff] %vm816, %v765
      %822 = vst.msk [vmem:[#allocation4 + $0x28] sm:$0xff] %vm816, %v767
      %823 = vst.msk [vmem:[#allocation4 + $0x30] sm:$0xff] %vm816, %v769
      %824 = vst.msk [vmem:[#allocation4 + $0x38] sm:$0xff] %vm816, %v771
      %825 = vst.msk [vmem:[#allocation4 + $0x40] sm:$0xff] %vm816, %v773
      %826 = vst.msk [vmem:[#allocation4 + $0x48] sm:$0xff] %vm816, %v775
      %827 = vst.msk [vmem:[#allocation4 + $0x50] sm:$0xff] %vm816, %v777
      %828 = vst.msk [vmem:[#allocation4 + $0x58] sm:$0xff] %vm816, %v779
      %829 = vst.msk [vmem:[#allocation4 + $0x60] sm:$0xff] %vm816, %v781
      %830 = vst.msk [vmem:[#allocation4 + $0x68] sm:$0xff] %vm816, %v783
      %831 = vst.msk [vmem:[#allocation4 + $0x70] sm:$0xff] %vm816, %v785
      %832 = vst.msk [vmem:[#allocation4 + $0x78] sm:$0xff] %vm816, %v787
      %833 = vst.msk [vmem:[#allocation4 + $0x80] sm:$0xff] %vm816, %v789
      %834 = vst.msk [vmem:[#allocation4 + $0x88] sm:$0xff] %vm816, %v791
      %835 = vst.msk [vmem:[#allocation4 + $0x90] sm:$0xff] %vm816, %v793
      %836 = vst.msk [vmem:[#allocation4 + $0x98] sm:$0xff] %vm816, %v795
      %s837 = scalar_lea.vmem [#allocation2], 24
      %v838 = vld [vmem:[%s837] sm:$0xff]
      %v839 = vld [vmem:[%s837 + $0x8] sm:$0xff]
      %v840 = vld [vmem:[%s837 + $0x18] sm:$0xff]
      %v841 = vld [vmem:[%s837 + $0x20] sm:$0xff]
      %v842 = vld [vmem:[%s837 + $0x30] sm:$0xff]
      %v843 = vld [vmem:[%s837 + $0x38] sm:$0xff]
      %v844 = vld [vmem:[%s837 + $0x48] sm:$0xff]
      %v845 = vld [vmem:[%s837 + $0x50] sm:$0xff]
      %v846 = vld [vmem:[%s837 + $0x60] sm:$0xff]
      %v847 = vld [vmem:[%s837 + $0x68] sm:$0xff]
      %v848 = vld [vmem:[%s837 + $0x78] sm:$0xff]
      %v849 = vld [vmem:[%s837 + $0x80] sm:$0xff]
      %v850 = vld [vmem:[%s837 + $0x90] sm:$0xff]
      %v851 = vld [vmem:[%s837 + $0x98] sm:$0xff]
      %v852 = vld [vmem:[%s837 + $0xa8] sm:$0xff]
      %v853 = vld [vmem:[%s837 + $0xb0] sm:$0xff]
      %v854 = vld [vmem:[%s837 + $0xc0] sm:$0xff]
      %v855 = vld [vmem:[%s837 + $0xc8] sm:$0xff]
      %v856 = vld [vmem:[%s837 + $0xd8] sm:$0xff]
      %v857 = vld [vmem:[%s837 + $0xe0] sm:$0xff]
      %878 = vrot.lane.b32.xlu0 %v838, 12
      %v879 = vpop.permute.xlu0 %878
      %880 = vrot.lane.b32.xlu0 %v839, 12
      %v881 = vpop.permute.xlu0 %880
      %882 = vrot.lane.b32.xlu0 %v840, 12
      %v883 = vpop.permute.xlu0 %882
      %884 = vrot.lane.b32.xlu0 %v841, 12
      %v885 = vpop.permute.xlu0 %884
      %886 = vrot.lane.b32.xlu0 %v842, 12
      %v887 = vpop.permute.xlu0 %886
      %888 = vrot.lane.b32.xlu0 %v843, 12
      %v889 = vpop.permute.xlu0 %888
      %890 = vrot.lane.b32.xlu0 %v844, 12
      %v891 = vpop.permute.xlu0 %890
      %892 = vrot.lane.b32.xlu0 %v845, 12
      %v893 = vpop.permute.xlu0 %892
      %894 = vrot.lane.b32.xlu0 %v846, 12
      %v895 = vpop.permute.xlu0 %894
      %896 = vrot.lane.b32.xlu0 %v847, 12
      %v897 = vpop.permute.xlu0 %896
      %898 = vrot.lane.b32.xlu0 %v848, 12
      %v899 = vpop.permute.xlu0 %898
      %900 = vrot.lane.b32.xlu0 %v849, 12
      %v901 = vpop.permute.xlu0 %900
      %902 = vrot.lane.b32.xlu0 %v850, 12
      %v903 = vpop.permute.xlu0 %902
      %904 = vrot.lane.b32.xlu0 %v851, 12
      %v905 = vpop.permute.xlu0 %904
      %906 = vrot.lane.b32.xlu0 %v852, 12
      %v907 = vpop.permute.xlu0 %906
      %908 = vrot.lane.b32.xlu0 %v853, 12
      %v909 = vpop.permute.xlu0 %908
      %910 = vrot.lane.b32.xlu0 %v854, 12
      %v911 = vpop.permute.xlu0 %910
      %912 = vrot.lane.b32.xlu0 %v855, 12
      %v913 = vpop.permute.xlu0 %912
      %914 = vrot.lane.b32.xlu0 %v856, 12
      %v915 = vpop.permute.xlu0 %914
      %916 = vrot.lane.b32.xlu0 %v857, 12
      %v917 = vpop.permute.xlu0 %916
      %vm938 = vcmask 130144
      %939 = vst.msk [vmem:[#allocation4] sm:$0xff] %vm938, %v879
      %940 = vst.msk [vmem:[#allocation4 + $0x8] sm:$0xff] %vm938, %v881
      %941 = vst.msk [vmem:[#allocation4 + $0x10] sm:$0xff] %vm938, %v883
      %942 = vst.msk [vmem:[#allocation4 + $0x18] sm:$0xff] %vm938, %v885
      %943 = vst.msk [vmem:[#allocation4 + $0x20] sm:$0xff] %vm938, %v887
      %944 = vst.msk [vmem:[#allocation4 + $0x28] sm:$0xff] %vm938, %v889
      %945 = vst.msk [vmem:[#allocation4 + $0x30] sm:$0xff] %vm938, %v891
      %946 = vst.msk [vmem:[#allocation4 + $0x38] sm:$0xff] %vm938, %v893
      %947 = vst.msk [vmem:[#allocation4 + $0x40] sm:$0xff] %vm938, %v895
      %948 = vst.msk [vmem:[#allocation4 + $0x48] sm:$0xff] %vm938, %v897
      %949 = vst.msk [vmem:[#allocation4 + $0x50] sm:$0xff] %vm938, %v899
      %950 = vst.msk [vmem:[#allocation4 + $0x58] sm:$0xff] %vm938, %v901
      %951 = vst.msk [vmem:[#allocation4 + $0x60] sm:$0xff] %vm938, %v903
      %952 = vst.msk [vmem:[#allocation4 + $0x68] sm:$0xff] %vm938, %v905
      %953 = vst.msk [vmem:[#allocation4 + $0x70] sm:$0xff] %vm938, %v907
      %954 = vst.msk [vmem:[#allocation4 + $0x78] sm:$0xff] %vm938, %v909
      %955 = vst.msk [vmem:[#allocation4 + $0x80] sm:$0xff] %vm938, %v911
      %956 = vst.msk [vmem:[#allocation4 + $0x88] sm:$0xff] %vm938, %v913
      %957 = vst.msk [vmem:[#allocation4 + $0x90] sm:$0xff] %vm938, %v915
      %958 = vst.msk [vmem:[#allocation4 + $0x98] sm:$0xff] %vm938, %v917
      %v959 = vld [vmem:[%s837 + $0x1] sm:$0xff]
      %v960 = vld [vmem:[%s837 + $0x9] sm:$0xff]
      %v961 = vld [vmem:[%s837 + $0x19] sm:$0xff]
      %v962 = vld [vmem:[%s837 + $0x21] sm:$0xff]
      %v963 = vld [vmem:[%s837 + $0x31] sm:$0xff]
      %v964 = vld [vmem:[%s837 + $0x39] sm:$0xff]
      %v965 = vld [vmem:[%s837 + $0x49] sm:$0xff]
      %v966 = vld [vmem:[%s837 + $0x51] sm:$0xff]
      %v967 = vld [vmem:[%s837 + $0x61] sm:$0xff]
      %v968 = vld [vmem:[%s837 + $0x69] sm:$0xff]
      %v969 = vld [vmem:[%s837 + $0x79] sm:$0xff]
      %v970 = vld [vmem:[%s837 + $0x81] sm:$0xff]
      %v971 = vld [vmem:[%s837 + $0x91] sm:$0xff]
      %v972 = vld [vmem:[%s837 + $0x99] sm:$0xff]
      %v973 = vld [vmem:[%s837 + $0xa9] sm:$0xff]
      %v974 = vld [vmem:[%s837 + $0xb1] sm:$0xff]
      %v975 = vld [vmem:[%s837 + $0xc1] sm:$0xff]
      %v976 = vld [vmem:[%s837 + $0xc9] sm:$0xff]
      %v977 = vld [vmem:[%s837 + $0xd9] sm:$0xff]
      %v978 = vld [vmem:[%s837 + $0xe1] sm:$0xff]
      %999 = vrot.lane.b32.xlu0 %v959, 16
      %v1000 = vpop.permute.xlu0 %999
      %1001 = vrot.lane.b32.xlu0 %v960, 16
      %v1002 = vpop.permute.xlu0 %1001
      %1003 = vrot.lane.b32.xlu0 %v961, 16
      %v1004 = vpop.permute.xlu0 %1003
      %1005 = vrot.lane.b32.xlu0 %v962, 16
      %v1006 = vpop.permute.xlu0 %1005
      %1007 = vrot.lane.b32.xlu0 %v963, 16
      %v1008 = vpop.permute.xlu0 %1007
      %1009 = vrot.lane.b32.xlu0 %v964, 16
      %v1010 = vpop.permute.xlu0 %1009
      %1011 = vrot.lane.b32.xlu0 %v965, 16
      %v1012 = vpop.permute.xlu0 %1011
      %1013 = vrot.lane.b32.xlu0 %v966, 16
      %v1014 = vpop.permute.xlu0 %1013
      %1015 = vrot.lane.b32.xlu0 %v967, 16
      %v1016 = vpop.permute.xlu0 %1015
      %1017 = vrot.lane.b32.xlu0 %v968, 16
      %v1018 = vpop.permute.xlu0 %1017
      %1019 = vrot.lane.b32.xlu0 %v969, 16
      %v1020 = vpop.permute.xlu0 %1019
      %1021 = vrot.lane.b32.xlu0 %v970, 16
      %v1022 = vpop.permute.xlu0 %1021
      %1023 = vrot.lane.b32.xlu0 %v971, 16
      %v1024 = vpop.permute.xlu0 %1023
      %1025 = vrot.lane.b32.xlu0 %v972, 16
      %v1026 = vpop.permute.xlu0 %1025
      %1027 = vrot.lane.b32.xlu0 %v973, 16
      %v1028 = vpop.permute.xlu0 %1027
      %1029 = vrot.lane.b32.xlu0 %v974, 16
      %v1030 = vpop.permute.xlu0 %1029
      %1031 = vrot.lane.b32.xlu0 %v975, 16
      %v1032 = vpop.permute.xlu0 %1031
      %1033 = vrot.lane.b32.xlu0 %v976, 16
      %v1034 = vpop.permute.xlu0 %1033
      %1035 = vrot.lane.b32.xlu0 %v977, 16
      %v1036 = vpop.permute.xlu0 %1035
      %1037 = vrot.lane.b32.xlu0 %v978, 16
      %v1038 = vpop.permute.xlu0 %1037
      %vm1059 = vcmask 162944
      %1060 = vst.msk [vmem:[#allocation4] sm:$0xff] %vm1059, %v1000
      %1061 = vst.msk [vmem:[#allocation4 + $0x8] sm:$0xff] %vm1059, %v1002
      %1062 = vst.msk [vmem:[#allocation4 + $0x10] sm:$0xff] %vm1059, %v1004
      %1063 = vst.msk [vmem:[#allocation4 + $0x18] sm:$0xff] %vm1059, %v1006
      %1064 = vst.msk [vmem:[#allocation4 + $0x20] sm:$0xff] %vm1059, %v1008
      %1065 = vst.msk [vmem:[#allocation4 + $0x28] sm:$0xff] %vm1059, %v1010
      %1066 = vst.msk [vmem:[#allocation4 + $0x30] sm:$0xff] %vm1059, %v1012
      %1067 = vst.msk [vmem:[#allocation4 + $0x38] sm:$0xff] %vm1059, %v1014
      %1068 = vst.msk [vmem:[#allocation4 + $0x40] sm:$0xff] %vm1059, %v1016
      %1069 = vst.msk [vmem:[#allocation4 + $0x48] sm:$0xff] %vm1059, %v1018
      %1070 = vst.msk [vmem:[#allocation4 + $0x50] sm:$0xff] %vm1059, %v1020
      %1071 = vst.msk [vmem:[#allocation4 + $0x58] sm:$0xff] %vm1059, %v1022
      %1072 = vst.msk [vmem:[#allocation4 + $0x60] sm:$0xff] %vm1059, %v1024
      %1073 = vst.msk [vmem:[#allocation4 + $0x68] sm:$0xff] %vm1059, %v1026
      %1074 = vst.msk [vmem:[#allocation4 + $0x70] sm:$0xff] %vm1059, %v1028
      %1075 = vst.msk [vmem:[#allocation4 + $0x78] sm:$0xff] %vm1059, %v1030
      %1076 = vst.msk [vmem:[#allocation4 + $0x80] sm:$0xff] %vm1059, %v1032
      %1077 = vst.msk [vmem:[#allocation4 + $0x88] sm:$0xff] %vm1059, %v1034
      %1078 = vst.msk [vmem:[#allocation4 + $0x90] sm:$0xff] %vm1059, %v1036
      %1079 = vst.msk [vmem:[#allocation4 + $0x98] sm:$0xff] %vm1059, %v1038
      %v1080 = vld [vmem:[%s837 + $0x2] sm:$0xff]
      %v1081 = vld [vmem:[%s837 + $0xa] sm:$0xff]
      %v1082 = vld [vmem:[%s837 + $0x1a] sm:$0xff]
      %v1083 = vld [vmem:[%s837 + $0x22] sm:$0xff]
      %v1084 = vld [vmem:[%s837 + $0x32] sm:$0xff]
      %v1085 = vld [vmem:[%s837 + $0x3a] sm:$0xff]
      %v1086 = vld [vmem:[%s837 + $0x4a] sm:$0xff]
      %v1087 = vld [vmem:[%s837 + $0x52] sm:$0xff]
      %v1088 = vld [vmem:[%s837 + $0x62] sm:$0xff]
      %v1089 = vld [vmem:[%s837 + $0x6a] sm:$0xff]
      %v1090 = vld [vmem:[%s837 + $0x7a] sm:$0xff]
      %v1091 = vld [vmem:[%s837 + $0x82] sm:$0xff]
      %v1092 = vld [vmem:[%s837 + $0x92] sm:$0xff]
      %v1093 = vld [vmem:[%s837 + $0x9a] sm:$0xff]
      %v1094 = vld [vmem:[%s837 + $0xaa] sm:$0xff]
      %v1095 = vld [vmem:[%s837 + $0xb2] sm:$0xff]
      %v1096 = vld [vmem:[%s837 + $0xc2] sm:$0xff]
      %v1097 = vld [vmem:[%s837 + $0xca] sm:$0xff]
      %v1098 = vld [vmem:[%s837 + $0xda] sm:$0xff]
      %v1099 = vld [vmem:[%s837 + $0xe2] sm:$0xff]
      %1120 = vrot.lane.b32.xlu0 %v1080, 20
      %v1121 = vpop.permute.xlu0 %1120
      %1122 = vrot.lane.b32.xlu0 %v1081, 20
      %v1123 = vpop.permute.xlu0 %1122
      %1124 = vrot.lane.b32.xlu0 %v1082, 20
      %v1125 = vpop.permute.xlu0 %1124
      %1126 = vrot.lane.b32.xlu0 %v1083, 20
      %v1127 = vpop.permute.xlu0 %1126
      %1128 = vrot.lane.b32.xlu0 %v1084, 20
      %v1129 = vpop.permute.xlu0 %1128
      %1130 = vrot.lane.b32.xlu0 %v1085, 20
      %v1131 = vpop.permute.xlu0 %1130
      %1132 = vrot.lane.b32.xlu0 %v1086, 20
      %v1133 = vpop.permute.xlu0 %1132
      %1134 = vrot.lane.b32.xlu0 %v1087, 20
      %v1135 = vpop.permute.xlu0 %1134
      %1136 = vrot.lane.b32.xlu0 %v1088, 20
      %v1137 = vpop.permute.xlu0 %1136
      %1138 = vrot.lane.b32.xlu0 %v1089, 20
      %v1139 = vpop.permute.xlu0 %1138
      %1140 = vrot.lane.b32.xlu0 %v1090, 20
      %v1141 = vpop.permute.xlu0 %1140
      %1142 = vrot.lane.b32.xlu0 %v1091, 20
      %v1143 = vpop.permute.xlu0 %1142
      %1144 = vrot.lane.b32.xlu0 %v1092, 20
      %v1145 = vpop.permute.xlu0 %1144
      %1146 = vrot.lane.b32.xlu0 %v1093, 20
      %v1147 = vpop.permute.xlu0 %1146
      %1148 = vrot.lane.b32.xlu0 %v1094, 20
      %v1149 = vpop.permute.xlu0 %1148
      %1150 = vrot.lane.b32.xlu0 %v1095, 20
      %v1151 = vpop.permute.xlu0 %1150
      %1152 = vrot.lane.b32.xlu0 %v1096, 20
      %v1153 = vpop.permute.xlu0 %1152
      %1154 = vrot.lane.b32.xlu0 %v1097, 20
      %v1155 = vpop.permute.xlu0 %1154
      %1156 = vrot.lane.b32.xlu0 %v1098, 20
      %v1157 = vpop.permute.xlu0 %1156
      %1158 = vrot.lane.b32.xlu0 %v1099, 20
      %v1159 = vpop.permute.xlu0 %1158
      %vm1180 = vcmask 195744
      %1181 = vst.msk [vmem:[#allocation4] sm:$0xff] %vm1180, %v1121
      %1182 = vst.msk [vmem:[#allocation4 + $0x8] sm:$0xff] %vm1180, %v1123
      %1183 = vst.msk [vmem:[#allocation4 + $0x10] sm:$0xff] %vm1180, %v1125
      %1184 = vst.msk [vmem:[#allocation4 + $0x18] sm:$0xff] %vm1180, %v1127
      %1185 = vst.msk [vmem:[#allocation4 + $0x20] sm:$0xff] %vm1180, %v1129
      %1186 = vst.msk [vmem:[#allocation4 + $0x28] sm:$0xff] %vm1180, %v1131
      %1187 = vst.msk [vmem:[#allocation4 + $0x30] sm:$0xff] %vm1180, %v1133
      %1188 = vst.msk [vmem:[#allocation4 + $0x38] sm:$0xff] %vm1180, %v1135
      %1189 = vst.msk [vmem:[#allocation4 + $0x40] sm:$0xff] %vm1180, %v1137
      %1190 = vst.msk [vmem:[#allocation4 + $0x48] sm:$0xff] %vm1180, %v1139
      %1191 = vst.msk [vmem:[#allocation4 + $0x50] sm:$0xff] %vm1180, %v1141
      %1192 = vst.msk [vmem:[#allocation4 + $0x58] sm:$0xff] %vm1180, %v1143
      %1193 = vst.msk [vmem:[#allocation4 + $0x60] sm:$0xff] %vm1180, %v1145
      %1194 = vst.msk [vmem:[#allocation4 + $0x68] sm:$0xff] %vm1180, %v1147
      %1195 = vst.msk [vmem:[#allocation4 + $0x70] sm:$0xff] %vm1180, %v1149
      %1196 = vst.msk [vmem:[#allocation4 + $0x78] sm:$0xff] %vm1180, %v1151
      %1197 = vst.msk [vmem:[#allocation4 + $0x80] sm:$0xff] %vm1180, %v1153
      %1198 = vst.msk [vmem:[#allocation4 + $0x88] sm:$0xff] %vm1180, %v1155
      %1199 = vst.msk [vmem:[#allocation4 + $0x90] sm:$0xff] %vm1180, %v1157
      %1200 = vst.msk [vmem:[#allocation4 + $0x98] sm:$0xff] %vm1180, %v1159
      %v1201 = vld [vmem:[%s498] sm:$0xff]
      %v1202 = vld [vmem:[%s498 + $0x8] sm:$0xff]
      %v1203 = vld [vmem:[%s498 + $0x18] sm:$0xff]
      %v1204 = vld [vmem:[%s498 + $0x20] sm:$0xff]
      %v1205 = vld [vmem:[%s498 + $0x30] sm:$0xff]
      %v1206 = vld [vmem:[%s498 + $0x38] sm:$0xff]
      %v1207 = vld [vmem:[%s498 + $0x48] sm:$0xff]
      %v1208 = vld [vmem:[%s498 + $0x50] sm:$0xff]
      %v1209 = vld [vmem:[%s498 + $0x60] sm:$0xff]
      %v1210 = vld [vmem:[%s498 + $0x68] sm:$0xff]
      %v1211 = vld [vmem:[%s498 + $0x78] sm:$0xff]
      %v1212 = vld [vmem:[%s498 + $0x80] sm:$0xff]
      %v1213 = vld [vmem:[%s498 + $0x90] sm:$0xff]
      %v1214 = vld [vmem:[%s498 + $0x98] sm:$0xff]
      %v1215 = vld [vmem:[%s498 + $0xa8] sm:$0xff]
      %v1216 = vld [vmem:[%s498 + $0xb0] sm:$0xff]
      %v1217 = vld [vmem:[%s498 + $0xc0] sm:$0xff]
      %v1218 = vld [vmem:[%s498 + $0xc8] sm:$0xff]
      %v1219 = vld [vmem:[%s498 + $0xd8] sm:$0xff]
      %v1220 = vld [vmem:[%s498 + $0xe0] sm:$0xff]
      %1241 = vrot.lane.b32.xlu0 %v1201, 24
      %v1242 = vpop.permute.xlu0 %1241
      %1243 = vrot.lane.b32.xlu0 %v1202, 24
      %v1244 = vpop.permute.xlu0 %1243
      %1245 = vrot.lane.b32.xlu0 %v1203, 24
      %v1246 = vpop.permute.xlu0 %1245
      %1247 = vrot.lane.b32.xlu0 %v1204, 24
      %v1248 = vpop.permute.xlu0 %1247
      %1249 = vrot.lane.b32.xlu0 %v1205, 24
      %v1250 = vpop.permute.xlu0 %1249
      %1251 = vrot.lane.b32.xlu0 %v1206, 24
      %v1252 = vpop.permute.xlu0 %1251
      %1253 = vrot.lane.b32.xlu0 %v1207, 24
      %v1254 = vpop.permute.xlu0 %1253
      %1255 = vrot.lane.b32.xlu0 %v1208, 24
      %v1256 = vpop.permute.xlu0 %1255
      %1257 = vrot.lane.b32.xlu0 %v1209, 24
      %v1258 = vpop.permute.xlu0 %1257
      %1259 = vrot.lane.b32.xlu0 %v1210, 24
      %v1260 = vpop.permute.xlu0 %1259
      %1261 = vrot.lane.b32.xlu0 %v1211, 24
      %v1262 = vpop.permute.xlu0 %1261
      %1263 = vrot.lane.b32.xlu0 %v1212, 24
      %v1264 = vpop.permute.xlu0 %1263
      %1265 = vrot.lane.b32.xlu0 %v1213, 24
      %v1266 = vpop.permute.xlu0 %1265
      %1267 = vrot.lane.b32.xlu0 %v1214, 24
      %v1268 = vpop.permute.xlu0 %1267
      %1269 = vrot.lane.b32.xlu0 %v1215, 24
      %v1270 = vpop.permute.xlu0 %1269
      %1271 = vrot.lane.b32.xlu0 %v1216, 24
      %v1272 = vpop.permute.xlu0 %1271
      %1273 = vrot.lane.b32.xlu0 %v1217, 24
      %v1274 = vpop.permute.xlu0 %1273
      %1275 = vrot.lane.b32.xlu0 %v1218, 24
      %v1276 = vpop.permute.xlu0 %1275
      %1277 = vrot.lane.b32.xlu0 %v1219, 24
      %v1278 = vpop.permute.xlu0 %1277
      %1279 = vrot.lane.b32.xlu0 %v1220, 24
      %v1280 = vpop.permute.xlu0 %1279
      %vm1301 = vcmask 228544
      %1302 = vst.msk [vmem:[#allocation4] sm:$0xff] %vm1301, %v1242
      %1303 = vst.msk [vmem:[#allocation4 + $0x8] sm:$0xff] %vm1301, %v1244
      %1304 = vst.msk [vmem:[#allocation4 + $0x10] sm:$0xff] %vm1301, %v1246
      %1305 = vst.msk [vmem:[#allocation4 + $0x18] sm:$0xff] %vm1301, %v1248
      %1306 = vst.msk [vmem:[#allocation4 + $0x20] sm:$0xff] %vm1301, %v1250
      %1307 = vst.msk [vmem:[#allocation4 + $0x28] sm:$0xff] %vm1301, %v1252
      %1308 = vst.msk [vmem:[#allocation4 + $0x30] sm:$0xff] %vm1301, %v1254
      %1309 = vst.msk [vmem:[#allocation4 + $0x38] sm:$0xff] %vm1301, %v1256
      %1310 = vst.msk [vmem:[#allocation4 + $0x40] sm:$0xff] %vm1301, %v1258
      %1311 = vst.msk [vmem:[#allocation4 + $0x48] sm:$0xff] %vm1301, %v1260
      %1312 = vst.msk [vmem:[#allocation4 + $0x50] sm:$0xff] %vm1301, %v1262
      %1313 = vst.msk [vmem:[#allocation4 + $0x58] sm:$0xff] %vm1301, %v1264
      %1314 = vst.msk [vmem:[#allocation4 + $0x60] sm:$0xff] %vm1301, %v1266
      %1315 = vst.msk [vmem:[#allocation4 + $0x68] sm:$0xff] %vm1301, %v1268
      %1316 = vst.msk [vmem:[#allocation4 + $0x70] sm:$0xff] %vm1301, %v1270
      %1317 = vst.msk [vmem:[#allocation4 + $0x78] sm:$0xff] %vm1301, %v1272
      %1318 = vst.msk [vmem:[#allocation4 + $0x80] sm:$0xff] %vm1301, %v1274
      %1319 = vst.msk [vmem:[#allocation4 + $0x88] sm:$0xff] %vm1301, %v1276
      %1320 = vst.msk [vmem:[#allocation4 + $0x90] sm:$0xff] %vm1301, %v1278
      %1321 = vst.msk [vmem:[#allocation4 + $0x98] sm:$0xff] %vm1301, %v1280
      %v1322 = vld [vmem:[%s498 + $0x1] sm:$0xff]
      %v1323 = vld [vmem:[%s498 + $0x9] sm:$0xff]
      %v1324 = vld [vmem:[%s498 + $0x19] sm:$0xff]
      %v1325 = vld [vmem:[%s498 + $0x21] sm:$0xff]
      %v1326 = vld [vmem:[%s498 + $0x31] sm:$0xff]
      %v1327 = vld [vmem:[%s498 + $0x39] sm:$0xff]
      %v1328 = vld [vmem:[%s498 + $0x49] sm:$0xff]
      %v1329 = vld [vmem:[%s498 + $0x51] sm:$0xff]
      %v1330 = vld [vmem:[%s498 + $0x61] sm:$0xff]
      %v1331 = vld [vmem:[%s498 + $0x69] sm:$0xff]
      %v1332 = vld [vmem:[%s498 + $0x79] sm:$0xff]
      %v1333 = vld [vmem:[%s498 + $0x81] sm:$0xff]
      %v1334 = vld [vmem:[%s498 + $0x91] sm:$0xff]
      %v1335 = vld [vmem:[%s498 + $0x99] sm:$0xff]
      %v1336 = vld [vmem:[%s498 + $0xa9] sm:$0xff]
      %v1337 = vld [vmem:[%s498 + $0xb1] sm:$0xff]
      %v1338 = vld [vmem:[%s498 + $0xc1] sm:$0xff]
      %v1339 = vld [vmem:[%s498 + $0xc9] sm:$0xff]
      %v1340 = vld [vmem:[%s498 + $0xd9] sm:$0xff]
      %v1341 = vld [vmem:[%s498 + $0xe1] sm:$0xff]
      %1362 = vrot.lane.b32.xlu0 %v1322, 28
      %v1363 = vpop.permute.xlu0 %1362
      %1364 = vrot.lane.b32.xlu0 %v1323, 28
      %v1365 = vpop.permute.xlu0 %1364
      %1366 = vrot.lane.b32.xlu0 %v1324, 28
      %v1367 = vpop.permute.xlu0 %1366
      %1368 = vrot.lane.b32.xlu0 %v1325, 28
      %v1369 = vpop.permute.xlu0 %1368
      %1370 = vrot.lane.b32.xlu0 %v1326, 28
      %v1371 = vpop.permute.xlu0 %1370
      %1372 = vrot.lane.b32.xlu0 %v1327, 28
      %v1373 = vpop.permute.xlu0 %1372
      %1374 = vrot.lane.b32.xlu0 %v1328, 28
      %v1375 = vpop.permute.xlu0 %1374
      %1376 = vrot.lane.b32.xlu0 %v1329, 28
      %v1377 = vpop.permute.xlu0 %1376
      %1378 = vrot.lane.b32.xlu0 %v1330, 28
      %v1379 = vpop.permute.xlu0 %1378
      %1380 = vrot.lane.b32.xlu0 %v1331, 28
      %v1381 = vpop.permute.xlu0 %1380
      %1382 = vrot.lane.b32.xlu0 %v1332, 28
      %v1383 = vpop.permute.xlu0 %1382
      %1384 = vrot.lane.b32.xlu0 %v1333, 28
      %v1385 = vpop.permute.xlu0 %1384
      %1386 = vrot.lane.b32.xlu0 %v1334, 28
      %v1387 = vpop.permute.xlu0 %1386
      %1388 = vrot.lane.b32.xlu0 %v1335, 28
      %v1389 = vpop.permute.xlu0 %1388
      %1390 = vrot.lane.b32.xlu0 %v1336, 28
      %v1391 = vpop.permute.xlu0 %1390
      %1392 = vrot.lane.b32.xlu0 %v1337, 28
      %v1393 = vpop.permute.xlu0 %1392
      %1394 = vrot.lane.b32.xlu0 %v1338, 28
      %v1395 = vpop.permute.xlu0 %1394
      %1396 = vrot.lane.b32.xlu0 %v1339, 28
      %v1397 = vpop.permute.xlu0 %1396
      %1398 = vrot.lane.b32.xlu0 %v1340, 28
      %v1399 = vpop.permute.xlu0 %1398
      %1400 = vrot.lane.b32.xlu0 %v1341, 28
      %v1401 = vpop.permute.xlu0 %1400
      %vm1422 = vcmask 261344
      %1423 = vst.msk [vmem:[#allocation4] sm:$0xff] %vm1422, %v1363
      %1424 = vst.msk [vmem:[#allocation4 + $0x8] sm:$0xff] %vm1422, %v1365
      %1425 = vst.msk [vmem:[#allocation4 + $0x10] sm:$0xff] %vm1422, %v1367
      %1426 = vst.msk [vmem:[#allocation4 + $0x18] sm:$0xff] %vm1422, %v1369
      %1427 = vst.msk [vmem:[#allocation4 + $0x20] sm:$0xff] %vm1422, %v1371
      %1428 = vst.msk [vmem:[#allocation4 + $0x28] sm:$0xff] %vm1422, %v1373
      %1429 = vst.msk [vmem:[#allocation4 + $0x30] sm:$0xff] %vm1422, %v1375
      %1430 = vst.msk [vmem:[#allocation4 + $0x38] sm:$0xff] %vm1422, %v1377
      %1431 = vst.msk [vmem:[#allocation4 + $0x40] sm:$0xff] %vm1422, %v1379
      %1432 = vst.msk [vmem:[#allocation4 + $0x48] sm:$0xff] %vm1422, %v1381
      %1433 = vst.msk [vmem:[#allocation4 + $0x50] sm:$0xff] %vm1422, %v1383
      %1434 = vst.msk [vmem:[#allocation4 + $0x58] sm:$0xff] %vm1422, %v1385
      %1435 = vst.msk [vmem:[#allocation4 + $0x60] sm:$0xff] %vm1422, %v1387
      %1436 = vst.msk [vmem:[#allocation4 + $0x68] sm:$0xff] %vm1422, %v1389
      %1437 = vst.msk [vmem:[#allocation4 + $0x70] sm:$0xff] %vm1422, %v1391
      %1438 = vst.msk [vmem:[#allocation4 + $0x78] sm:$0xff] %vm1422, %v1393
      %1439 = vst.msk [vmem:[#allocation4 + $0x80] sm:$0xff] %vm1422, %v1395
      %1440 = vst.msk [vmem:[#allocation4 + $0x88] sm:$0xff] %vm1422, %v1397
      %1441 = vst.msk [vmem:[#allocation4 + $0x90] sm:$0xff] %vm1422, %v1399
      %1442 = vst.msk [vmem:[#allocation4 + $0x98] sm:$0xff] %vm1422, %v1401
      %v1443 = vld [vmem:[%s498 + $0x2] sm:$0xff]
      %v1444 = vld [vmem:[%s498 + $0xa] sm:$0xff]
      %v1445 = vld [vmem:[%s498 + $0x1a] sm:$0xff]
      %v1446 = vld [vmem:[%s498 + $0x22] sm:$0xff]
      %v1447 = vld [vmem:[%s498 + $0x32] sm:$0xff]
      %v1448 = vld [vmem:[%s498 + $0x3a] sm:$0xff]
      %v1449 = vld [vmem:[%s498 + $0x4a] sm:$0xff]
      %v1450 = vld [vmem:[%s498 + $0x52] sm:$0xff]
      %v1451 = vld [vmem:[%s498 + $0x62] sm:$0xff]
      %v1452 = vld [vmem:[%s498 + $0x6a] sm:$0xff]
      %v1453 = vld [vmem:[%s498 + $0x7a] sm:$0xff]
      %v1454 = vld [vmem:[%s498 + $0x82] sm:$0xff]
      %v1455 = vld [vmem:[%s498 + $0x92] sm:$0xff]
      %v1456 = vld [vmem:[%s498 + $0x9a] sm:$0xff]
      %v1457 = vld [vmem:[%s498 + $0xaa] sm:$0xff]
      %v1458 = vld [vmem:[%s498 + $0xb2] sm:$0xff]
      %v1459 = vld [vmem:[%s498 + $0xc2] sm:$0xff]
      %v1460 = vld [vmem:[%s498 + $0xca] sm:$0xff]
      %v1461 = vld [vmem:[%s498 + $0xda] sm:$0xff]
      %v1462 = vld [vmem:[%s498 + $0xe2] sm:$0xff]
      %1483 = vrot.lane.b32.xlu0 %v1443, 32
      %v1484 = vpop.permute.xlu0 %1483
      %1485 = vrot.lane.b32.xlu0 %v1444, 32
      %v1486 = vpop.permute.xlu0 %1485
      %1487 = vrot.lane.b32.xlu0 %v1445, 32
      %v1488 = vpop.permute.xlu0 %1487
      %1489 = vrot.lane.b32.xlu0 %v1446, 32
      %v1490 = vpop.permute.xlu0 %1489
      %1491 = vrot.lane.b32.xlu0 %v1447, 32
      %v1492 = vpop.permute.xlu0 %1491
      %1493 = vrot.lane.b32.xlu0 %v1448, 32
      %v1494 = vpop.permute.xlu0 %1493
      %1495 = vrot.lane.b32.xlu0 %v1449, 32
      %v1496 = vpop.permute.xlu0 %1495
      %1497 = vrot.lane.b32.xlu0 %v1450, 32
      %v1498 = vpop.permute.xlu0 %1497
      %1499 = vrot.lane.b32.xlu0 %v1451, 32
      %v1500 = vpop.permute.xlu0 %1499
      %1501 = vrot.lane.b32.xlu0 %v1452, 32
      %v1502 = vpop.permute.xlu0 %1501
      %1503 = vrot.lane.b32.xlu0 %v1453, 32
      %v1504 = vpop.permute.xlu0 %1503
      %1505 = vrot.lane.b32.xlu0 %v1454, 32
      %v1506 = vpop.permute.xlu0 %1505
      %1507 = vrot.lane.b32.xlu0 %v1455, 32
      %v1508 = vpop.permute.xlu0 %1507
      %1509 = vrot.lane.b32.xlu0 %v1456, 32
      %v1510 = vpop.permute.xlu0 %1509
      %1511 = vrot.lane.b32.xlu0 %v1457, 32
      %v1512 = vpop.permute.xlu0 %1511
      %1513 = vrot.lane.b32.xlu0 %v1458, 32
      %v1514 = vpop.permute.xlu0 %1513
      %1515 = vrot.lane.b32.xlu0 %v1459, 32
      %v1516 = vpop.permute.xlu0 %1515
      %1517 = vrot.lane.b32.xlu0 %v1460, 32
      %v1518 = vpop.permute.xlu0 %1517
      %1519 = vrot.lane.b32.xlu0 %v1461, 32
      %v1520 = vpop.permute.xlu0 %1519
      %1521 = vrot.lane.b32.xlu0 %v1462, 32
      %v1522 = vpop.permute.xlu0 %1521
      %vm1543 = vcmask 294144
      %1544 = vst.msk [vmem:[#allocation4] sm:$0xff] %vm1543, %v1484
      %1545 = vst.msk [vmem:[#allocation4 + $0x8] sm:$0xff] %vm1543, %v1486
      %1546 = vst.msk [vmem:[#allocation4 + $0x10] sm:$0xff] %vm1543, %v1488
      %1547 = vst.msk [vmem:[#allocation4 + $0x18] sm:$0xff] %vm1543, %v1490
      %1548 = vst.msk [vmem:[#allocation4 + $0x20] sm:$0xff] %vm1543, %v1492
      %1549 = vst.msk [vmem:[#allocation4 + $0x28] sm:$0xff] %vm1543, %v1494
      %1550 = vst.msk [vmem:[#allocation4 + $0x30] sm:$0xff] %vm1543, %v1496
      %1551 = vst.msk [vmem:[#allocation4 + $0x38] sm:$0xff] %vm1543, %v1498
      %1552 = vst.msk [vmem:[#allocation4 + $0x40] sm:$0xff] %vm1543, %v1500
      %1553 = vst.msk [vmem:[#allocation4 + $0x48] sm:$0xff] %vm1543, %v1502
      %1554 = vst.msk [vmem:[#allocation4 + $0x50] sm:$0xff] %vm1543, %v1504
      %1555 = vst.msk [vmem:[#allocation4 + $0x58] sm:$0xff] %vm1543, %v1506
      %1556 = vst.msk [vmem:[#allocation4 + $0x60] sm:$0xff] %vm1543, %v1508
      %1557 = vst.msk [vmem:[#allocation4 + $0x68] sm:$0xff] %vm1543, %v1510
      %1558 = vst.msk [vmem:[#allocation4 + $0x70] sm:$0xff] %vm1543, %v1512
      %1559 = vst.msk [vmem:[#allocation4 + $0x78] sm:$0xff] %vm1543, %v1514
      %1560 = vst.msk [vmem:[#allocation4 + $0x80] sm:$0xff] %vm1543, %v1516
      %1561 = vst.msk [vmem:[#allocation4 + $0x88] sm:$0xff] %vm1543, %v1518
      %1562 = vst.msk [vmem:[#allocation4 + $0x90] sm:$0xff] %vm1543, %v1520
      %1563 = vst.msk [vmem:[#allocation4 + $0x98] sm:$0xff] %vm1543, %v1522
      %v1564 = vld [vmem:[#allocation4] sm:$0xff]
      %v1565 = vld [vmem:[#allocation4 + $0x8] sm:$0xff]
      %v1566 = vld [vmem:[#allocation4 + $0x10] sm:$0xff]
      %v1567 = vld [vmem:[#allocation4 + $0x18] sm:$0xff]
      %v1568 = vld [vmem:[#allocation4 + $0x20] sm:$0xff]
      %v1569 = vld [vmem:[#allocation4 + $0x28] sm:$0xff]
      %v1570 = vld [vmem:[#allocation4 + $0x30] sm:$0xff]
      %v1571 = vld [vmem:[#allocation4 + $0x38] sm:$0xff]
      %v1572 = vld [vmem:[#allocation4 + $0x40] sm:$0xff]
      %v1573 = vld [vmem:[#allocation4 + $0x48] sm:$0xff]
      %v1574 = vld [vmem:[#allocation4 + $0x50] sm:$0xff]
      %v1575 = vld [vmem:[#allocation4 + $0x58] sm:$0xff]
      %v1576 = vld [vmem:[#allocation4 + $0x60] sm:$0xff]
      %v1577 = vld [vmem:[#allocation4 + $0x68] sm:$0xff]
      %v1578 = vld [vmem:[#allocation4 + $0x70] sm:$0xff]
      %v1579 = vld [vmem:[#allocation4 + $0x78] sm:$0xff]
      %v1580 = vld [vmem:[#allocation4 + $0x80] sm:$0xff]
      %v1581 = vld [vmem:[#allocation4 + $0x88] sm:$0xff]
      %v1582 = vld [vmem:[#allocation4 + $0x90] sm:$0xff]
      %v1583 = vld [vmem:[#allocation4 + $0x98] sm:$0xff]
      %v1584 = vld [vmem:[%s3] sm:$0xff]
      %v1585 = vld [vmem:[%s3 + $0x8] sm:$0xff]
      %v1586 = vld [vmem:[%s3 + $0x10] sm:$0xff]
      %v1587 = vld [vmem:[%s3 + $0x18] sm:$0xff]
      %v1588 = vld [vmem:[%s3 + $0x20] sm:$0xf]
      %v1589 = vld [vmem:[%s4] sm:$0x1]
      %v1591 = vlaneseq
      %v1592 = vshrl.u32 %v1591, 7
      %v1593 = vsub.s32 0, %v1592
      %v1594 = vrot.slane %v1589, %v1593
      %vm1596 = vcmask 293888
      %v1598 = vsel %vm1596, %v1564, 0
      %v1601 = vsel %vm1596, %v1565, 0
      %v1604 = vsel %vm1596, %v1566, 0
      %v1607 = vsel %vm1596, %v1567, 0
      %v1610 = vsel %vm1596, %v1568, 0
      %v1613 = vsel %vm1596, %v1569, 0
      %v1616 = vsel %vm1596, %v1570, 0
      %v1619 = vsel %vm1596, %v1571, 0
      %v1622 = vsel %vm1596, %v1572, 0
      %v1625 = vsel %vm1596, %v1573, 0
      %v1628 = vsel %vm1596, %v1574, 0
      %v1631 = vsel %vm1596, %v1575, 0
      %v1634 = vsel %vm1596, %v1576, 0
      %v1637 = vsel %vm1596, %v1577, 0
      %v1640 = vsel %vm1596, %v1578, 0
      %v1643 = vsel %vm1596, %v1579, 0
      %v1646 = vsel %vm1596, %v1580, 0
      %v1649 = vsel %vm1596, %v1581, 0
      %v1652 = vsel %vm1596, %v1582, 0
      %v1655 = vsel %vm1596, %v1583, 0
      %vm1657 = vcmask 1043456
      %v1659 = vsel %vm1657, %v1588, 0
      %1661 = vmatprep.subr.mxu0 0.0
      %1662 = vmatpush1.msra.mxu0 %v1584
      %1663 = vmatprep.subr.mxu0 0.0
      %1664 = vmatpush1.msra.mxu0 %v1585
      %1665 = vmatprep.subr.mxu0 0.0
      %1666 = vmatpush1.msra.mxu0 %v1586
      %1667 = vmatprep.subr.mxu0 0.0
      %1668 = vmatpush1.msra.mxu0 %v1587
      %1669 = vmatprep.subr.mxu0 0.0
      %1670 = vmatpush1.msra.mxu0 %v1659
      %1671 = vmatprep.subr.mxu0 0.0
      %1672 = vmatpush1.msra.mxu0 0.0
      %1673 = vmatprep.subr.mxu0 0.0
      %1674 = vmatpush1.msra.mxu0 0.0
      %1675 = vmatprep.subr.mxu0 0.0
      %1676 = vmatpush1.msra.mxu0 0.0
      %1677 = vmatprep.subr.mxu0 0.0
      %1678 = vmatpush1.msra.mxu0 0.0
      %1679 = vmatprep.subr.mxu0 0.0
      %1680 = vmatpush1.msra.mxu0 0.0
      %1681 = vmatprep.subr.mxu0 0.0
      %1682 = vmatpush1.msra.mxu0 0.0
      %1683 = vmatprep.subr.mxu0 0.0
      %1684 = vmatpush1.msra.mxu0 0.0
      %1685 = vmatprep.subr.mxu0 0.0
      %1686 = vmatpush1.msra.mxu0 0.0
      %1687 = vmatprep.subr.mxu0 0.0
      %1688 = vmatpush1.msra.mxu0 0.0
      %1689 = vmatprep.subr.mxu0 0.0
      %1690 = vmatpush1.msra.mxu0 0.0
      %1691 = vmatprep.subr.mxu0 0.0
      %1692 = vmatpush1.msra.mxu0 0.0
      %1693 = vmatprep.subr.mxu0 0.0
      %1694 = vmatpush1.msra.mxu0 0.0
      %1695 = vmatprep.subr.mxu0 0.0
      %1696 = vmatpush1.msra.mxu0 0.0
      %1697 = vmatprep.subr.mxu0 0.0
      %1698 = vmatpush1.msra.mxu0 0.0
      %1699 = vmatprep.subr.mxu0 0.0
      %1700 = vmatpush1.msra.mxu0 0.0
      %1701 = vmatprep.subr.mxu0 0.0
      %1702 = vmatpush1.msra.mxu0 0.0
      %1703 = vmatprep.subr.mxu0 0.0
      %1704 = vmatpush1.msra.mxu0 0.0
      %1705 = vmatprep.subr.mxu0 0.0
      %1706 = vmatpush1.msra.mxu0 0.0
      %1707 = vmatprep.subr.mxu0 0.0
      %1708 = vmatpush1.msra.mxu0 0.0
      %1709 = vmatprep.subr.mxu0 0.0
      %1710 = vmatpush1.msra.mxu0 0.0
      %1711 = vmatprep.subr.mxu0 0.0
      %1712 = vmatpush1.msra.mxu0 0.0
      %1713 = vmatprep.subr.mxu0 0.0
      %1714 = vmatpush1.msra.mxu0 0.0
      %1715 = vmatprep.subr.mxu0 0.0
      %1716 = vmatpush1.msra.mxu0 0.0
      %1717 = vmatprep.subr.mxu0 0.0
      %1718 = vmatpush1.msra.mxu0 0.0
      %1719 = vmatprep.subr.mxu0 0.0
      %1720 = vmatpush1.msra.mxu0 0.0
      %1721 = vmatprep.subr.mxu0 0.0
      %1722 = vmatpush1.msra.mxu0 0.0
      %1723 = vmatprep.subr.mxu0 0.0
      %1724 = vmatpush1.msra.mxu0 0.0
      %1725 = vmatprep.mubr.f32.mxu0 0.0
      %1726 = vmatmul.mubr.f32.gmra.mrb[0].mxu0 %v1598
      %v1727 = vpop.f32.mrb[0].mxu0
      %v1728 = vadd.f32 %v1594, %v1727
      %v1729 = vpop.f32.mrb[0].mxu0
      %1730 = vmatprep.mubr.f32.mxu0 0.0
      %1731 = vmatmul.mubr.f32.gmra.mrb[0].mxu0 %v1601
      %v1732 = vpop.f32.mrb[0].mxu0
      %v1733 = vadd.f32 %v1594, %v1732
      %v1734 = vpop.f32.mrb[0].mxu0
      %1735 = vmatprep.mubr.f32.mxu0 0.0
      %1736 = vmatmul.mubr.f32.gmra.mrb[0].mxu0 %v1604
      %v1737 = vpop.f32.mrb[0].mxu0
      %v1738 = vadd.f32 %v1594, %v1737
      %v1739 = vpop.f32.mrb[0].mxu0
      %1740 = vmatprep.mubr.f32.mxu0 0.0
      %1741 = vmatmul.mubr.f32.gmra.mrb[0].mxu0 %v1607
      %v1742 = vpop.f32.mrb[0].mxu0
      %v1743 = vadd.f32 %v1594, %v1742
      %v1744 = vpop.f32.mrb[0].mxu0
      %1745 = vmatprep.mubr.f32.mxu0 0.0
      %1746 = vmatmul.mubr.f32.gmra.mrb[0].mxu0 %v1610
      %v1747 = vpop.f32.mrb[0].mxu0
      %v1748 = vadd.f32 %v1594, %v1747
      %v1749 = vpop.f32.mrb[0].mxu0
      %1750 = vmatprep.mubr.f32.mxu0 0.0
      %1751 = vmatmul.mubr.f32.gmra.mrb[0].mxu0 %v1613
      %v1752 = vpop.f32.mrb[0].mxu0
      %v1753 = vadd.f32 %v1594, %v1752
      %v1754 = vpop.f32.mrb[0].mxu0
      %1755 = vmatprep.mubr.f32.mxu0 0.0
      %1756 = vmatmul.mubr.f32.gmra.mrb[0].mxu0 %v1616
      %v1757 = vpop.f32.mrb[0].mxu0
      %v1758 = vadd.f32 %v1594, %v1757
      %v1759 = vpop.f32.mrb[0].mxu0
      %1760 = vmatprep.mubr.f32.mxu0 0.0
      %1761 = vmatmul.mubr.f32.gmra.mrb[0].mxu0 %v1619
      %v1762 = vpop.f32.mrb[0].mxu0
      %v1763 = vadd.f32 %v1594, %v1762
      %v1764 = vpop.f32.mrb[0].mxu0
      %1765 = vmatprep.mubr.f32.mxu0 0.0
      %1766 = vmatmul.mubr.f32.gmra.mrb[0].mxu0 %v1622
      %v1767 = vpop.f32.mrb[0].mxu0
      %v1768 = vadd.f32 %v1594, %v1767
      %v1769 = vpop.f32.mrb[0].mxu0
      %1770 = vmatprep.mubr.f32.mxu0 0.0
      %1771 = vmatmul.mubr.f32.gmra.mrb[0].mxu0 %v1625
      %v1772 = vpop.f32.mrb[0].mxu0
      %v1773 = vadd.f32 %v1594, %v1772
      %v1774 = vpop.f32.mrb[0].mxu0
      %1775 = vmatprep.mubr.f32.mxu0 0.0
      %1776 = vmatmul.mubr.f32.gmra.mrb[0].mxu0 %v1628
      %v1777 = vpop.f32.mrb[0].mxu0
      %v1778 = vadd.f32 %v1594, %v1777
      %v1779 = vpop.f32.mrb[0].mxu0
      %1780 = vmatprep.mubr.f32.mxu0 0.0
      %1781 = vmatmul.mubr.f32.gmra.mrb[0].mxu0 %v1631
      %v1782 = vpop.f32.mrb[0].mxu0
      %v1783 = vadd.f32 %v1594, %v1782
      %v1784 = vpop.f32.mrb[0].mxu0
      %1785 = vmatprep.mubr.f32.mxu0 0.0
      %1786 = vmatmul.mubr.f32.gmra.mrb[0].mxu0 %v1634
      %v1787 = vpop.f32.mrb[0].mxu0
      %v1788 = vadd.f32 %v1594, %v1787
      %v1789 = vpop.f32.mrb[0].mxu0
      %1790 = vmatprep.mubr.f32.mxu0 0.0
      %1791 = vmatmul.mubr.f32.gmra.mrb[0].mxu0 %v1637
      %v1792 = vpop.f32.mrb[0].mxu0
      %v1793 = vadd.f32 %v1594, %v1792
      %v1794 = vpop.f32.mrb[0].mxu0
      %1795 = vmatprep.mubr.f32.mxu0 0.0
      %1796 = vmatmul.mubr.f32.gmra.mrb[0].mxu0 %v1640
      %v1797 = vpop.f32.mrb[0].mxu0
      %v1798 = vadd.f32 %v1594, %v1797
      %v1799 = vpop.f32.mrb[0].mxu0
      %1800 = vmatprep.mubr.f32.mxu0 0.0
      %1801 = vmatmul.mubr.f32.gmra.mrb[0].mxu0 %v1643
      %v1802 = vpop.f32.mrb[0].mxu0
      %v1803 = vadd.f32 %v1594, %v1802
      %v1804 = vpop.f32.mrb[0].mxu0
      %1805 = vmatprep.mubr.f32.mxu0 0.0
      %1806 = vmatmul.mubr.f32.gmra.mrb[0].mxu0 %v1646
      %v1807 = vpop.f32.mrb[0].mxu0
      %v1808 = vadd.f32 %v1594, %v1807
      %v1809 = vpop.f32.mrb[0].mxu0
      %1810 = vmatprep.mubr.f32.mxu0 0.0
      %1811 = vmatmul.mubr.f32.gmra.mrb[0].mxu0 %v1649
      %v1812 = vpop.f32.mrb[0].mxu0
      %v1813 = vadd.f32 %v1594, %v1812
      %v1814 = vpop.f32.mrb[0].mxu0
      %1815 = vmatprep.mubr.f32.mxu0 0.0
      %1816 = vmatmul.mubr.f32.gmra.mrb[0].mxu0 %v1652
      %v1817 = vpop.f32.mrb[0].mxu0
      %v1818 = vadd.f32 %v1594, %v1817
      %v1819 = vpop.f32.mrb[0].mxu0
      %1820 = vmatprep.mubr.f32.mxu0 0.0
      %1821 = vmatmul.mubr.f32.gmra.mrb[0].mxu0 %v1655
      %v1822 = vpop.f32.mrb[0].mxu0
      %v1823 = vadd.f32 %v1594, %v1822
      %v1824 = vpop.f32.mrb[0].mxu0
      %1825 = vdwg.mxu0
      %v1826 = vmax.f32 %v1728, 0.0
      %v1827 = vmax.f32 %v1733, 0.0
      %v1828 = vmax.f32 %v1738, 0.0
      %v1829 = vmax.f32 %v1743, 0.0
      %v1830 = vmax.f32 %v1748, 0.0
      %v1831 = vmax.f32 %v1753, 0.0
      %v1832 = vmax.f32 %v1758, 0.0
      %v1833 = vmax.f32 %v1763, 0.0
      %v1834 = vmax.f32 %v1768, 0.0
      %v1835 = vmax.f32 %v1773, 0.0
      %v1836 = vmax.f32 %v1778, 0.0
      %v1837 = vmax.f32 %v1783, 0.0
      %v1838 = vmax.f32 %v1788, 0.0
      %v1839 = vmax.f32 %v1793, 0.0
      %v1840 = vmax.f32 %v1798, 0.0
      %v1841 = vmax.f32 %v1803, 0.0
      %v1842 = vmax.f32 %v1808, 0.0
      %v1843 = vmax.f32 %v1813, 0.0
      %v1844 = vmax.f32 %v1818, 0.0
      %v1845 = vmax.f32 %v1823, 0.0
      %1846 = vst.msk [vmem:[#allocation3] sm:$0x1] %vm457, 0.0
      %1847 = vst.msk [vmem:[#allocation3 + $0x18] sm:$0x1] %vm457, 0.0
      %1848 = vst.msk [vmem:[#allocation3 + $0x30] sm:$0x1] %vm457, 0.0
      %1849 = vst.msk [vmem:[#allocation3 + $0x48] sm:$0x1] %vm457, 0.0
      %1850 = vst.msk [vmem:[#allocation3 + $0x60] sm:$0x1] %vm457, 0.0
      %1851 = vst.msk [vmem:[#allocation3 + $0x78] sm:$0x1] %vm457, 0.0
      %1852 = vst.msk [vmem:[#allocation3 + $0x90] sm:$0x1] %vm457, 0.0
      %1853 = vst.msk [vmem:[#allocation3 + $0xa8] sm:$0x1] %vm457, 0.0
      %1854 = vst.msk [vmem:[#allocation3 + $0xc0] sm:$0x1] %vm457, 0.0
      %1855 = vst.msk [vmem:[#allocation3 + $0xd8] sm:$0x1] %vm457, 0.0
      %1856 = vst.msk [vmem:[#allocation3 + $0x11] sm:$0x1] %vm457, 0.0
      %1857 = vst.msk [vmem:[#allocation3 + $0x29] sm:$0x1] %vm457, 0.0
      %1858 = vst.msk [vmem:[#allocation3 + $0x41] sm:$0x1] %vm457, 0.0
      %1859 = vst.msk [vmem:[#allocation3 + $0x59] sm:$0x1] %vm457, 0.0
      %1860 = vst.msk [vmem:[#allocation3 + $0x71] sm:$0x1] %vm457, 0.0
      %1861 = vst.msk [vmem:[#allocation3 + $0x89] sm:$0x1] %vm457, 0.0
      %1862 = vst.msk [vmem:[#allocation3 + $0xa1] sm:$0x1] %vm457, 0.0
      %1863 = vst.msk [vmem:[#allocation3 + $0xb9] sm:$0x1] %vm457, 0.0
      %1864 = vst.msk [vmem:[#allocation3 + $0xd1] sm:$0x1] %vm457, 0.0
      %1865 = vst.msk [vmem:[#allocation3 + $0xe9] sm:$0x1] %vm457, 0.0
      %1866 = vst.msk [vmem:[#allocation3 + $0x1] sm:$0xff] %vm499, %v1826
      %1867 = vst.msk [vmem:[#allocation3 + $0x9] sm:$0xff] %vm499, %v1827
      %1868 = vst.msk [vmem:[#allocation3 + $0x19] sm:$0xff] %vm499, %v1828
      %1869 = vst.msk [vmem:[#allocation3 + $0x21] sm:$0xff] %vm499, %v1829
      %1870 = vst.msk [vmem:[#allocation3 + $0x31] sm:$0xff] %vm499, %v1830
      %1871 = vst.msk [vmem:[#allocation3 + $0x39] sm:$0xff] %vm499, %v1831
      %1872 = vst.msk [vmem:[#allocation3 + $0x49] sm:$0xff] %vm499, %v1832
      %1873 = vst.msk [vmem:[#allocation3 + $0x51] sm:$0xff] %vm499, %v1833
      %1874 = vst.msk [vmem:[#allocation3 + $0x61] sm:$0xff] %vm499, %v1834
      %1875 = vst.msk [vmem:[#allocation3 + $0x69] sm:$0xff] %vm499, %v1835
      %1876 = vst.msk [vmem:[#allocation3 + $0x79] sm:$0xff] %vm499, %v1836
      %1877 = vst.msk [vmem:[#allocation3 + $0x81] sm:$0xff] %vm499, %v1837
      %1878 = vst.msk [vmem:[#allocation3 + $0x91] sm:$0xff] %vm499, %v1838
      %1879 = vst.msk [vmem:[#allocation3 + $0x99] sm:$0xff] %vm499, %v1839
      %1880 = vst.msk [vmem:[#allocation3 + $0xa9] sm:$0xff] %vm499, %v1840
      %1881 = vst.msk [vmem:[#allocation3 + $0xb1] sm:$0xff] %vm499, %v1841
      %1882 = vst.msk [vmem:[#allocation3 + $0xc1] sm:$0xff] %vm499, %v1842
      %1883 = vst.msk [vmem:[#allocation3 + $0xc9] sm:$0xff] %vm499, %v1843
      %1884 = vst.msk [vmem:[#allocation3 + $0xd9] sm:$0xff] %vm499, %v1844
      %1885 = vst.msk [vmem:[#allocation3 + $0xe1] sm:$0xff] %vm499, %v1845
      // Predicated region
      $region57: #{tpu_custom_call.1} parent=47 // pred_check
        %p1886 = pneg %p533
      $region58: #{tpu_custom_call.1} parent=47 // pred_check_branch
        %1888 = sbr.rel (%p1886) target = $region60
      $region59: #{tpu_custom_call.1} parent=47 // pred_region
        %1889 = vst.msk [vmem:[#allocation3] sm:$0xff] %vm499, 0.0
        %1890 = vst.msk [vmem:[#allocation3 + $0x8] sm:$0xff] %vm499, 0.0
        %vm1891 = vcmask 25600
        %1892 = vst.msk [vmem:[#allocation3 + $0x10] sm:$0x3] %vm1891, 0.0
      $region60: #{tpu_custom_call.1} parent=47 // pred_fallthru
        _
      // Predicated region
      $region61: #{tpu_custom_call.1} parent=47 // pred_check
        %p1893 = pneg %p544
      $region62: #{tpu_custom_call.1} parent=47 // pred_check_branch
        %1895 = sbr.rel (%p1893) target = $region64
      $region63: #{tpu_custom_call.1} parent=47 // pred_region
        %s1896 = scalar_lea.vmem [#allocation3], 216
        %1897 = vst.msk [vmem:[%s1896] sm:$0xff] %vm499, 0.0
        %1898 = vst.msk [vmem:[%s1896 + $0x8] sm:$0xff] %vm499, 0.0
        %vm1899 = vcmask 25600
        %1900 = vst.msk [vmem:[%s1896 + $0x10] sm:$0x3] %vm1899, 0.0
      $region64: #{tpu_custom_call.1} parent=47 // pred_fallthru
        _
      %v1901 = vld [vmem:[#allocation3] sm:$0xff]
      %v1902 = vld [vmem:[#allocation3 + $0x8] sm:$0xff]
      %v1903 = vld [vmem:[#allocation3 + $0x18] sm:$0xff]
      %v1904 = vld [vmem:[#allocation3 + $0x20] sm:$0xff]
      %v1905 = vld [vmem:[#allocation3 + $0x30] sm:$0xff]
      %v1906 = vld [vmem:[#allocation3 + $0x38] sm:$0xff]
      %v1907 = vld [vmem:[#allocation3 + $0x48] sm:$0xff]
      %v1908 = vld [vmem:[#allocation3 + $0x50] sm:$0xff]
      %v1909 = vld [vmem:[#allocation3 + $0x60] sm:$0xff]
      %v1910 = vld [vmem:[#allocation3 + $0x68] sm:$0xff]
      %v1911 = vld [vmem:[#allocation3 + $0x78] sm:$0xff]
      %v1912 = vld [vmem:[#allocation3 + $0x80] sm:$0xff]
      %v1913 = vld [vmem:[#allocation3 + $0x90] sm:$0xff]
      %v1914 = vld [vmem:[#allocation3 + $0x98] sm:$0xff]
      %v1915 = vld [vmem:[#allocation3 + $0xa8] sm:$0xff]
      %v1916 = vld [vmem:[#allocation3 + $0xb0] sm:$0xff]
      %1917 = vst.msk [vmem:[#allocation5] sm:$0xff] %vm499, %v1901
      %1918 = vst.msk [vmem:[#allocation5 + $0x8] sm:$0xff] %vm499, %v1902
      %1919 = vst.msk [vmem:[#allocation5 + $0x10] sm:$0xff] %vm499, %v1903
      %1920 = vst.msk [vmem:[#allocation5 + $0x18] sm:$0xff] %vm499, %v1904
      %1921 = vst.msk [vmem:[#allocation5 + $0x20] sm:$0xff] %vm499, %v1905
      %1922 = vst.msk [vmem:[#allocation5 + $0x28] sm:$0xff] %vm499, %v1906
      %1923 = vst.msk [vmem:[#allocation5 + $0x30] sm:$0xff] %vm499, %v1907
      %1924 = vst.msk [vmem:[#allocation5 + $0x38] sm:$0xff] %vm499, %v1908
      %1925 = vst.msk [vmem:[#allocation5 + $0x40] sm:$0xff] %vm499, %v1909
      %1926 = vst.msk [vmem:[#allocation5 + $0x48] sm:$0xff] %vm499, %v1910
      %1927 = vst.msk [vmem:[#allocation5 + $0x50] sm:$0xff] %vm499, %v1911
      %1928 = vst.msk [vmem:[#allocation5 + $0x58] sm:$0xff] %vm499, %v1912
      %1929 = vst.msk [vmem:[#allocation5 + $0x60] sm:$0xff] %vm499, %v1913
      %1930 = vst.msk [vmem:[#allocation5 + $0x68] sm:$0xff] %vm499, %v1914
      %1931 = vst.msk [vmem:[#allocation5 + $0x70] sm:$0xff] %vm499, %v1915
      %1932 = vst.msk [vmem:[#allocation5 + $0x78] sm:$0xff] %vm499, %v1916
      %v1933 = vld [vmem:[#allocation3 + $0x1] sm:$0xff]
      %v1934 = vld [vmem:[#allocation3 + $0x9] sm:$0xff]
      %v1935 = vld [vmem:[#allocation3 + $0x19] sm:$0xff]
      %v1936 = vld [vmem:[#allocation3 + $0x21] sm:$0xff]
      %v1937 = vld [vmem:[#allocation3 + $0x31] sm:$0xff]
      %v1938 = vld [vmem:[#allocation3 + $0x39] sm:$0xff]
      %v1939 = vld [vmem:[#allocation3 + $0x49] sm:$0xff]
      %v1940 = vld [vmem:[#allocation3 + $0x51] sm:$0xff]
      %v1941 = vld [vmem:[#allocation3 + $0x61] sm:$0xff]
      %v1942 = vld [vmem:[#allocation3 + $0x69] sm:$0xff]
      %v1943 = vld [vmem:[#allocation3 + $0x79] sm:$0xff]
      %v1944 = vld [vmem:[#allocation3 + $0x81] sm:$0xff]
      %v1945 = vld [vmem:[#allocation3 + $0x91] sm:$0xff]
      %v1946 = vld [vmem:[#allocation3 + $0x99] sm:$0xff]
      %v1947 = vld [vmem:[#allocation3 + $0xa9] sm:$0xff]
      %v1948 = vld [vmem:[#allocation3 + $0xb1] sm:$0xff]
      %1965 = vrot.lane.b32.xlu0 %v1933, 4
      %v1966 = vpop.permute.xlu0 %1965
      %1967 = vrot.lane.b32.xlu0 %v1934, 4
      %v1968 = vpop.permute.xlu0 %1967
      %1969 = vrot.lane.b32.xlu0 %v1935, 4
      %v1970 = vpop.permute.xlu0 %1969
      %1971 = vrot.lane.b32.xlu0 %v1936, 4
      %v1972 = vpop.permute.xlu0 %1971
      %1973 = vrot.lane.b32.xlu0 %v1937, 4
      %v1974 = vpop.permute.xlu0 %1973
      %1975 = vrot.lane.b32.xlu0 %v1938, 4
      %v1976 = vpop.permute.xlu0 %1975
      %1977 = vrot.lane.b32.xlu0 %v1939, 4
      %v1978 = vpop.permute.xlu0 %1977
      %1979 = vrot.lane.b32.xlu0 %v1940, 4
      %v1980 = vpop.permute.xlu0 %1979
      %1981 = vrot.lane.b32.xlu0 %v1941, 4
      %v1982 = vpop.permute.xlu0 %1981
      %1983 = vrot.lane.b32.xlu0 %v1942, 4
      %v1984 = vpop.permute.xlu0 %1983
      %1985 = vrot.lane.b32.xlu0 %v1943, 4
      %v1986 = vpop.permute.xlu0 %1985
      %1987 = vrot.lane.b32.xlu0 %v1944, 4
      %v1988 = vpop.permute.xlu0 %1987
      %1989 = vrot.lane.b32.xlu0 %v1945, 4
      %v1990 = vpop.permute.xlu0 %1989
      %1991 = vrot.lane.b32.xlu0 %v1946, 4
      %v1992 = vpop.permute.xlu0 %1991
      %1993 = vrot.lane.b32.xlu0 %v1947, 4
      %v1994 = vpop.permute.xlu0 %1993
      %1995 = vrot.lane.b32.xlu0 %v1948, 4
      %v1996 = vpop.permute.xlu0 %1995
      %2013 = vst.msk [vmem:[#allocation5] sm:$0xff] %vm695, %v1966
      %2014 = vst.msk [vmem:[#allocation5 + $0x8] sm:$0xff] %vm695, %v1968
      %2015 = vst.msk [vmem:[#allocation5 + $0x10] sm:$0xff] %vm695, %v1970
      %2016 = vst.msk [vmem:[#allocation5 + $0x18] sm:$0xff] %vm695, %v1972
      %2017 = vst.msk [vmem:[#allocation5 + $0x20] sm:$0xff] %vm695, %v1974
      %2018 = vst.msk [vmem:[#allocation5 + $0x28] sm:$0xff] %vm695, %v1976
      %2019 = vst.msk [vmem:[#allocation5 + $0x30] sm:$0xff] %vm695, %v1978
      %2020 = vst.msk [vmem:[#allocation5 + $0x38] sm:$0xff] %vm695, %v1980
      %2021 = vst.msk [vmem:[#allocation5 + $0x40] sm:$0xff] %vm695, %v1982
      %2022 = vst.msk [vmem:[#allocation5 + $0x48] sm:$0xff] %vm695, %v1984
      %2023 = vst.msk [vmem:[#allocation5 + $0x50] sm:$0xff] %vm695, %v1986
      %2024 = vst.msk [vmem:[#allocation5 + $0x58] sm:$0xff] %vm695, %v1988
      %2025 = vst.msk [vmem:[#allocation5 + $0x60] sm:$0xff] %vm695, %v1990
      %2026 = vst.msk [vmem:[#allocation5 + $0x68] sm:$0xff] %vm695, %v1992
      %2027 = vst.msk [vmem:[#allocation5 + $0x70] sm:$0xff] %vm695, %v1994
      %2028 = vst.msk [vmem:[#allocation5 + $0x78] sm:$0xff] %vm695, %v1996
      %v2029 = vld [vmem:[#allocation3 + $0x2] sm:$0xff]
      %v2030 = vld [vmem:[#allocation3 + $0xa] sm:$0xff]
      %v2031 = vld [vmem:[#allocation3 + $0x1a] sm:$0xff]
      %v2032 = vld [vmem:[#allocation3 + $0x22] sm:$0xff]
      %v2033 = vld [vmem:[#allocation3 + $0x32] sm:$0xff]
      %v2034 = vld [vmem:[#allocation3 + $0x3a] sm:$0xff]
      %v2035 = vld [vmem:[#allocation3 + $0x4a] sm:$0xff]
      %v2036 = vld [vmem:[#allocation3 + $0x52] sm:$0xff]
      %v2037 = vld [vmem:[#allocation3 + $0x62] sm:$0xff]
      %v2038 = vld [vmem:[#allocation3 + $0x6a] sm:$0xff]
      %v2039 = vld [vmem:[#allocation3 + $0x7a] sm:$0xff]
      %v2040 = vld [vmem:[#allocation3 + $0x82] sm:$0xff]
      %v2041 = vld [vmem:[#allocation3 + $0x92] sm:$0xff]
      %v2042 = vld [vmem:[#allocation3 + $0x9a] sm:$0xff]
      %v2043 = vld [vmem:[#allocation3 + $0xaa] sm:$0xff]
      %v2044 = vld [vmem:[#allocation3 + $0xb2] sm:$0xff]
      %2061 = vrot.lane.b32.xlu0 %v2029, 8
      %v2062 = vpop.permute.xlu0 %2061
      %2063 = vrot.lane.b32.xlu0 %v2030, 8
      %v2064 = vpop.permute.xlu0 %2063
      %2065 = vrot.lane.b32.xlu0 %v2031, 8
      %v2066 = vpop.permute.xlu0 %2065
      %2067 = vrot.lane.b32.xlu0 %v2032, 8
      %v2068 = vpop.permute.xlu0 %2067
      %2069 = vrot.lane.b32.xlu0 %v2033, 8
      %v2070 = vpop.permute.xlu0 %2069
      %2071 = vrot.lane.b32.xlu0 %v2034, 8
      %v2072 = vpop.permute.xlu0 %2071
      %2073 = vrot.lane.b32.xlu0 %v2035, 8
      %v2074 = vpop.permute.xlu0 %2073
      %2075 = vrot.lane.b32.xlu0 %v2036, 8
      %v2076 = vpop.permute.xlu0 %2075
      %2077 = vrot.lane.b32.xlu0 %v2037, 8
      %v2078 = vpop.permute.xlu0 %2077
      %2079 = vrot.lane.b32.xlu0 %v2038, 8
      %v2080 = vpop.permute.xlu0 %2079
      %2081 = vrot.lane.b32.xlu0 %v2039, 8
      %v2082 = vpop.permute.xlu0 %2081
      %2083 = vrot.lane.b32.xlu0 %v2040, 8
      %v2084 = vpop.permute.xlu0 %2083
      %2085 = vrot.lane.b32.xlu0 %v2041, 8
      %v2086 = vpop.permute.xlu0 %2085
      %2087 = vrot.lane.b32.xlu0 %v2042, 8
      %v2088 = vpop.permute.xlu0 %2087
      %2089 = vrot.lane.b32.xlu0 %v2043, 8
      %v2090 = vpop.permute.xlu0 %2089
      %2091 = vrot.lane.b32.xlu0 %v2044, 8
      %v2092 = vpop.permute.xlu0 %2091
      %2109 = vst.msk [vmem:[#allocation5] sm:$0xff] %vm816, %v2062
      %2110 = vst.msk [vmem:[#allocation5 + $0x8] sm:$0xff] %vm816, %v2064
      %2111 = vst.msk [vmem:[#allocation5 + $0x10] sm:$0xff] %vm816, %v2066
      %2112 = vst.msk [vmem:[#allocation5 + $0x18] sm:$0xff] %vm816, %v2068
      %2113 = vst.msk [vmem:[#allocation5 + $0x20] sm:$0xff] %vm816, %v2070
      %2114 = vst.msk [vmem:[#allocation5 + $0x28] sm:$0xff] %vm816, %v2072
      %2115 = vst.msk [vmem:[#allocation5 + $0x30] sm:$0xff] %vm816, %v2074
      %2116 = vst.msk [vmem:[#allocation5 + $0x38] sm:$0xff] %vm816, %v2076
      %2117 = vst.msk [vmem:[#allocation5 + $0x40] sm:$0xff] %vm816, %v2078
      %2118 = vst.msk [vmem:[#allocation5 + $0x48] sm:$0xff] %vm816, %v2080
      %2119 = vst.msk [vmem:[#allocation5 + $0x50] sm:$0xff] %vm816, %v2082
      %2120 = vst.msk [vmem:[#allocation5 + $0x58] sm:$0xff] %vm816, %v2084
      %2121 = vst.msk [vmem:[#allocation5 + $0x60] sm:$0xff] %vm816, %v2086
      %2122 = vst.msk [vmem:[#allocation5 + $0x68] sm:$0xff] %vm816, %v2088
      %2123 = vst.msk [vmem:[#allocation5 + $0x70] sm:$0xff] %vm816, %v2090
      %2124 = vst.msk [vmem:[#allocation5 + $0x78] sm:$0xff] %vm816, %v2092
      %s2125 = scalar_lea.vmem [#allocation3], 24
      %v2126 = vld [vmem:[%s2125] sm:$0xff]
      %v2127 = vld [vmem:[%s2125 + $0x8] sm:$0xff]
      %v2128 = vld [vmem:[%s2125 + $0x18] sm:$0xff]
      %v2129 = vld [vmem:[%s2125 + $0x20] sm:$0xff]
      %v2130 = vld [vmem:[%s2125 + $0x30] sm:$0xff]
      %v2131 = vld [vmem:[%s2125 + $0x38] sm:$0xff]
      %v2132 = vld [vmem:[%s2125 + $0x48] sm:$0xff]
      %v2133 = vld [vmem:[%s2125 + $0x50] sm:$0xff]
      %v2134 = vld [vmem:[%s2125 + $0x60] sm:$0xff]
      %v2135 = vld [vmem:[%s2125 + $0x68] sm:$0xff]
      %v2136 = vld [vmem:[%s2125 + $0x78] sm:$0xff]
      %v2137 = vld [vmem:[%s2125 + $0x80] sm:$0xff]
      %v2138 = vld [vmem:[%s2125 + $0x90] sm:$0xff]
      %v2139 = vld [vmem:[%s2125 + $0x98] sm:$0xff]
      %v2140 = vld [vmem:[%s2125 + $0xa8] sm:$0xff]
      %v2141 = vld [vmem:[%s2125 + $0xb0] sm:$0xff]
      %2158 = vrot.lane.b32.xlu0 %v2126, 12
      %v2159 = vpop.permute.xlu0 %2158
      %2160 = vrot.lane.b32.xlu0 %v2127, 12
      %v2161 = vpop.permute.xlu0 %2160
      %2162 = vrot.lane.b32.xlu0 %v2128, 12
      %v2163 = vpop.permute.xlu0 %2162
      %2164 = vrot.lane.b32.xlu0 %v2129, 12
      %v2165 = vpop.permute.xlu0 %2164
      %2166 = vrot.lane.b32.xlu0 %v2130, 12
      %v2167 = vpop.permute.xlu0 %2166
      %2168 = vrot.lane.b32.xlu0 %v2131, 12
      %v2169 = vpop.permute.xlu0 %2168
      %2170 = vrot.lane.b32.xlu0 %v2132, 12
      %v2171 = vpop.permute.xlu0 %2170
      %2172 = vrot.lane.b32.xlu0 %v2133, 12
      %v2173 = vpop.permute.xlu0 %2172
      %2174 = vrot.lane.b32.xlu0 %v2134, 12
      %v2175 = vpop.permute.xlu0 %2174
      %2176 = vrot.lane.b32.xlu0 %v2135, 12
      %v2177 = vpop.permute.xlu0 %2176
      %2178 = vrot.lane.b32.xlu0 %v2136, 12
      %v2179 = vpop.permute.xlu0 %2178
      %2180 = vrot.lane.b32.xlu0 %v2137, 12
      %v2181 = vpop.permute.xlu0 %2180
      %2182 = vrot.lane.b32.xlu0 %v2138, 12
      %v2183 = vpop.permute.xlu0 %2182
      %2184 = vrot.lane.b32.xlu0 %v2139, 12
      %v2185 = vpop.permute.xlu0 %2184
      %2186 = vrot.lane.b32.xlu0 %v2140, 12
      %v2187 = vpop.permute.xlu0 %2186
      %2188 = vrot.lane.b32.xlu0 %v2141, 12
      %v2189 = vpop.permute.xlu0 %2188
      %2206 = vst.msk [vmem:[#allocation5] sm:$0xff] %vm938, %v2159
      %2207 = vst.msk [vmem:[#allocation5 + $0x8] sm:$0xff] %vm938, %v2161
      %2208 = vst.msk [vmem:[#allocation5 + $0x10] sm:$0xff] %vm938, %v2163
      %2209 = vst.msk [vmem:[#allocation5 + $0x18] sm:$0xff] %vm938, %v2165
      %2210 = vst.msk [vmem:[#allocation5 + $0x20] sm:$0xff] %vm938, %v2167
      %2211 = vst.msk [vmem:[#allocation5 + $0x28] sm:$0xff] %vm938, %v2169
      %2212 = vst.msk [vmem:[#allocation5 + $0x30] sm:$0xff] %vm938, %v2171
      %2213 = vst.msk [vmem:[#allocation5 + $0x38] sm:$0xff] %vm938, %v2173
      %2214 = vst.msk [vmem:[#allocation5 + $0x40] sm:$0xff] %vm938, %v2175
      %2215 = vst.msk [vmem:[#allocation5 + $0x48] sm:$0xff] %vm938, %v2177
      %2216 = vst.msk [vmem:[#allocation5 + $0x50] sm:$0xff] %vm938, %v2179
      %2217 = vst.msk [vmem:[#allocation5 + $0x58] sm:$0xff] %vm938, %v2181
      %2218 = vst.msk [vmem:[#allocation5 + $0x60] sm:$0xff] %vm938, %v2183
      %2219 = vst.msk [vmem:[#allocation5 + $0x68] sm:$0xff] %vm938, %v2185
      %2220 = vst.msk [vmem:[#allocation5 + $0x70] sm:$0xff] %vm938, %v2187
      %2221 = vst.msk [vmem:[#allocation5 + $0x78] sm:$0xff] %vm938, %v2189
      %v2222 = vld [vmem:[%s2125 + $0x1] sm:$0xff]
      %v2223 = vld [vmem:[%s2125 + $0x9] sm:$0xff]
      %v2224 = vld [vmem:[%s2125 + $0x19] sm:$0xff]
      %v2225 = vld [vmem:[%s2125 + $0x21] sm:$0xff]
      %v2226 = vld [vmem:[%s2125 + $0x31] sm:$0xff]
      %v2227 = vld [vmem:[%s2125 + $0x39] sm:$0xff]
      %v2228 = vld [vmem:[%s2125 + $0x49] sm:$0xff]
      %v2229 = vld [vmem:[%s2125 + $0x51] sm:$0xff]
      %v2230 = vld [vmem:[%s2125 + $0x61] sm:$0xff]
      %v2231 = vld [vmem:[%s2125 + $0x69] sm:$0xff]
      %v2232 = vld [vmem:[%s2125 + $0x79] sm:$0xff]
      %v2233 = vld [vmem:[%s2125 + $0x81] sm:$0xff]
      %v2234 = vld [vmem:[%s2125 + $0x91] sm:$0xff]
      %v2235 = vld [vmem:[%s2125 + $0x99] sm:$0xff]
      %v2236 = vld [vmem:[%s2125 + $0xa9] sm:$0xff]
      %v2237 = vld [vmem:[%s2125 + $0xb1] sm:$0xff]
      %2254 = vrot.lane.b32.xlu0 %v2222, 16
      %v2255 = vpop.permute.xlu0 %2254
      %2256 = vrot.lane.b32.xlu0 %v2223, 16
      %v2257 = vpop.permute.xlu0 %2256
      %2258 = vrot.lane.b32.xlu0 %v2224, 16
      %v2259 = vpop.permute.xlu0 %2258
      %2260 = vrot.lane.b32.xlu0 %v2225, 16
      %v2261 = vpop.permute.xlu0 %2260
      %2262 = vrot.lane.b32.xlu0 %v2226, 16
      %v2263 = vpop.permute.xlu0 %2262
      %2264 = vrot.lane.b32.xlu0 %v2227, 16
      %v2265 = vpop.permute.xlu0 %2264
      %2266 = vrot.lane.b32.xlu0 %v2228, 16
      %v2267 = vpop.permute.xlu0 %2266
      %2268 = vrot.lane.b32.xlu0 %v2229, 16
      %v2269 = vpop.permute.xlu0 %2268
      %2270 = vrot.lane.b32.xlu0 %v2230, 16
      %v2271 = vpop.permute.xlu0 %2270
      %2272 = vrot.lane.b32.xlu0 %v2231, 16
      %v2273 = vpop.permute.xlu0 %2272
      %2274 = vrot.lane.b32.xlu0 %v2232, 16
      %v2275 = vpop.permute.xlu0 %2274
      %2276 = vrot.lane.b32.xlu0 %v2233, 16
      %v2277 = vpop.permute.xlu0 %2276
      %2278 = vrot.lane.b32.xlu0 %v2234, 16
      %v2279 = vpop.permute.xlu0 %2278
      %2280 = vrot.lane.b32.xlu0 %v2235, 16
      %v2281 = vpop.permute.xlu0 %2280
      %2282 = vrot.lane.b32.xlu0 %v2236, 16
      %v2283 = vpop.permute.xlu0 %2282
      %2284 = vrot.lane.b32.xlu0 %v2237, 16
      %v2285 = vpop.permute.xlu0 %2284
      %2302 = vst.msk [vmem:[#allocation5] sm:$0xff] %vm1059, %v2255
      %2303 = vst.msk [vmem:[#allocation5 + $0x8] sm:$0xff] %vm1059, %v2257
      %2304 = vst.msk [vmem:[#allocation5 + $0x10] sm:$0xff] %vm1059, %v2259
      %2305 = vst.msk [vmem:[#allocation5 + $0x18] sm:$0xff] %vm1059, %v2261
      %2306 = vst.msk [vmem:[#allocation5 + $0x20] sm:$0xff] %vm1059, %v2263
      %2307 = vst.msk [vmem:[#allocation5 + $0x28] sm:$0xff] %vm1059, %v2265
      %2308 = vst.msk [vmem:[#allocation5 + $0x30] sm:$0xff] %vm1059, %v2267
      %2309 = vst.msk [vmem:[#allocation5 + $0x38] sm:$0xff] %vm1059, %v2269
      %2310 = vst.msk [vmem:[#allocation5 + $0x40] sm:$0xff] %vm1059, %v2271
      %2311 = vst.msk [vmem:[#allocation5 + $0x48] sm:$0xff] %vm1059, %v2273
      %2312 = vst.msk [vmem:[#allocation5 + $0x50] sm:$0xff] %vm1059, %v2275
      %2313 = vst.msk [vmem:[#allocation5 + $0x58] sm:$0xff] %vm1059, %v2277
      %2314 = vst.msk [vmem:[#allocation5 + $0x60] sm:$0xff] %vm1059, %v2279
      %2315 = vst.msk [vmem:[#allocation5 + $0x68] sm:$0xff] %vm1059, %v2281
      %2316 = vst.msk [vmem:[#allocation5 + $0x70] sm:$0xff] %vm1059, %v2283
      %2317 = vst.msk [vmem:[#allocation5 + $0x78] sm:$0xff] %vm1059, %v2285
      %v2318 = vld [vmem:[%s2125 + $0x2] sm:$0xff]
      %v2319 = vld [vmem:[%s2125 + $0xa] sm:$0xff]
      %v2320 = vld [vmem:[%s2125 + $0x1a] sm:$0xff]
      %v2321 = vld [vmem:[%s2125 + $0x22] sm:$0xff]
      %v2322 = vld [vmem:[%s2125 + $0x32] sm:$0xff]
      %v2323 = vld [vmem:[%s2125 + $0x3a] sm:$0xff]
      %v2324 = vld [vmem:[%s2125 + $0x4a] sm:$0xff]
      %v2325 = vld [vmem:[%s2125 + $0x52] sm:$0xff]
      %v2326 = vld [vmem:[%s2125 + $0x62] sm:$0xff]
      %v2327 = vld [vmem:[%s2125 + $0x6a] sm:$0xff]
      %v2328 = vld [vmem:[%s2125 + $0x7a] sm:$0xff]
      %v2329 = vld [vmem:[%s2125 + $0x82] sm:$0xff]
      %v2330 = vld [vmem:[%s2125 + $0x92] sm:$0xff]
      %v2331 = vld [vmem:[%s2125 + $0x9a] sm:$0xff]
      %v2332 = vld [vmem:[%s2125 + $0xaa] sm:$0xff]
      %v2333 = vld [vmem:[%s2125 + $0xb2] sm:$0xff]
      %2350 = vrot.lane.b32.xlu0 %v2318, 20
      %v2351 = vpop.permute.xlu0 %2350
      %2352 = vrot.lane.b32.xlu0 %v2319, 20
      %v2353 = vpop.permute.xlu0 %2352
      %2354 = vrot.lane.b32.xlu0 %v2320, 20
      %v2355 = vpop.permute.xlu0 %2354
      %2356 = vrot.lane.b32.xlu0 %v2321, 20
      %v2357 = vpop.permute.xlu0 %2356
      %2358 = vrot.lane.b32.xlu0 %v2322, 20
      %v2359 = vpop.permute.xlu0 %2358
      %2360 = vrot.lane.b32.xlu0 %v2323, 20
      %v2361 = vpop.permute.xlu0 %2360
      %2362 = vrot.lane.b32.xlu0 %v2324, 20
      %v2363 = vpop.permute.xlu0 %2362
      %2364 = vrot.lane.b32.xlu0 %v2325, 20
      %v2365 = vpop.permute.xlu0 %2364
      %2366 = vrot.lane.b32.xlu0 %v2326, 20
      %v2367 = vpop.permute.xlu0 %2366
      %2368 = vrot.lane.b32.xlu0 %v2327, 20
      %v2369 = vpop.permute.xlu0 %2368
      %2370 = vrot.lane.b32.xlu0 %v2328, 20
      %v2371 = vpop.permute.xlu0 %2370
      %2372 = vrot.lane.b32.xlu0 %v2329, 20
      %v2373 = vpop.permute.xlu0 %2372
      %2374 = vrot.lane.b32.xlu0 %v2330, 20
      %v2375 = vpop.permute.xlu0 %2374
      %2376 = vrot.lane.b32.xlu0 %v2331, 20
      %v2377 = vpop.permute.xlu0 %2376
      %2378 = vrot.lane.b32.xlu0 %v2332, 20
      %v2379 = vpop.permute.xlu0 %2378
      %2380 = vrot.lane.b32.xlu0 %v2333, 20
      %v2381 = vpop.permute.xlu0 %2380
      %2398 = vst.msk [vmem:[#allocation5] sm:$0xff] %vm1180, %v2351
      %2399 = vst.msk [vmem:[#allocation5 + $0x8] sm:$0xff] %vm1180, %v2353
      %2400 = vst.msk [vmem:[#allocation5 + $0x10] sm:$0xff] %vm1180, %v2355
      %2401 = vst.msk [vmem:[#allocation5 + $0x18] sm:$0xff] %vm1180, %v2357
      %2402 = vst.msk [vmem:[#allocation5 + $0x20] sm:$0xff] %vm1180, %v2359
      %2403 = vst.msk [vmem:[#allocation5 + $0x28] sm:$0xff] %vm1180, %v2361
      %2404 = vst.msk [vmem:[#allocation5 + $0x30] sm:$0xff] %vm1180, %v2363
      %2405 = vst.msk [vmem:[#allocation5 + $0x38] sm:$0xff] %vm1180, %v2365
      %2406 = vst.msk [vmem:[#allocation5 + $0x40] sm:$0xff] %vm1180, %v2367
      %2407 = vst.msk [vmem:[#allocation5 + $0x48] sm:$0xff] %vm1180, %v2369
      %2408 = vst.msk [vmem:[#allocation5 + $0x50] sm:$0xff] %vm1180, %v2371
      %2409 = vst.msk [vmem:[#allocation5 + $0x58] sm:$0xff] %vm1180, %v2373
      %2410 = vst.msk [vmem:[#allocation5 + $0x60] sm:$0xff] %vm1180, %v2375
      %2411 = vst.msk [vmem:[#allocation5 + $0x68] sm:$0xff] %vm1180, %v2377
      %2412 = vst.msk [vmem:[#allocation5 + $0x70] sm:$0xff] %vm1180, %v2379
      %2413 = vst.msk [vmem:[#allocation5 + $0x78] sm:$0xff] %vm1180, %v2381
      %s2414 = scalar_lea.vmem [#allocation3], 48
      %v2415 = vld [vmem:[%s2414] sm:$0xff]
      %v2416 = vld [vmem:[%s2414 + $0x8] sm:$0xff]
      %v2417 = vld [vmem:[%s2414 + $0x18] sm:$0xff]
      %v2418 = vld [vmem:[%s2414 + $0x20] sm:$0xff]
      %v2419 = vld [vmem:[%s2414 + $0x30] sm:$0xff]
      %v2420 = vld [vmem:[%s2414 + $0x38] sm:$0xff]
      %v2421 = vld [vmem:[%s2414 + $0x48] sm:$0xff]
      %v2422 = vld [vmem:[%s2414 + $0x50] sm:$0xff]
      %v2423 = vld [vmem:[%s2414 + $0x60] sm:$0xff]
      %v2424 = vld [vmem:[%s2414 + $0x68] sm:$0xff]
      %v2425 = vld [vmem:[%s2414 + $0x78] sm:$0xff]
      %v2426 = vld [vmem:[%s2414 + $0x80] sm:$0xff]
      %v2427 = vld [vmem:[%s2414 + $0x90] sm:$0xff]
      %v2428 = vld [vmem:[%s2414 + $0x98] sm:$0xff]
      %v2429 = vld [vmem:[%s2414 + $0xa8] sm:$0xff]
      %v2430 = vld [vmem:[%s2414 + $0xb0] sm:$0xff]
      %2447 = vrot.lane.b32.xlu0 %v2415, 24
      %v2448 = vpop.permute.xlu0 %2447
      %2449 = vrot.lane.b32.xlu0 %v2416, 24
      %v2450 = vpop.permute.xlu0 %2449
      %2451 = vrot.lane.b32.xlu0 %v2417, 24
      %v2452 = vpop.permute.xlu0 %2451
      %2453 = vrot.lane.b32.xlu0 %v2418, 24
      %v2454 = vpop.permute.xlu0 %2453
      %2455 = vrot.lane.b32.xlu0 %v2419, 24
      %v2456 = vpop.permute.xlu0 %2455
      %2457 = vrot.lane.b32.xlu0 %v2420, 24
      %v2458 = vpop.permute.xlu0 %2457
      %2459 = vrot.lane.b32.xlu0 %v2421, 24
      %v2460 = vpop.permute.xlu0 %2459
      %2461 = vrot.lane.b32.xlu0 %v2422, 24
      %v2462 = vpop.permute.xlu0 %2461
      %2463 = vrot.lane.b32.xlu0 %v2423, 24
      %v2464 = vpop.permute.xlu0 %2463
      %2465 = vrot.lane.b32.xlu0 %v2424, 24
      %v2466 = vpop.permute.xlu0 %2465
      %2467 = vrot.lane.b32.xlu0 %v2425, 24
      %v2468 = vpop.permute.xlu0 %2467
      %2469 = vrot.lane.b32.xlu0 %v2426, 24
      %v2470 = vpop.permute.xlu0 %2469
      %2471 = vrot.lane.b32.xlu0 %v2427, 24
      %v2472 = vpop.permute.xlu0 %2471
      %2473 = vrot.lane.b32.xlu0 %v2428, 24
      %v2474 = vpop.permute.xlu0 %2473
      %2475 = vrot.lane.b32.xlu0 %v2429, 24
      %v2476 = vpop.permute.xlu0 %2475
      %2477 = vrot.lane.b32.xlu0 %v2430, 24
      %v2478 = vpop.permute.xlu0 %2477
      %2495 = vst.msk [vmem:[#allocation5] sm:$0xff] %vm1301, %v2448
      %2496 = vst.msk [vmem:[#allocation5 + $0x8] sm:$0xff] %vm1301, %v2450
      %2497 = vst.msk [vmem:[#allocation5 + $0x10] sm:$0xff] %vm1301, %v2452
      %2498 = vst.msk [vmem:[#allocation5 + $0x18] sm:$0xff] %vm1301, %v2454
      %2499 = vst.msk [vmem:[#allocation5 + $0x20] sm:$0xff] %vm1301, %v2456
      %2500 = vst.msk [vmem:[#allocation5 + $0x28] sm:$0xff] %vm1301, %v2458
      %2501 = vst.msk [vmem:[#allocation5 + $0x30] sm:$0xff] %vm1301, %v2460
      %2502 = vst.msk [vmem:[#allocation5 + $0x38] sm:$0xff] %vm1301, %v2462
      %2503 = vst.msk [vmem:[#allocation5 + $0x40] sm:$0xff] %vm1301, %v2464
      %2504 = vst.msk [vmem:[#allocation5 + $0x48] sm:$0xff] %vm1301, %v2466
      %2505 = vst.msk [vmem:[#allocation5 + $0x50] sm:$0xff] %vm1301, %v2468
      %2506 = vst.msk [vmem:[#allocation5 + $0x58] sm:$0xff] %vm1301, %v2470
      %2507 = vst.msk [vmem:[#allocation5 + $0x60] sm:$0xff] %vm1301, %v2472
      %2508 = vst.msk [vmem:[#allocation5 + $0x68] sm:$0xff] %vm1301, %v2474
      %2509 = vst.msk [vmem:[#allocation5 + $0x70] sm:$0xff] %vm1301, %v2476
      %2510 = vst.msk [vmem:[#allocation5 + $0x78] sm:$0xff] %vm1301, %v2478
      %v2511 = vld [vmem:[%s2414 + $0x1] sm:$0xff]
      %v2512 = vld [vmem:[%s2414 + $0x9] sm:$0xff]
      %v2513 = vld [vmem:[%s2414 + $0x19] sm:$0xff]
      %v2514 = vld [vmem:[%s2414 + $0x21] sm:$0xff]
      %v2515 = vld [vmem:[%s2414 + $0x31] sm:$0xff]
      %v2516 = vld [vmem:[%s2414 + $0x39] sm:$0xff]
      %v2517 = vld [vmem:[%s2414 + $0x49] sm:$0xff]
      %v2518 = vld [vmem:[%s2414 + $0x51] sm:$0xff]
      %v2519 = vld [vmem:[%s2414 + $0x61] sm:$0xff]
      %v2520 = vld [vmem:[%s2414 + $0x69] sm:$0xff]
      %v2521 = vld [vmem:[%s2414 + $0x79] sm:$0xff]
      %v2522 = vld [vmem:[%s2414 + $0x81] sm:$0xff]
      %v2523 = vld [vmem:[%s2414 + $0x91] sm:$0xff]
      %v2524 = vld [vmem:[%s2414 + $0x99] sm:$0xff]
      %v2525 = vld [vmem:[%s2414 + $0xa9] sm:$0xff]
      %v2526 = vld [vmem:[%s2414 + $0xb1] sm:$0xff]
      %2543 = vrot.lane.b32.xlu0 %v2511, 28
      %v2544 = vpop.permute.xlu0 %2543
      %2545 = vrot.lane.b32.xlu0 %v2512, 28
      %v2546 = vpop.permute.xlu0 %2545
      %2547 = vrot.lane.b32.xlu0 %v2513, 28
      %v2548 = vpop.permute.xlu0 %2547
      %2549 = vrot.lane.b32.xlu0 %v2514, 28
      %v2550 = vpop.permute.xlu0 %2549
      %2551 = vrot.lane.b32.xlu0 %v2515, 28
      %v2552 = vpop.permute.xlu0 %2551
      %2553 = vrot.lane.b32.xlu0 %v2516, 28
      %v2554 = vpop.permute.xlu0 %2553
      %2555 = vrot.lane.b32.xlu0 %v2517, 28
      %v2556 = vpop.permute.xlu0 %2555
      %2557 = vrot.lane.b32.xlu0 %v2518, 28
      %v2558 = vpop.permute.xlu0 %2557
      %2559 = vrot.lane.b32.xlu0 %v2519, 28
      %v2560 = vpop.permute.xlu0 %2559
      %2561 = vrot.lane.b32.xlu0 %v2520, 28
      %v2562 = vpop.permute.xlu0 %2561
      %2563 = vrot.lane.b32.xlu0 %v2521, 28
      %v2564 = vpop.permute.xlu0 %2563
      %2565 = vrot.lane.b32.xlu0 %v2522, 28
      %v2566 = vpop.permute.xlu0 %2565
      %2567 = vrot.lane.b32.xlu0 %v2523, 28
      %v2568 = vpop.permute.xlu0 %2567
      %2569 = vrot.lane.b32.xlu0 %v2524, 28
      %v2570 = vpop.permute.xlu0 %2569
      %2571 = vrot.lane.b32.xlu0 %v2525, 28
      %v2572 = vpop.permute.xlu0 %2571
      %2573 = vrot.lane.b32.xlu0 %v2526, 28
      %v2574 = vpop.permute.xlu0 %2573
      %2591 = vst.msk [vmem:[#allocation5] sm:$0xff] %vm1422, %v2544
      %2592 = vst.msk [vmem:[#allocation5 + $0x8] sm:$0xff] %vm1422, %v2546
      %2593 = vst.msk [vmem:[#allocation5 + $0x10] sm:$0xff] %vm1422, %v2548
      %2594 = vst.msk [vmem:[#allocation5 + $0x18] sm:$0xff] %vm1422, %v2550
      %2595 = vst.msk [vmem:[#allocation5 + $0x20] sm:$0xff] %vm1422, %v2552
      %2596 = vst.msk [vmem:[#allocation5 + $0x28] sm:$0xff] %vm1422, %v2554
      %2597 = vst.msk [vmem:[#allocation5 + $0x30] sm:$0xff] %vm1422, %v2556
      %2598 = vst.msk [vmem:[#allocation5 + $0x38] sm:$0xff] %vm1422, %v2558
      %2599 = vst.msk [vmem:[#allocation5 + $0x40] sm:$0xff] %vm1422, %v2560
      %2600 = vst.msk [vmem:[#allocation5 + $0x48] sm:$0xff] %vm1422, %v2562
      %2601 = vst.msk [vmem:[#allocation5 + $0x50] sm:$0xff] %vm1422, %v2564
      %2602 = vst.msk [vmem:[#allocation5 + $0x58] sm:$0xff] %vm1422, %v2566
      %2603 = vst.msk [vmem:[#allocation5 + $0x60] sm:$0xff] %vm1422, %v2568
      %2604 = vst.msk [vmem:[#allocation5 + $0x68] sm:$0xff] %vm1422, %v2570
      %2605 = vst.msk [vmem:[#allocation5 + $0x70] sm:$0xff] %vm1422, %v2572
      %2606 = vst.msk [vmem:[#allocation5 + $0x78] sm:$0xff] %vm1422, %v2574
      %v2607 = vld [vmem:[%s2414 + $0x2] sm:$0xff]
      %v2608 = vld [vmem:[%s2414 + $0xa] sm:$0xff]
      %v2609 = vld [vmem:[%s2414 + $0x1a] sm:$0xff]
      %v2610 = vld [vmem:[%s2414 + $0x22] sm:$0xff]
      %v2611 = vld [vmem:[%s2414 + $0x32] sm:$0xff]
      %v2612 = vld [vmem:[%s2414 + $0x3a] sm:$0xff]
      %v2613 = vld [vmem:[%s2414 + $0x4a] sm:$0xff]
      %v2614 = vld [vmem:[%s2414 + $0x52] sm:$0xff]
      %v2615 = vld [vmem:[%s2414 + $0x62] sm:$0xff]
      %v2616 = vld [vmem:[%s2414 + $0x6a] sm:$0xff]
      %v2617 = vld [vmem:[%s2414 + $0x7a] sm:$0xff]
      %v2618 = vld [vmem:[%s2414 + $0x82] sm:$0xff]
      %v2619 = vld [vmem:[%s2414 + $0x92] sm:$0xff]
      %v2620 = vld [vmem:[%s2414 + $0x9a] sm:$0xff]
      %v2621 = vld [vmem:[%s2414 + $0xaa] sm:$0xff]
      %v2622 = vld [vmem:[%s2414 + $0xb2] sm:$0xff]
      %2639 = vrot.lane.b32.xlu0 %v2607, 32
      %v2640 = vpop.permute.xlu0 %2639
      %2641 = vrot.lane.b32.xlu0 %v2608, 32
      %v2642 = vpop.permute.xlu0 %2641
      %2643 = vrot.lane.b32.xlu0 %v2609, 32
      %v2644 = vpop.permute.xlu0 %2643
      %2645 = vrot.lane.b32.xlu0 %v2610, 32
      %v2646 = vpop.permute.xlu0 %2645
      %2647 = vrot.lane.b32.xlu0 %v2611, 32
      %v2648 = vpop.permute.xlu0 %2647
      %2649 = vrot.lane.b32.xlu0 %v2612, 32
      %v2650 = vpop.permute.xlu0 %2649
      %2651 = vrot.lane.b32.xlu0 %v2613, 32
      %v2652 = vpop.permute.xlu0 %2651
      %2653 = vrot.lane.b32.xlu0 %v2614, 32
      %v2654 = vpop.permute.xlu0 %2653
      %2655 = vrot.lane.b32.xlu0 %v2615, 32
      %v2656 = vpop.permute.xlu0 %2655
      %2657 = vrot.lane.b32.xlu0 %v2616, 32
      %v2658 = vpop.permute.xlu0 %2657
      %2659 = vrot.lane.b32.xlu0 %v2617, 32
      %v2660 = vpop.permute.xlu0 %2659
      %2661 = vrot.lane.b32.xlu0 %v2618, 32
      %v2662 = vpop.permute.xlu0 %2661
      %2663 = vrot.lane.b32.xlu0 %v2619, 32
      %v2664 = vpop.permute.xlu0 %2663
      %2665 = vrot.lane.b32.xlu0 %v2620, 32
      %v2666 = vpop.permute.xlu0 %2665
      %2667 = vrot.lane.b32.xlu0 %v2621, 32
      %v2668 = vpop.permute.xlu0 %2667
      %2669 = vrot.lane.b32.xlu0 %v2622, 32
      %v2670 = vpop.permute.xlu0 %2669
      %2687 = vst.msk [vmem:[#allocation5] sm:$0xff] %vm1543, %v2640
      %2688 = vst.msk [vmem:[#allocation5 + $0x8] sm:$0xff] %vm1543, %v2642
      %2689 = vst.msk [vmem:[#allocation5 + $0x10] sm:$0xff] %vm1543, %v2644
      %2690 = vst.msk [vmem:[#allocation5 + $0x18] sm:$0xff] %vm1543, %v2646
      %2691 = vst.msk [vmem:[#allocation5 + $0x20] sm:$0xff] %vm1543, %v2648
      %2692 = vst.msk [vmem:[#allocation5 + $0x28] sm:$0xff] %vm1543, %v2650
      %2693 = vst.msk [vmem:[#allocation5 + $0x30] sm:$0xff] %vm1543, %v2652
      %2694 = vst.msk [vmem:[#allocation5 + $0x38] sm:$0xff] %vm1543, %v2654
      %2695 = vst.msk [vmem:[#allocation5 + $0x40] sm:$0xff] %vm1543, %v2656
      %2696 = vst.msk [vmem:[#allocation5 + $0x48] sm:$0xff] %vm1543, %v2658
      %2697 = vst.msk [vmem:[#allocation5 + $0x50] sm:$0xff] %vm1543, %v2660
      %2698 = vst.msk [vmem:[#allocation5 + $0x58] sm:$0xff] %vm1543, %v2662
      %2699 = vst.msk [vmem:[#allocation5 + $0x60] sm:$0xff] %vm1543, %v2664
      %2700 = vst.msk [vmem:[#allocation5 + $0x68] sm:$0xff] %vm1543, %v2666
      %2701 = vst.msk [vmem:[#allocation5 + $0x70] sm:$0xff] %vm1543, %v2668
      %2702 = vst.msk [vmem:[#allocation5 + $0x78] sm:$0xff] %vm1543, %v2670
      %v2703 = vld [vmem:[#allocation5] sm:$0xff]
      %v2704 = vld [vmem:[#allocation5 + $0x8] sm:$0xff]
      %v2705 = vld [vmem:[#allocation5 + $0x10] sm:$0xff]
      %v2706 = vld [vmem:[#allocation5 + $0x18] sm:$0xff]
      %v2707 = vld [vmem:[#allocation5 + $0x20] sm:$0xff]
      %v2708 = vld [vmem:[#allocation5 + $0x28] sm:$0xff]
      %v2709 = vld [vmem:[#allocation5 + $0x30] sm:$0xff]
      %v2710 = vld [vmem:[#allocation5 + $0x38] sm:$0xff]
      %v2711 = vld [vmem:[#allocation5 + $0x40] sm:$0xff]
      %v2712 = vld [vmem:[#allocation5 + $0x48] sm:$0xff]
      %v2713 = vld [vmem:[#allocation5 + $0x50] sm:$0xff]
      %v2714 = vld [vmem:[#allocation5 + $0x58] sm:$0xff]
      %v2715 = vld [vmem:[#allocation5 + $0x60] sm:$0xff]
      %v2716 = vld [vmem:[#allocation5 + $0x68] sm:$0xff]
      %v2717 = vld [vmem:[#allocation5 + $0x70] sm:$0xff]
      %v2718 = vld [vmem:[#allocation5 + $0x78] sm:$0xff]
      %v2719 = vld [vmem:[%s5] sm:$0xff]
      %v2720 = vld [vmem:[%s5 + $0x8] sm:$0xff]
      %v2721 = vld [vmem:[%s5 + $0x10] sm:$0xff]
      %v2722 = vld [vmem:[%s5 + $0x18] sm:$0xff]
      %v2723 = vld [vmem:[%s5 + $0x20] sm:$0xf]
      %v2724 = vld [vmem:[%s6] sm:$0x1]
      %v2726 = vlaneseq
      %v2727 = vshrl.u32 %v2726, 7
      %v2728 = vsub.s32 0, %v2727
      %v2729 = vrot.slane %v2724, %v2728
      %v2732 = vsel %vm1596, %v2703, 0
      %v2735 = vsel %vm1596, %v2704, 0
      %v2738 = vsel %vm1596, %v2705, 0
      %v2741 = vsel %vm1596, %v2706, 0
      %v2744 = vsel %vm1596, %v2707, 0
      %v2747 = vsel %vm1596, %v2708, 0
      %v2750 = vsel %vm1596, %v2709, 0
      %v2753 = vsel %vm1596, %v2710, 0
      %v2756 = vsel %vm1596, %v2711, 0
      %v2759 = vsel %vm1596, %v2712, 0
      %v2762 = vsel %vm1596, %v2713, 0
      %v2765 = vsel %vm1596, %v2714, 0
      %v2768 = vsel %vm1596, %v2715, 0
      %v2771 = vsel %vm1596, %v2716, 0
      %v2774 = vsel %vm1596, %v2717, 0
      %v2777 = vsel %vm1596, %v2718, 0
      %v2780 = vsel %vm1657, %v2723, 0
      %2782 = vmatprep.subr.mxu0 0.0
      %2783 = vmatpush1.msra.mxu0 %v2719
      %2784 = vmatprep.subr.mxu0 0.0
      %2785 = vmatpush1.msra.mxu0 %v2720
      %2786 = vmatprep.subr.mxu0 0.0
      %2787 = vmatpush1.msra.mxu0 %v2721
      %2788 = vmatprep.subr.mxu0 0.0
      %2789 = vmatpush1.msra.mxu0 %v2722
      %2790 = vmatprep.subr.mxu0 0.0
      %2791 = vmatpush1.msra.mxu0 %v2780
      %2792 = vmatprep.subr.mxu0 0.0
      %2793 = vmatpush1.msra.mxu0 0.0
      %2794 = vmatprep.subr.mxu0 0.0
      %2795 = vmatpush1.msra.mxu0 0.0
      %2796 = vmatprep.subr.mxu0 0.0
      %2797 = vmatpush1.msra.mxu0 0.0
      %2798 = vmatprep.subr.mxu0 0.0
      %2799 = vmatpush1.msra.mxu0 0.0
      %2800 = vmatprep.subr.mxu0 0.0
      %2801 = vmatpush1.msra.mxu0 0.0
      %2802 = vmatprep.subr.mxu0 0.0
      %2803 = vmatpush1.msra.mxu0 0.0
      %2804 = vmatprep.subr.mxu0 0.0
      %2805 = vmatpush1.msra.mxu0 0.0
      %2806 = vmatprep.subr.mxu0 0.0
      %2807 = vmatpush1.msra.mxu0 0.0
      %2808 = vmatprep.subr.mxu0 0.0
      %2809 = vmatpush1.msra.mxu0 0.0
      %2810 = vmatprep.subr.mxu0 0.0
      %2811 = vmatpush1.msra.mxu0 0.0
      %2812 = vmatprep.subr.mxu0 0.0
      %2813 = vmatpush1.msra.mxu0 0.0
      %2814 = vmatprep.subr.mxu0 0.0
      %2815 = vmatpush1.msra.mxu0 0.0
      %2816 = vmatprep.subr.mxu0 0.0
      %2817 = vmatpush1.msra.mxu0 0.0
      %2818 = vmatprep.subr.mxu0 0.0
      %2819 = vmatpush1.msra.mxu0 0.0
      %2820 = vmatprep.subr.mxu0 0.0
      %2821 = vmatpush1.msra.mxu0 0.0
      %2822 = vmatprep.subr.mxu0 0.0
      %2823 = vmatpush1.msra.mxu0 0.0
      %2824 = vmatprep.subr.mxu0 0.0
      %2825 = vmatpush1.msra.mxu0 0.0
      %2826 = vmatprep.subr.mxu0 0.0
      %2827 = vmatpush1.msra.mxu0 0.0
      %2828 = vmatprep.subr.mxu0 0.0
      %2829 = vmatpush1.msra.mxu0 0.0
      %2830 = vmatprep.subr.mxu0 0.0
      %2831 = vmatpush1.msra.mxu0 0.0
      %2832 = vmatprep.subr.mxu0 0.0
      %2833 = vmatpush1.msra.mxu0 0.0
      %2834 = vmatprep.subr.mxu0 0.0
      %2835 = vmatpush1.msra.mxu0 0.0
      %2836 = vmatprep.subr.mxu0 0.0
      %2837 = vmatpush1.msra.mxu0 0.0
      %2838 = vmatprep.subr.mxu0 0.0
      %2839 = vmatpush1.msra.mxu0 0.0
      %2840 = vmatprep.subr.mxu0 0.0
      %2841 = vmatpush1.msra.mxu0 0.0
      %2842 = vmatprep.subr.mxu0 0.0
      %2843 = vmatpush1.msra.mxu0 0.0
      %2844 = vmatprep.subr.mxu0 0.0
      %2845 = vmatpush1.msra.mxu0 0.0
      %2846 = vmatprep.mubr.f32.mxu0 0.0
      %2847 = vmatmul.mubr.f32.gmra.mrb[0].mxu0 %v2732
      %v2848 = vpop.f32.mrb[0].mxu0
      %v2849 = vadd.f32 %v2729, %v2848
      %v2850 = vpop.f32.mrb[0].mxu0
      %2851 = vmatprep.mubr.f32.mxu0 0.0
      %2852 = vmatmul.mubr.f32.gmra.mrb[0].mxu0 %v2735
      %v2853 = vpop.f32.mrb[0].mxu0
      %v2854 = vadd.f32 %v2729, %v2853
      %v2855 = vpop.f32.mrb[0].mxu0
      %2856 = vmatprep.mubr.f32.mxu0 0.0
      %2857 = vmatmul.mubr.f32.gmra.mrb[0].mxu0 %v2738
      %v2858 = vpop.f32.mrb[0].mxu0
      %v2859 = vadd.f32 %v2729, %v2858
      %v2860 = vpop.f32.mrb[0].mxu0
      %2861 = vmatprep.mubr.f32.mxu0 0.0
      %2862 = vmatmul.mubr.f32.gmra.mrb[0].mxu0 %v2741
      %v2863 = vpop.f32.mrb[0].mxu0
      %v2864 = vadd.f32 %v2729, %v2863
      %v2865 = vpop.f32.mrb[0].mxu0
      %2866 = vmatprep.mubr.f32.mxu0 0.0
      %2867 = vmatmul.mubr.f32.gmra.mrb[0].mxu0 %v2744
      %v2868 = vpop.f32.mrb[0].mxu0
      %v2869 = vadd.f32 %v2729, %v2868
      %v2870 = vpop.f32.mrb[0].mxu0
      %2871 = vmatprep.mubr.f32.mxu0 0.0
      %2872 = vmatmul.mubr.f32.gmra.mrb[0].mxu0 %v2747
      %v2873 = vpop.f32.mrb[0].mxu0
      %v2874 = vadd.f32 %v2729, %v2873
      %v2875 = vpop.f32.mrb[0].mxu0
      %2876 = vmatprep.mubr.f32.mxu0 0.0
      %2877 = vmatmul.mubr.f32.gmra.mrb[0].mxu0 %v2750
      %v2878 = vpop.f32.mrb[0].mxu0
      %v2879 = vadd.f32 %v2729, %v2878
      %v2880 = vpop.f32.mrb[0].mxu0
      %2881 = vmatprep.mubr.f32.mxu0 0.0
      %2882 = vmatmul.mubr.f32.gmra.mrb[0].mxu0 %v2753
      %v2883 = vpop.f32.mrb[0].mxu0
      %v2884 = vadd.f32 %v2729, %v2883
      %v2885 = vpop.f32.mrb[0].mxu0
      %2886 = vmatprep.mubr.f32.mxu0 0.0
      %2887 = vmatmul.mubr.f32.gmra.mrb[0].mxu0 %v2756
      %v2888 = vpop.f32.mrb[0].mxu0
      %v2889 = vadd.f32 %v2729, %v2888
      %v2890 = vpop.f32.mrb[0].mxu0
      %2891 = vmatprep.mubr.f32.mxu0 0.0
      %2892 = vmatmul.mubr.f32.gmra.mrb[0].mxu0 %v2759
      %v2893 = vpop.f32.mrb[0].mxu0
      %v2894 = vadd.f32 %v2729, %v2893
      %v2895 = vpop.f32.mrb[0].mxu0
      %2896 = vmatprep.mubr.f32.mxu0 0.0
      %2897 = vmatmul.mubr.f32.gmra.mrb[0].mxu0 %v2762
      %v2898 = vpop.f32.mrb[0].mxu0
      %v2899 = vadd.f32 %v2729, %v2898
      %v2900 = vpop.f32.mrb[0].mxu0
      %2901 = vmatprep.mubr.f32.mxu0 0.0
      %2902 = vmatmul.mubr.f32.gmra.mrb[0].mxu0 %v2765
      %v2903 = vpop.f32.mrb[0].mxu0
      %v2904 = vadd.f32 %v2729, %v2903
      %v2905 = vpop.f32.mrb[0].mxu0
      %2906 = vmatprep.mubr.f32.mxu0 0.0
      %2907 = vmatmul.mubr.f32.gmra.mrb[0].mxu0 %v2768
      %v2908 = vpop.f32.mrb[0].mxu0
      %v2909 = vadd.f32 %v2729, %v2908
      %v2910 = vpop.f32.mrb[0].mxu0
      %2911 = vmatprep.mubr.f32.mxu0 0.0
      %2912 = vmatmul.mubr.f32.gmra.mrb[0].mxu0 %v2771
      %v2913 = vpop.f32.mrb[0].mxu0
      %v2914 = vadd.f32 %v2729, %v2913
      %v2915 = vpop.f32.mrb[0].mxu0
      %2916 = vmatprep.mubr.f32.mxu0 0.0
      %2917 = vmatmul.mubr.f32.gmra.mrb[0].mxu0 %v2774
      %v2918 = vpop.f32.mrb[0].mxu0
      %v2919 = vadd.f32 %v2729, %v2918
      %v2920 = vpop.f32.mrb[0].mxu0
      %2921 = vmatprep.mubr.f32.mxu0 0.0
      %2922 = vmatmul.mubr.f32.gmra.mrb[0].mxu0 %v2777
      %v2923 = vpop.f32.mrb[0].mxu0
      %v2924 = vadd.f32 %v2729, %v2923
      %v2925 = vpop.f32.mrb[0].mxu0
      %2926 = vdwg.mxu0
      %v2927 = vld [vmem:[%s406] sm:$0xff]
      %v2928 = vld [vmem:[%s406 + $0x8] sm:$0xff]
      %v2929 = vld [vmem:[%s406 + $0x10] sm:$0xff]
      %v2930 = vld [vmem:[%s406 + $0x18] sm:$0xff]
      %v2931 = vld [vmem:[%s406 + $0x20] sm:$0xff]
      %v2932 = vld [vmem:[%s406 + $0x28] sm:$0xff]
      %v2933 = vld [vmem:[%s406 + $0x30] sm:$0xff]
      %v2934 = vld [vmem:[%s406 + $0x38] sm:$0xff]
      %v2935 = vld [vmem:[%s406 + $0x40] sm:$0xff]
      %v2936 = vld [vmem:[%s406 + $0x48] sm:$0xff]
      %v2937 = vld [vmem:[%s406 + $0x50] sm:$0xff]
      %v2938 = vld [vmem:[%s406 + $0x58] sm:$0xff]
      %v2939 = vld [vmem:[%s406 + $0x60] sm:$0xff]
      %v2940 = vld [vmem:[%s406 + $0x68] sm:$0xff]
      %v2941 = vld [vmem:[%s406 + $0x70] sm:$0xff]
      %v2942 = vld [vmem:[%s406 + $0x78] sm:$0xff]
      %v2943 = vadd.f32 %v2849, %v2927
      %v2944 = vadd.f32 %v2854, %v2928
      %v2945 = vadd.f32 %v2859, %v2929
      %v2946 = vadd.f32 %v2864, %v2930
      %v2947 = vadd.f32 %v2869, %v2931
      %v2948 = vadd.f32 %v2874, %v2932
      %v2949 = vadd.f32 %v2879, %v2933
      %v2950 = vadd.f32 %v2884, %v2934
      %v2951 = vadd.f32 %v2889, %v2935
      %v2952 = vadd.f32 %v2894, %v2936
      %v2953 = vadd.f32 %v2899, %v2937
      %v2954 = vadd.f32 %v2904, %v2938
      %v2955 = vadd.f32 %v2909, %v2939
      %v2956 = vadd.f32 %v2914, %v2940
      %v2957 = vadd.f32 %v2919, %v2941
      %v2958 = vadd.f32 %v2924, %v2942
      %v2959 = vmax.f32 %v2943, 0.0
      %v2960 = vmax.f32 %v2944, 0.0
      %v2961 = vmax.f32 %v2945, 0.0
      %v2962 = vmax.f32 %v2946, 0.0
      %v2963 = vmax.f32 %v2947, 0.0
      %v2964 = vmax.f32 %v2948, 0.0
      %v2965 = vmax.f32 %v2949, 0.0
      %v2966 = vmax.f32 %v2950, 0.0
      %v2967 = vmax.f32 %v2951, 0.0
      %v2968 = vmax.f32 %v2952, 0.0
      %v2969 = vmax.f32 %v2953, 0.0
      %v2970 = vmax.f32 %v2954, 0.0
      %v2971 = vmax.f32 %v2955, 0.0
      %v2972 = vmax.f32 %v2956, 0.0
      %v2973 = vmax.f32 %v2957, 0.0
      %v2974 = vmax.f32 %v2958, 0.0
      %2975 = vst.msk [vmem:[%s455] sm:$0xff] %vm499, %v2959
      %2976 = vst.msk [vmem:[%s455 + $0x8] sm:$0xff] %vm499, %v2960
      %2977 = vst.msk [vmem:[%s455 + $0x10] sm:$0xff] %vm499, %v2961
      %2978 = vst.msk [vmem:[%s455 + $0x18] sm:$0xff] %vm499, %v2962
      %2979 = vst.msk [vmem:[%s455 + $0x20] sm:$0xff] %vm499, %v2963
      %2980 = vst.msk [vmem:[%s455 + $0x28] sm:$0xff] %vm499, %v2964
      %2981 = vst.msk [vmem:[%s455 + $0x30] sm:$0xff] %vm499, %v2965
      %2982 = vst.msk [vmem:[%s455 + $0x38] sm:$0xff] %vm499, %v2966
      %2983 = vst.msk [vmem:[%s455 + $0x40] sm:$0xff] %vm499, %v2967
      %2984 = vst.msk [vmem:[%s455 + $0x48] sm:$0xff] %vm499, %v2968
      %2985 = vst.msk [vmem:[%s455 + $0x50] sm:$0xff] %vm499, %v2969
      %2986 = vst.msk [vmem:[%s455 + $0x58] sm:$0xff] %vm499, %v2970
      %2987 = vst.msk [vmem:[%s455 + $0x60] sm:$0xff] %vm499, %v2971
      %2988 = vst.msk [vmem:[%s455 + $0x68] sm:$0xff] %vm499, %v2972
      %2989 = vst.msk [vmem:[%s455 + $0x70] sm:$0xff] %vm499, %v2973
      %2990 = vst.msk [vmem:[%s455 + $0x78] sm:$0xff] %vm499, %v2974
      %s2991 = smul.u32 8, %s23
      %p2992 = scmp.lt.s32.totalorder %s22, 1
      %s2993 = scalar_select %p2992, %s22, 1
      %p2994 = scmp.lt.s32.totalorder %s2991, 15
      %s2995 = scalar_select %p2994, %s2991, 15
      %s2996 = smul.addr %s2995, 2
      %s2997 = smul.addr %s2993, 32
      %s2998 = sadd.s32 %s2996, %s2997
      %s2999 = smul.addr %s2998, 8
      %s3000 = scalar_lea.vmem %s7, %s2999
      // Predicated region
      $region65: #{tpu_custom_call.1} parent=47 // pred_check
        %p3001 = pneg %p234
      $region66: #{tpu_custom_call.1} parent=47 // pred_check_branch
        %3003 = sbr.rel (%p3001) target = $region68
      $region67: #{tpu_custom_call.1} parent=47 // pred_region
        %s3004 = smul.u32 8, %s23
      $region68: #{tpu_custom_call.1} parent=47 // pred_fallthru
        _
    $region48: #{tpu_custom_call.1} parent=5 // pred_fallthru
      _
    %p3005 = scmp.le.s32.totalorder 2, %s13
    // Predicated region
    $region69: #{tpu_custom_call.1} parent=5 // pred_check
      %p3006 = pneg %p3005
    $region70: #{tpu_custom_call.1} parent=5 // pred_check_branch
      %3008 = sbr.rel (%p3006) target = $region72
    $region71: #{tpu_custom_call.1} parent=5 // pred_region
      %s3009 = ssub.s32 %s13, 2
      // Predicated region
      $region73: #{tpu_custom_call.1} parent=71 // pred_check
        %p3010 = pneg %p240
      $region74: #{tpu_custom_call.1} parent=71 // pred_check_branch
        %3012 = sbr.rel (%p3010) target = $region76
      $region75: #{tpu_custom_call.1} parent=71 // pred_region
        %s3013 = smul.u32 8, %s25
        %p3014 = scmp.lt.s32.totalorder %s24, 1
        %s3015 = scalar_select %p3014, %s24, 1
        %p3016 = scmp.lt.s32.totalorder %s3013, 15
        %s3017 = scalar_select %p3016, %s3013, 15
        %s3018 = smul.addr %s3017, 2
        %s3019 = smul.addr %s3015, 32
        %s3020 = sadd.s32 %s3018, %s3019
        %s3021 = smul.addr %s3020, 8
        %s3022 = scalar_lea.vmem %s7, %s3021
      $region76: #{tpu_custom_call.1} parent=71 // pred_fallthru
        _
    $region72: #{tpu_custom_call.1} parent=5 // pred_fallthru
      _
  $region6: #{tpu_custom_call.1} parent=0 // loop_footer
    %s17 = sadd.s32 1, %s13
  $region7: #{tpu_custom_call.1} parent=0 // loop_footer_branch
    %12 = sbr.rel target = $region3
  $region8: #{tpu_custom_call.1} parent=0 // loop_exit
    _

</llo_original>
